<compile_context>
chip_gen: v7x
topology: tpu7x:2x2x1
jax: 0.10.0
libtpu: 0.0.40
codegen_flags: <defaults>
</compile_context>

<pallas_src>
import functools

import jax
import jax.numpy as jnp
from jax import lax
from jax.experimental import pallas as pl
from jax.experimental.pallas import tpu as pltpu


# ----------------------------- Pallas kernels ------------------------------ #

def _conv3x3_relu_pool_kernel(x_ref, m0_ref, m1_ref, m2_ref, b_ref, o_ref, *, ho, he):
    """Fused 3x3 conv (pad=1) + bias + ReLU + 2x2 max-pool for one batch element.

    x_ref : (H+2, (W+2)*Cin)  padded input rows, row-parity permuted
            (rows [0:he] are padded rows 0,2,4,..., rows [he:] are rows 1,3,5,...).
    m*_ref: ((W+2)*Cin, W*Cout) banded conv weights for kh taps 0/1/2; columns
            ordered (w parity, w//2, cout).
    b_ref : (1, (W//2)*Cout) bias, tiled per pooled output column.
    o_ref : (H//2, (W//2)*Cout) pooled output (lane-dense last dim).
    """
    f32 = jnp.float32
    ev0 = x_ref[0:ho, :]                 # padded rows 2*hp
    ev1 = x_ref[1:1 + ho, :]             # padded rows 2*hp + 2
    od0 = x_ref[he:he + ho, :]           # padded rows 2*hp + 1
    od1 = x_ref[he + 1:he + 1 + ho, :]   # padded rows 2*hp + 3
    m0 = m0_ref[...]
    m1 = m1_ref[...]
    m2 = m2_ref[...]
    # conv output rows 2*hp (even) and 2*hp+1 (odd), f32 accumulation on the MXU
    acc_e = (jnp.dot(ev0, m0, preferred_element_type=f32)
             + jnp.dot(od0, m1, preferred_element_type=f32)
             + jnp.dot(ev1, m2, preferred_element_type=f32))
    acc_o = (jnp.dot(od0, m0, preferred_element_type=f32)
             + jnp.dot(ev1, m1, preferred_element_type=f32)
             + jnp.dot(od1, m2, preferred_element_type=f32))
    m = jnp.maximum(acc_e, acc_o)                      # pool over h
    half = m.shape[1] // 2
    m = jnp.maximum(m[:, :half], m[:, half:])          # pool over w (parity column halves)
    # bias + ReLU commute with the max (both monotone, bias uniform per window)
    o_ref[...] = jnp.maximum(m + b_ref[...], 0.0).astype(o_ref.dtype)


def _fc1_relu_fc2_kernel(x_ref, w1_ref, b1_ref, w2_ref, b2_ref, o_ref):
    """Fused fc1 + ReLU + fc2 for one tile of batch rows."""
    f32 = jnp.float32
    h = jnp.dot(x_ref[...], w1_ref[...], preferred_element_type=f32) + b1_ref[...]
    h = jnp.maximum(h, 0.0).astype(w2_ref.dtype)
    y = jnp.dot(h, w2_ref[...], preferred_element_type=f32) + b2_ref[...]
    o_ref[...] = y.astype(o_ref.dtype)


# ------------------------- weight preparation (once) ------------------------ #

def _make_conv_pool_weights(w_oihw, bias, H, W, dtype):
    """Build banded block-Toeplitz matrices M_dh ((W+2)*Cin, W*Cout) so that the
    3x3 conv over a padded NHWC row-slab is three plain 2-D matmuls.  Columns are
    ordered (w parity, w//2, cout) so the in-kernel 2x2 w-pool is a max of the two
    contiguous column halves."""
    Cout, Cin, KH, KW = w_oihw.shape
    assert KH == 3 and KW == 3
    wk = jnp.transpose(w_oihw, (2, 3, 1, 0)).astype(jnp.float32)   # (kh, kw, Cin, Cout)
    Wp = W + 2
    worder = jnp.concatenate([jnp.arange(0, W, 2), jnp.arange(1, W, 2)])   # even w's, then odd
    rows = jnp.arange(Wp)
    mats = []
    for dh in range(3):
        t = jnp.zeros((Wp, Cin, W, Cout), jnp.float32)
        for dw in range(3):
            sel = (rows[:, None] == worder[None, :] + dw).astype(jnp.float32)   # (Wp, W)
            t = t + sel[:, None, :, None] * wk[dh, dw][None, :, None, :]
        mats.append(t.reshape(Wp * Cin, W * Cout).astype(dtype))
    bias_row = jnp.tile(bias.astype(jnp.float32), W // 2).reshape(1, (W // 2) * Cout)
    return tuple(mats), bias_row


def prepare_params(params, image_size, compute_dtype=jnp.bfloat16):
    """One-time transform of PyTorch-layout params into kernel-ready tensors
    (kept out of the jit-hot forward path)."""
    f32 = jnp.float32
    H1 = W1 = image_size
    H2 = W2 = image_size // 2
    c1m, c1b = _make_conv_pool_weights(params["conv1_w"], params["conv1_b"], H1, W1, compute_dtype)
    c2m, c2b = _make_conv_pool_weights(params["conv2_w"], params["conv2_b"], H2, W2, compute_dtype)
    Cout2 = params["conv2_w"].shape[0]
    Ho = image_size // 4
    hidden = params["fc1_w"].shape[0]
    # Fold torch's NCHW flatten order into fc1's weight (weight-only permutation).
    fc1_w = (params["fc1_w"].reshape(hidden, Cout2, Ho, Ho)
             .transpose(0, 2, 3, 1).reshape(hidden, -1).T)
    return {
        "conv1_m": c1m, "conv1_b": c1b,
        "conv2_m": c2m, "conv2_b": c2b,
        "fc1_w": fc1_w.astype(compute_dtype),
        "fc1_b": params["fc1_b"].astype(f32).reshape(1, -1),
        "fc2_w": params["fc2_w"].T.astype(compute_dtype),
        "fc2_b": params["fc2_b"].astype(f32).reshape(1, -1),
    }


# ------------------------------ layer wrappers ------------------------------ #

def conv_pool_layer(x_nhwc, mats, bias_row, dtype):
    N, H, W, Cin = x_nhwc.shape
    assert H % 2 == 0 and W % 2 == 0
    m0, m1, m2 = mats
    Lin, LoutW = m0.shape
    assert Lin == (W + 2) * Cin
    Cout = LoutW // W
    Ho, Wo = H // 2, W // 2
    half = Wo * Cout
    Hp = H + 2
    he = Hp // 2                     # number of even padded rows

    # pad spatially, flatten (w, c) into the lane dim, parity-permute rows (tiny glue)
    xp = jnp.pad(x_nhwc, ((0, 0), (1, 1), (1, 1), (0, 0))).reshape(N, Hp, (W + 2) * Cin)
    xp = jnp.concatenate([xp[:, 0::2, :], xp[:, 1::2, :]], axis=1).astype(dtype)

    out = pl.pallas_call(
        functools.partial(_conv3x3_relu_pool_kernel, ho=Ho, he=he),
        out_shape=jax.ShapeDtypeStruct((N, Ho, half), dtype),
        grid=(N,),
        in_specs=[
            pl.BlockSpec((None, Hp, Lin), lambda n: (n, 0, 0)),
            pl.BlockSpec((Lin, LoutW), lambda n: (0, 0)),
            pl.BlockSpec((Lin, LoutW), lambda n: (0, 0)),
            pl.BlockSpec((Lin, LoutW), lambda n: (0, 0)),
            pl.BlockSpec((1, half), lambda n: (0, 0)),
        ],
        out_specs=pl.BlockSpec((None, Ho, half), lambda n: (n, 0, 0)),
        compiler_params=pltpu.CompilerParams(dimension_semantics=("parallel",)),
    )(xp, m0, m1, m2, bias_row)
    # (N, Ho, Wo*Cout) row-major == (N, Ho, Wo, Cout) row-major: free reshape.
    return out.reshape(N, Ho, Wo, Cout)


def fc_layers(x_flat, w1, b1, w2, b2):
    B, K = x_flat.shape
    Hdim = w1.shape[1]
    # Single batch tile at these sizes; tiles over rows (parallel axis) as B grows.
    # TODO(synk): add a K-axis accumulator (pl.when init/finalize) if K grows large.
    TM = B if B <= 128 else 128
    return pl.pallas_call(
        _fc1_relu_fc2_kernel,
        out_shape=jax.ShapeDtypeStruct((B, Hdim), jnp.float32),
        grid=(pl.cdiv(B, TM),),
        in_specs=[
            pl.BlockSpec((TM, K), lambda i: (i, 0)),
            pl.BlockSpec((K, Hdim), lambda i: (0, 0)),
            pl.BlockSpec((1, Hdim), lambda i: (0, 0)),
            pl.BlockSpec((Hdim, Hdim), lambda i: (0, 0)),
            pl.BlockSpec((1, Hdim), lambda i: (0, 0)),
        ],
        out_specs=pl.BlockSpec((TM, Hdim), lambda i: (i, 0)),
        compiler_params=pltpu.CompilerParams(dimension_semantics=("parallel",)),
    )(x_flat, w1, b1, w2, b2)


@jax.jit
def image_mlp_forward(kparams, x_nchw):
    N = x_nchw.shape[0]
    dtype = kparams["fc1_w"].dtype
    x = jnp.transpose(x_nchw, (0, 2, 3, 1))        # NHWC (small one-time transpose)
    x = conv_pool_layer(x, kparams["conv1_m"], kparams["conv1_b"], dtype)
    x = conv_pool_layer(x, kparams["conv2_m"], kparams["conv2_b"], dtype)
    x = x.reshape(N, -1)                           # NHWC flatten; NCHW order folded into fc1_w
    return fc_layers(x, kparams["fc1_w"], kparams["fc1_b"],
                     kparams["fc2_w"], kparams["fc2_b"])


# --------------------------- params & reference ----------------------------- #

def init_params(key, image_channels, image_size, hidden_dim):
    ks = jax.random.split(key, 8)
    s = 0.05
    flat = 64 * (image_size // 4) * (image_size // 4)
    return {
        "conv1_w": jax.random.normal(ks[0], (32, image_channels, 3, 3), jnp.float32) * s,
        "conv1_b": jax.random.normal(ks[1], (32,), jnp.float32) * s,
        "conv2_w": jax.random.normal(ks[2], (64, 32, 3, 3), jnp.float32) * s,
        "conv2_b": jax.random.normal(ks[3], (64,), jnp.float32) * s,
        "fc1_w": jax.random.normal(ks[4], (hidden_dim, flat), jnp.float32) * s,
        "fc1_b": jax.random.normal(ks[5], (hidden_dim,), jnp.float32) * s,
        "fc2_w": jax.random.normal(ks[6], (hidden_dim, hidden_dim), jnp.float32) * s,
        "fc2_b": jax.random.normal(ks[7], (hidden_dim,), jnp.float32) * s,
    }


def reference_forward(params, x_nchw):
    """Pure-JAX reference mirroring the PyTorch module (for verification)."""
    def conv(x, w, b):
        y = lax.conv_general_dilated(x, w, (1, 1), ((1, 1), (1, 1)),
                                     dimension_numbers=("NCHW", "OIHW", "NCHW"))
        return jax.nn.relu(y + b[None, :, None, None])

    def pool(x):
        return lax.reduce_window(x, -jnp.inf, lax.max,
                                 (1, 1, 2, 2), (1, 1, 2, 2), "VALID")

    x = pool(conv(x_nchw, params["conv1_w"], params["conv1_b"]))
    x = pool(conv(x, params["conv2_w"], params["conv2_b"]))
    x = x.reshape(x.shape[0], -1)
    x = jax.nn.relu(x @ params["fc1_w"].T + params["fc1_b"])
    return x @ params["fc2_w"].T + params["fc2_b"]


if __name__ == "__main__":
    batch, image_channels, image_size, hidden_dim = 2, 4, 16, 32

    key = jax.random.PRNGKey(0)
    k_x, k_p = jax.random.split(key)
    x = jax.random.normal(k_x, (batch, image_channels, image_size, image_size),
                          jnp.float32)
    params = init_params(k_p, image_channels, image_size, hidden_dim)
    ref = reference_forward(params, x)

    # f32 path: tight algorithmic check against the pure-JAX reference.
    kp32 = prepare_params(params, image_size, jnp.float32)
    out32 = jax.block_until_ready(image_mlp_forward(kp32, x))
    assert out32.shape == (batch, hidden_dim)
    assert jnp.allclose(out32, ref, rtol=1e-4, atol=1e-4), "f32 mismatch vs reference"

    # bf16-input / f32-accumulate path (preferred MXU path on v6e/v7x).
    kp16 = prepare_params(params, image_size, jnp.bfloat16)
    out16 = jax.block_until_ready(image_mlp_forward(kp16, x))
    assert out16.shape == (batch, hidden_dim)
    assert jnp.allclose(out16, ref, rtol=5e-2, atol=5e-2), "bf16 mismatch vs reference"

    print("KERNEL_OK")
</pallas_src>

<mosaic_0001>
module attributes {stable_mosaic.version = 11 : i64} {
  func.func @_conv3x3_relu_pool_kernel(%arg0: i32, %arg1: memref<1x18x72xf32, #tpu.memory_space<vmem>>, %arg2: memref<72x512xf32, #tpu.memory_space<vmem>>, %arg3: memref<72x512xf32, #tpu.memory_space<vmem>>, %arg4: memref<72x512xf32, #tpu.memory_space<vmem>>, %arg5: memref<1x256xf32, #tpu.memory_space<vmem>>, %arg6: memref<1x8x256xf32, #tpu.memory_space<vmem>>) attributes {dimension_semantics = [#tpu.dimension_semantics<parallel>], iteration_bounds = array<i64: 2>, scalar_prefetch = 0 : i64, scratch_operands = 0 : i64, tpu.core_type = #tpu.core_type<tc>, window_params = [{transform_indices = @transform_0, window_bounds = array<i64: 1, 18, 72>}, {pipeline_mode = #tpu.pipeline_mode<synchronous>, transform_indices = @transform_1, window_bounds = array<i64: 72, 512>}, {pipeline_mode = #tpu.pipeline_mode<synchronous>, transform_indices = @transform_2, window_bounds = array<i64: 72, 512>}, {pipeline_mode = #tpu.pipeline_mode<synchronous>, transform_indices = @transform_3, window_bounds = array<i64: 72, 512>}, {pipeline_mode = #tpu.pipeline_mode<synchronous>, transform_indices = @transform_4, window_bounds = array<i64: 1, 256>}, {transform_indices = @transform_5, window_bounds = array<i64: 1, 8, 256>}]} {
    %c0 = arith.constant 0 : index
    %c0_0 = arith.constant 0 : index
    %c0_1 = arith.constant 0 : index
    %0 = vector.load %arg1[%c0, %c0_0, %c0_1] : memref<1x18x72xf32, #tpu.memory_space<vmem>>, vector<1x8x72xf32>
    %1 = vector.shape_cast %0 : vector<1x8x72xf32> to vector<8x72xf32>
    %c0_2 = arith.constant 0 : index
    %c1 = arith.constant 1 : index
    %c0_3 = arith.constant 0 : index
    %2 = vector.load %arg1[%c0_2, %c1, %c0_3] : memref<1x18x72xf32, #tpu.memory_space<vmem>>, vector<1x8x72xf32>
    %3 = vector.shape_cast %2 : vector<1x8x72xf32> to vector<8x72xf32>
    %c0_4 = arith.constant 0 : index
    %c9 = arith.constant 9 : index
    %c0_5 = arith.constant 0 : index
    %4 = vector.load %arg1[%c0_4, %c9, %c0_5] : memref<1x18x72xf32, #tpu.memory_space<vmem>>, vector<1x8x72xf32>
    %5 = vector.shape_cast %4 : vector<1x8x72xf32> to vector<8x72xf32>
    %c0_6 = arith.constant 0 : index
    %c10 = arith.constant 10 : index
    %c0_7 = arith.constant 0 : index
    %6 = vector.load %arg1[%c0_6, %c10, %c0_7] : memref<1x18x72xf32, #tpu.memory_space<vmem>>, vector<1x8x72xf32>
    %7 = vector.shape_cast %6 : vector<1x8x72xf32> to vector<8x72xf32>
    %c0_8 = arith.constant 0 : index
    %c0_9 = arith.constant 0 : index
    %8 = vector.load %arg2[%c0_8, %c0_9] : memref<72x512xf32, #tpu.memory_space<vmem>>, vector<72x512xf32>
    %c0_10 = arith.constant 0 : index
    %c0_11 = arith.constant 0 : index
    %9 = vector.load %arg3[%c0_10, %c0_11] : memref<72x512xf32, #tpu.memory_space<vmem>>, vector<72x512xf32>
    %c0_12 = arith.constant 0 : index
    %c0_13 = arith.constant 0 : index
    %10 = vector.load %arg4[%c0_12, %c0_13] : memref<72x512xf32, #tpu.memory_space<vmem>>, vector<72x512xf32>
    %cst = arith.constant dense<0.000000e+00> : vector<8x512xf32>
    %11 = tpu.matmul %1, %8, %cst {dimension_numbers = #tpu.dot_dimension_numbers<[1], [0], [0], [1], [0, 0, 1, 1], [], []>} : vector<8x72xf32>, vector<72x512xf32>, vector<8x512xf32> -> vector<8x512xf32>
    %cst_14 = arith.constant dense<0.000000e+00> : vector<8x512xf32>
    %12 = tpu.matmul %5, %9, %cst_14 {dimension_numbers = #tpu.dot_dimension_numbers<[1], [0], [0], [1], [0, 0, 1, 1], [], []>} : vector<8x72xf32>, vector<72x512xf32>, vector<8x512xf32> -> vector<8x512xf32>
    %13 = arith.addf %11, %12 : vector<8x512xf32>
    %cst_15 = arith.constant dense<0.000000e+00> : vector<8x512xf32>
    %14 = tpu.matmul %3, %10, %cst_15 {dimension_numbers = #tpu.dot_dimension_numbers<[1], [0], [0], [1], [0, 0, 1, 1], [], []>} : vector<8x72xf32>, vector<72x512xf32>, vector<8x512xf32> -> vector<8x512xf32>
    %15 = arith.addf %13, %14 : vector<8x512xf32>
    %cst_16 = arith.constant dense<0.000000e+00> : vector<8x512xf32>
    %16 = tpu.matmul %5, %8, %cst_16 {dimension_numbers = #tpu.dot_dimension_numbers<[1], [0], [0], [1], [0, 0, 1, 1], [], []>} : vector<8x72xf32>, vector<72x512xf32>, vector<8x512xf32> -> vector<8x512xf32>
    %cst_17 = arith.constant dense<0.000000e+00> : vector<8x512xf32>
    %17 = tpu.matmul %3, %9, %cst_17 {dimension_numbers = #tpu.dot_dimension_numbers<[1], [0], [0], [1], [0, 0, 1, 1], [], []>} : vector<8x72xf32>, vector<72x512xf32>, vector<8x512xf32> -> vector<8x512xf32>
    %18 = arith.addf %16, %17 : vector<8x512xf32>
    %cst_18 = arith.constant dense<0.000000e+00> : vector<8x512xf32>
    %19 = tpu.matmul %7, %10, %cst_18 {dimension_numbers = #tpu.dot_dimension_numbers<[1], [0], [0], [1], [0, 0, 1, 1], [], []>} : vector<8x72xf32>, vector<72x512xf32>, vector<8x512xf32> -> vector<8x512xf32>
    %20 = arith.addf %18, %19 : vector<8x512xf32>
    %21 = arith.maximumf %15, %20 : vector<8x512xf32>
    %22 = vector.extract_strided_slice %21 {offsets = [0, 0], sizes = [8, 256], strides = [1, 1]} : vector<8x512xf32> to vector<8x256xf32>
    %23 = vector.extract_strided_slice %21 {offsets = [0, 256], sizes = [8, 256], strides = [1, 1]} : vector<8x512xf32> to vector<8x256xf32>
    %24 = arith.maximumf %22, %23 : vector<8x256xf32>
    %c0_19 = arith.constant 0 : index
    %c0_20 = arith.constant 0 : index
    %25 = vector.load %arg5[%c0_19, %c0_20] : memref<1x256xf32, #tpu.memory_space<vmem>>, vector<1x256xf32>
    %26 = vector.broadcast %25 : vector<1x256xf32> to vector<8x256xf32>
    %27 = arith.addf %24, %26 : vector<8x256xf32>
    %cst_21 = arith.constant 0.000000e+00 : f32
    %28 = vector.broadcast %cst_21 : f32 to vector<8x256xf32>
    %29 = arith.maximumf %27, %28 : vector<8x256xf32>
    %c0_22 = arith.constant 0 : index
    %c0_23 = arith.constant 0 : index
    %c0_24 = arith.constant 0 : index
    %30 = vector.load %arg6[%c0_22, %c0_23, %c0_24] : memref<1x8x256xf32, #tpu.memory_space<vmem>>, vector<1x8x256xf32>
    %31 = vector.shape_cast %30 : vector<1x8x256xf32> to vector<8x256xf32>
    %32 = vector.shape_cast %29 : vector<8x256xf32> to vector<1x8x256xf32>
    tpu.vector_store %arg6[%c0_22, %c0_23, %c0_24], %32 {strides = array<i32>} : memref<1x8x256xf32, #tpu.memory_space<vmem>>, vector<1x8x256xf32>,
    return
  }
  func.func @transform_0(%arg0: i32) -> (i32, i32, i32) {
    %c0_i32 = arith.constant 0 : i32
    %c0_i32_0 = arith.constant 0 : i32
    %c0_i32_1 = arith.constant 0 : i32
    return %arg0, %c0_i32, %c0_i32_0 : i32, i32, i32
  }
  func.func @transform_1(%arg0: i32) -> (i32, i32) {
    %c0_i32 = arith.constant 0 : i32
    %c0_i32_0 = arith.constant 0 : i32
    %c0_i32_1 = arith.constant 0 : i32
    return %c0_i32, %c0_i32_0 : i32, i32
  }
  func.func @transform_2(%arg0: i32) -> (i32, i32) {
    %c0_i32 = arith.constant 0 : i32
    %c0_i32_0 = arith.constant 0 : i32
    %c0_i32_1 = arith.constant 0 : i32
    return %c0_i32, %c0_i32_0 : i32, i32
  }
  func.func @transform_3(%arg0: i32) -> (i32, i32) {
    %c0_i32 = arith.constant 0 : i32
    %c0_i32_0 = arith.constant 0 : i32
    %c0_i32_1 = arith.constant 0 : i32
    return %c0_i32, %c0_i32_0 : i32, i32
  }
  func.func @transform_4(%arg0: i32) -> (i32, i32) {
    %c0_i32 = arith.constant 0 : i32
    %c0_i32_0 = arith.constant 0 : i32
    %c0_i32_1 = arith.constant 0 : i32
    return %c0_i32, %c0_i32_0 : i32, i32
  }
  func.func @transform_5(%arg0: i32) -> (i32, i32, i32) {
    %c0_i32 = arith.constant 0 : i32
    %c0_i32_0 = arith.constant 0 : i32
    %c0_i32_1 = arith.constant 0 : i32
    return %arg0, %c0_i32, %c0_i32_0 : i32, i32, i32
  }
}

module attributes {stable_mosaic.version = 11 : i64} {
  func.func @_conv3x3_relu_pool_kernel(%arg0: i32, %arg1: memref<1x10x320xf32, #tpu.memory_space<vmem>>, %arg2: memref<320x512xf32, #tpu.memory_space<vmem>>, %arg3: memref<320x512xf32, #tpu.memory_space<vmem>>, %arg4: memref<320x512xf32, #tpu.memory_space<vmem>>, %arg5: memref<1x256xf32, #tpu.memory_space<vmem>>, %arg6: memref<1x4x256xf32, #tpu.memory_space<vmem>>) attributes {dimension_semantics = [#tpu.dimension_semantics<parallel>], iteration_bounds = array<i64: 2>, scalar_prefetch = 0 : i64, scratch_operands = 0 : i64, tpu.core_type = #tpu.core_type<tc>, window_params = [{transform_indices = @transform_0, window_bounds = array<i64: 1, 10, 320>}, {pipeline_mode = #tpu.pipeline_mode<synchronous>, transform_indices = @transform_1, window_bounds = array<i64: 320, 512>}, {pipeline_mode = #tpu.pipeline_mode<synchronous>, transform_indices = @transform_2, window_bounds = array<i64: 320, 512>}, {pipeline_mode = #tpu.pipeline_mode<synchronous>, transform_indices = @transform_3, window_bounds = array<i64: 320, 512>}, {pipeline_mode = #tpu.pipeline_mode<synchronous>, transform_indices = @transform_4, window_bounds = array<i64: 1, 256>}, {transform_indices = @transform_5, window_bounds = array<i64: 1, 4, 256>}]} {
    %c0 = arith.constant 0 : index
    %c0_0 = arith.constant 0 : index
    %c0_1 = arith.constant 0 : index
    %0 = vector.load %arg1[%c0, %c0_0, %c0_1] : memref<1x10x320xf32, #tpu.memory_space<vmem>>, vector<1x4x320xf32>
    %1 = vector.shape_cast %0 : vector<1x4x320xf32> to vector<4x320xf32>
    %c0_2 = arith.constant 0 : index
    %c1 = arith.constant 1 : index
    %c0_3 = arith.constant 0 : index
    %2 = vector.load %arg1[%c0_2, %c1, %c0_3] : memref<1x10x320xf32, #tpu.memory_space<vmem>>, vector<1x4x320xf32>
    %3 = vector.shape_cast %2 : vector<1x4x320xf32> to vector<4x320xf32>
    %c0_4 = arith.constant 0 : index
    %c5 = arith.constant 5 : index
    %c0_5 = arith.constant 0 : index
    %4 = vector.load %arg1[%c0_4, %c5, %c0_5] : memref<1x10x320xf32, #tpu.memory_space<vmem>>, vector<1x4x320xf32>
    %5 = vector.shape_cast %4 : vector<1x4x320xf32> to vector<4x320xf32>
    %c0_6 = arith.constant 0 : index
    %c6 = arith.constant 6 : index
    %c0_7 = arith.constant 0 : index
    %6 = vector.load %arg1[%c0_6, %c6, %c0_7] : memref<1x10x320xf32, #tpu.memory_space<vmem>>, vector<1x4x320xf32>
    %7 = vector.shape_cast %6 : vector<1x4x320xf32> to vector<4x320xf32>
    %c0_8 = arith.constant 0 : index
    %c0_9 = arith.constant 0 : index
    %8 = vector.load %arg2[%c0_8, %c0_9] : memref<320x512xf32, #tpu.memory_space<vmem>>, vector<320x512xf32>
    %c0_10 = arith.constant 0 : index
    %c0_11 = arith.constant 0 : index
    %9 = vector.load %arg3[%c0_10, %c0_11] : memref<320x512xf32, #tpu.memory_space<vmem>>, vector<320x512xf32>
    %c0_12 = arith.constant 0 : index
    %c0_13 = arith.constant 0 : index
    %10 = vector.load %arg4[%c0_12, %c0_13] : memref<320x512xf32, #tpu.memory_space<vmem>>, vector<320x512xf32>
    %cst = arith.constant dense<0.000000e+00> : vector<4x512xf32>
    %11 = tpu.matmul %1, %8, %cst {dimension_numbers = #tpu.dot_dimension_numbers<[1], [0], [0], [1], [0, 0, 1, 1], [], []>} : vector<4x320xf32>, vector<320x512xf32>, vector<4x512xf32> -> vector<4x512xf32>
    %cst_14 = arith.constant dense<0.000000e+00> : vector<4x512xf32>
    %12 = tpu.matmul %5, %9, %cst_14 {dimension_numbers = #tpu.dot_dimension_numbers<[1], [0], [0], [1], [0, 0, 1, 1], [], []>} : vector<4x320xf32>, vector<320x512xf32>, vector<4x512xf32> -> vector<4x512xf32>
    %13 = arith.addf %11, %12 : vector<4x512xf32>
    %cst_15 = arith.constant dense<0.000000e+00> : vector<4x512xf32>
    %14 = tpu.matmul %3, %10, %cst_15 {dimension_numbers = #tpu.dot_dimension_numbers<[1], [0], [0], [1], [0, 0, 1, 1], [], []>} : vector<4x320xf32>, vector<320x512xf32>, vector<4x512xf32> -> vector<4x512xf32>
    %15 = arith.addf %13, %14 : vector<4x512xf32>
    %cst_16 = arith.constant dense<0.000000e+00> : vector<4x512xf32>
    %16 = tpu.matmul %5, %8, %cst_16 {dimension_numbers = #tpu.dot_dimension_numbers<[1], [0], [0], [1], [0, 0, 1, 1], [], []>} : vector<4x320xf32>, vector<320x512xf32>, vector<4x512xf32> -> vector<4x512xf32>
    %cst_17 = arith.constant dense<0.000000e+00> : vector<4x512xf32>
    %17 = tpu.matmul %3, %9, %cst_17 {dimension_numbers = #tpu.dot_dimension_numbers<[1], [0], [0], [1], [0, 0, 1, 1], [], []>} : vector<4x320xf32>, vector<320x512xf32>, vector<4x512xf32> -> vector<4x512xf32>
    %18 = arith.addf %16, %17 : vector<4x512xf32>
    %cst_18 = arith.constant dense<0.000000e+00> : vector<4x512xf32>
    %19 = tpu.matmul %7, %10, %cst_18 {dimension_numbers = #tpu.dot_dimension_numbers<[1], [0], [0], [1], [0, 0, 1, 1], [], []>} : vector<4x320xf32>, vector<320x512xf32>, vector<4x512xf32> -> vector<4x512xf32>
    %20 = arith.addf %18, %19 : vector<4x512xf32>
    %21 = arith.maximumf %15, %20 : vector<4x512xf32>
    %22 = vector.extract_strided_slice %21 {offsets = [0, 0], sizes = [4, 256], strides = [1, 1]} : vector<4x512xf32> to vector<4x256xf32>
    %23 = vector.extract_strided_slice %21 {offsets = [0, 256], sizes = [4, 256], strides = [1, 1]} : vector<4x512xf32> to vector<4x256xf32>
    %24 = arith.maximumf %22, %23 : vector<4x256xf32>
    %c0_19 = arith.constant 0 : index
    %c0_20 = arith.constant 0 : index
    %25 = vector.load %arg5[%c0_19, %c0_20] : memref<1x256xf32, #tpu.memory_space<vmem>>, vector<1x256xf32>
    %26 = vector.broadcast %25 : vector<1x256xf32> to vector<4x256xf32>
    %27 = arith.addf %24, %26 : vector<4x256xf32>
    %cst_21 = arith.constant 0.000000e+00 : f32
    %28 = vector.broadcast %cst_21 : f32 to vector<4x256xf32>
    %29 = arith.maximumf %27, %28 : vector<4x256xf32>
    %c0_22 = arith.constant 0 : index
    %c0_23 = arith.constant 0 : index
    %c0_24 = arith.constant 0 : index
    %30 = vector.load %arg6[%c0_22, %c0_23, %c0_24] : memref<1x4x256xf32, #tpu.memory_space<vmem>>, vector<1x4x256xf32>
    %31 = vector.shape_cast %30 : vector<1x4x256xf32> to vector<4x256xf32>
    %32 = vector.shape_cast %29 : vector<4x256xf32> to vector<1x4x256xf32>
    tpu.vector_store %arg6[%c0_22, %c0_23, %c0_24], %32 {strides = array<i32>} : memref<1x4x256xf32, #tpu.memory_space<vmem>>, vector<1x4x256xf32>,
    return
  }
  func.func @transform_0(%arg0: i32) -> (i32, i32, i32) {
    %c0_i32 = arith.constant 0 : i32
    %c0_i32_0 = arith.constant 0 : i32
    %c0_i32_1 = arith.constant 0 : i32
    return %arg0, %c0_i32, %c0_i32_0 : i32, i32, i32
  }
  func.func @transform_1(%arg0: i32) -> (i32, i32) {
    %c0_i32 = arith.constant 0 : i32
    %c0_i32_0 = arith.constant 0 : i32
    %c0_i32_1 = arith.constant 0 : i32
    return %c0_i32, %c0_i32_0 : i32, i32
  }
  func.func @transform_2(%arg0: i32) -> (i32, i32) {
    %c0_i32 = arith.constant 0 : i32
    %c0_i32_0 = arith.constant 0 : i32
    %c0_i32_1 = arith.constant 0 : i32
    return %c0_i32, %c0_i32_0 : i32, i32
  }
  func.func @transform_3(%arg0: i32) -> (i32, i32) {
    %c0_i32 = arith.constant 0 : i32
    %c0_i32_0 = arith.constant 0 : i32
    %c0_i32_1 = arith.constant 0 : i32
    return %c0_i32, %c0_i32_0 : i32, i32
  }
  func.func @transform_4(%arg0: i32) -> (i32, i32) {
    %c0_i32 = arith.constant 0 : i32
    %c0_i32_0 = arith.constant 0 : i32
    %c0_i32_1 = arith.constant 0 : i32
    return %c0_i32, %c0_i32_0 : i32, i32
  }
  func.func @transform_5(%arg0: i32) -> (i32, i32, i32) {
    %c0_i32 = arith.constant 0 : i32
    %c0_i32_0 = arith.constant 0 : i32
    %c0_i32_1 = arith.constant 0 : i32
    return %arg0, %c0_i32, %c0_i32_0 : i32, i32, i32
  }
}

module attributes {stable_mosaic.version = 11 : i64} {
  func.func @_fc1_relu_fc2_kernel(%arg0: i32, %arg1: memref<2x1024xf32, #tpu.memory_space<vmem>>, %arg2: memref<1024x32xf32, #tpu.memory_space<vmem>>, %arg3: memref<1x32xf32, #tpu.memory_space<vmem>>, %arg4: memref<32x32xf32, #tpu.memory_space<vmem>>, %arg5: memref<1x32xf32, #tpu.memory_space<vmem>>, %arg6: memref<2x32xf32, #tpu.memory_space<vmem>>) attributes {dimension_semantics = [#tpu.dimension_semantics<parallel>], iteration_bounds = array<i64: 1>, scalar_prefetch = 0 : i64, scratch_operands = 0 : i64, tpu.core_type = #tpu.core_type<tc>, window_params = [{transform_indices = @transform_0, window_bounds = array<i64: 2, 1024>}, {pipeline_mode = #tpu.pipeline_mode<synchronous>, transform_indices = @transform_1, window_bounds = array<i64: 1024, 32>}, {pipeline_mode = #tpu.pipeline_mode<synchronous>, transform_indices = @transform_2, window_bounds = array<i64: 1, 32>}, {pipeline_mode = #tpu.pipeline_mode<synchronous>, transform_indices = @transform_3, window_bounds = array<i64: 32, 32>}, {pipeline_mode = #tpu.pipeline_mode<synchronous>, transform_indices = @transform_4, window_bounds = array<i64: 1, 32>}, {transform_indices = @transform_5, window_bounds = array<i64: 2, 32>}]} {
    %c0 = arith.constant 0 : index
    %c0_0 = arith.constant 0 : index
    %0 = vector.load %arg1[%c0, %c0_0] : memref<2x1024xf32, #tpu.memory_space<vmem>>, vector<2x1024xf32>
    %c0_1 = arith.constant 0 : index
    %c0_2 = arith.constant 0 : index
    %1 = vector.load %arg2[%c0_1, %c0_2] : memref<1024x32xf32, #tpu.memory_space<vmem>>, vector<1024x32xf32>
    %cst = arith.constant dense<0.000000e+00> : vector<2x32xf32>
    %2 = tpu.matmul %0, %1, %cst {dimension_numbers = #tpu.dot_dimension_numbers<[1], [0], [0], [1], [0, 0, 1, 1], [], []>} : vector<2x1024xf32>, vector<1024x32xf32>, vector<2x32xf32> -> vector<2x32xf32>
    %c0_3 = arith.constant 0 : index
    %c0_4 = arith.constant 0 : index
    %3 = vector.load %arg3[%c0_3, %c0_4] : memref<1x32xf32, #tpu.memory_space<vmem>>, vector<1x32xf32>
    %4 = vector.broadcast %3 : vector<1x32xf32> to vector<2x32xf32>
    %5 = arith.addf %2, %4 : vector<2x32xf32>
    %cst_5 = arith.constant 0.000000e+00 : f32
    %6 = vector.broadcast %cst_5 : f32 to vector<2x32xf32>
    %7 = arith.maximumf %5, %6 : vector<2x32xf32>
    %c0_6 = arith.constant 0 : index
    %c0_7 = arith.constant 0 : index
    %8 = vector.load %arg4[%c0_6, %c0_7] : memref<32x32xf32, #tpu.memory_space<vmem>>, vector<32x32xf32>
    %cst_8 = arith.constant dense<0.000000e+00> : vector<2x32xf32>
    %9 = tpu.matmul %7, %8, %cst_8 {dimension_numbers = #tpu.dot_dimension_numbers<[1], [0], [0], [1], [0, 0, 1, 1], [], []>} : vector<2x32xf32>, vector<32x32xf32>, vector<2x32xf32> -> vector<2x32xf32>
    %c0_9 = arith.constant 0 : index
    %c0_10 = arith.constant 0 : index
    %10 = vector.load %arg5[%c0_9, %c0_10] : memref<1x32xf32, #tpu.memory_space<vmem>>, vector<1x32xf32>
    %11 = vector.broadcast %10 : vector<1x32xf32> to vector<2x32xf32>
    %12 = arith.addf %9, %11 : vector<2x32xf32>
    %c0_11 = arith.constant 0 : index
    %c0_12 = arith.constant 0 : index
    %13 = vector.load %arg6[%c0_11, %c0_12] : memref<2x32xf32, #tpu.memory_space<vmem>>, vector<2x32xf32>
    tpu.vector_store %arg6[%c0_11, %c0_12], %12 {strides = array<i32>} : memref<2x32xf32, #tpu.memory_space<vmem>>, vector<2x32xf32>,
    return
  }
  func.func @transform_0(%arg0: i32) -> (i32, i32) {
    %c0_i32 = arith.constant 0 : i32
    %c0_i32_0 = arith.constant 0 : i32
    return %arg0, %c0_i32 : i32, i32
  }
  func.func @transform_1(%arg0: i32) -> (i32, i32) {
    %c0_i32 = arith.constant 0 : i32
    %c0_i32_0 = arith.constant 0 : i32
    %c0_i32_1 = arith.constant 0 : i32
    return %c0_i32, %c0_i32_0 : i32, i32
  }
  func.func @transform_2(%arg0: i32) -> (i32, i32) {
    %c0_i32 = arith.constant 0 : i32
    %c0_i32_0 = arith.constant 0 : i32
    %c0_i32_1 = arith.constant 0 : i32
    return %c0_i32, %c0_i32_0 : i32, i32
  }
  func.func @transform_3(%arg0: i32) -> (i32, i32) {
    %c0_i32 = arith.constant 0 : i32
    %c0_i32_0 = arith.constant 0 : i32
    %c0_i32_1 = arith.constant 0 : i32
    return %c0_i32, %c0_i32_0 : i32, i32
  }
  func.func @transform_4(%arg0: i32) -> (i32, i32) {
    %c0_i32 = arith.constant 0 : i32
    %c0_i32_0 = arith.constant 0 : i32
    %c0_i32_1 = arith.constant 0 : i32
    return %c0_i32, %c0_i32_0 : i32, i32
  }
  func.func @transform_5(%arg0: i32) -> (i32, i32) {
    %c0_i32 = arith.constant 0 : i32
    %c0_i32_0 = arith.constant 0 : i32
    return %arg0, %c0_i32 : i32, i32
  }
}

</mosaic_0001>

<llo_original>
// kernel: image_mlp_forward.5
$region0: #{image_mlp_forward.5}
  #allocation0 [shape = 'u32[]', space=smem, size = 0x4, offset = 0x4, fixed_abs, tag = 'smem constant byte address 0x4 - core index']
  #allocation1 [shape = 'u32[144,128]{1,0:T(1,128)}', space=vmem, size = 0x12000, scoped, tag = 'internal scratch']
  %s0 = inlined_call_operand.vmem [shape: f32[2,1024], index: 0, kind: input, shape index: {}]
  %s1 = inlined_call_operand.vmem [shape: f32[1024,32], index: 1, kind: input, shape index: {}]
  %s2 = inlined_call_operand.vmem [shape: f32[1,32], index: 2, kind: input, shape index: {}]
  %s3 = inlined_call_operand.vmem [shape: f32[32,32], index: 3, kind: input, shape index: {}]
  %s4 = inlined_call_operand.vmem [shape: f32[1,32], index: 4, kind: input, shape index: {}]
  %s5 = inlined_call_operand.hbm [shape: f32[2,32], index: 5, kind: output, shape index: {}]
  %s6 = sld [smem:[#allocation0]]
  $region30: #{image_mlp_forward.5} parent=0
    _
  %s8 = ssub.s32 1, %s6
  %s9 = scalar_select 0, %s8, %s6
  $region1: #{image_mlp_forward.5} parent=0
    #allocation2 [shape = 'u8[1024]{0}', space=vmem, size = 0x400, scoped, tag = 'output window, operand 0, single buffered']
    #allocation3 [shape = 's32[1]{0}', space=sflag, size = 0x4, scoped, tag = 'scoped memory for image_mlp_forward.5']
    %10 = vsyncpa [#allocation3], 0
    // Predicated region
    $region2: #{image_mlp_forward.5} parent=1 // pred_check
      _
    $region3: #{image_mlp_forward.5} parent=1 // pred_check_branch
      %12 = sbr.rel (0) target = $region5
    $region4: #{image_mlp_forward.5} parent=1 // pred_region
      _
    $region5: #{image_mlp_forward.5} parent=1 // pred_fallthru
      _
    // Predicated region
    $region6: #{image_mlp_forward.5} parent=1 // pred_check
      _
    $region7: #{image_mlp_forward.5} parent=1 // pred_check_branch
      %14 = sbr.rel (0) target = $region9
    $region8: #{image_mlp_forward.5} parent=1 // pred_region
      _
    $region9: #{image_mlp_forward.5} parent=1 // pred_fallthru
      _
    // Predicated region
    $region10: #{image_mlp_forward.5} parent=1 // pred_check
      _
    $region11: #{image_mlp_forward.5} parent=1 // pred_check_branch
      %16 = sbr.rel (0) target = $region13
    $region12: #{image_mlp_forward.5} parent=1 // pred_region
      _
    $region13: #{image_mlp_forward.5} parent=1 // pred_fallthru
      _
    // Predicated region
    $region14: #{image_mlp_forward.5} parent=1 // pred_check
      _
    $region15: #{image_mlp_forward.5} parent=1 // pred_check_branch
      %18 = sbr.rel (0) target = $region17
    $region16: #{image_mlp_forward.5} parent=1 // pred_region
      _
    $region17: #{image_mlp_forward.5} parent=1 // pred_fallthru
      _
    // Predicated region
    $region18: #{image_mlp_forward.5} parent=1 // pred_check
      _
    $region19: #{image_mlp_forward.5} parent=1 // pred_check_branch
      %20 = sbr.rel (0) target = $region21
    $region20: #{image_mlp_forward.5} parent=1 // pred_region
      _
    $region21: #{image_mlp_forward.5} parent=1 // pred_fallthru
      _
    %v21 = vld [vmem:[%s0] sm:$0xff]
    %v22 = vld [vmem:[%s0 + $0x8] sm:$0xff]
    %v23 = vld [vmem:[%s1] sm:$0xff]
    %v24 = vld [vmem:[%s1 + $0x8] sm:$0xff]
    %v25 = vld [vmem:[%s1 + $0x10] sm:$0xff]
    %v26 = vld [vmem:[%s1 + $0x18] sm:$0xff]
    %v27 = vld [vmem:[%s1 + $0x20] sm:$0xff]
    %v28 = vld [vmem:[%s1 + $0x28] sm:$0xff]
    %v29 = vld [vmem:[%s1 + $0x30] sm:$0xff]
    %v30 = vld [vmem:[%s1 + $0x38] sm:$0xff]
    %v31 = vld [vmem:[%s1 + $0x40] sm:$0xff]
    %v32 = vld [vmem:[%s1 + $0x48] sm:$0xff]
    %v33 = vld [vmem:[%s1 + $0x50] sm:$0xff]
    %v34 = vld [vmem:[%s1 + $0x58] sm:$0xff]
    %v35 = vld [vmem:[%s1 + $0x60] sm:$0xff]
    %v36 = vld [vmem:[%s1 + $0x68] sm:$0xff]
    %v37 = vld [vmem:[%s1 + $0x70] sm:$0xff]
    %v38 = vld [vmem:[%s1 + $0x78] sm:$0xff]
    %v39 = vld [vmem:[%s1 + $0x80] sm:$0xff]
    %v40 = vld [vmem:[%s1 + $0x88] sm:$0xff]
    %v41 = vld [vmem:[%s1 + $0x90] sm:$0xff]
    %v42 = vld [vmem:[%s1 + $0x98] sm:$0xff]
    %v43 = vld [vmem:[%s1 + $0xa0] sm:$0xff]
    %v44 = vld [vmem:[%s1 + $0xa8] sm:$0xff]
    %v45 = vld [vmem:[%s1 + $0xb0] sm:$0xff]
    %v46 = vld [vmem:[%s1 + $0xb8] sm:$0xff]
    %v47 = vld [vmem:[%s1 + $0xc0] sm:$0xff]
    %v48 = vld [vmem:[%s1 + $0xc8] sm:$0xff]
    %v49 = vld [vmem:[%s1 + $0xd0] sm:$0xff]
    %v50 = vld [vmem:[%s1 + $0xd8] sm:$0xff]
    %v51 = vld [vmem:[%s1 + $0xe0] sm:$0xff]
    %v52 = vld [vmem:[%s1 + $0xe8] sm:$0xff]
    %v53 = vld [vmem:[%s1 + $0xf0] sm:$0xff]
    %v54 = vld [vmem:[%s1 + $0xf8] sm:$0xff]
    %v55 = vld [vmem:[%s1 + $0x100] sm:$0xff]
    %v56 = vld [vmem:[%s1 + $0x108] sm:$0xff]
    %v57 = vld [vmem:[%s1 + $0x110] sm:$0xff]
    %v58 = vld [vmem:[%s1 + $0x118] sm:$0xff]
    %v59 = vld [vmem:[%s1 + $0x120] sm:$0xff]
    %v60 = vld [vmem:[%s1 + $0x128] sm:$0xff]
    %v61 = vld [vmem:[%s1 + $0x130] sm:$0xff]
    %v62 = vld [vmem:[%s1 + $0x138] sm:$0xff]
    %v63 = vld [vmem:[%s1 + $0x140] sm:$0xff]
    %v64 = vld [vmem:[%s1 + $0x148] sm:$0xff]
    %v65 = vld [vmem:[%s1 + $0x150] sm:$0xff]
    %v66 = vld [vmem:[%s1 + $0x158] sm:$0xff]
    %v67 = vld [vmem:[%s1 + $0x160] sm:$0xff]
    %v68 = vld [vmem:[%s1 + $0x168] sm:$0xff]
    %v69 = vld [vmem:[%s1 + $0x170] sm:$0xff]
    %v70 = vld [vmem:[%s1 + $0x178] sm:$0xff]
    %v71 = vld [vmem:[%s1 + $0x180] sm:$0xff]
    %v72 = vld [vmem:[%s1 + $0x188] sm:$0xff]
    %v73 = vld [vmem:[%s1 + $0x190] sm:$0xff]
    %v74 = vld [vmem:[%s1 + $0x198] sm:$0xff]
    %v75 = vld [vmem:[%s1 + $0x1a0] sm:$0xff]
    %v76 = vld [vmem:[%s1 + $0x1a8] sm:$0xff]
    %v77 = vld [vmem:[%s1 + $0x1b0] sm:$0xff]
    %v78 = vld [vmem:[%s1 + $0x1b8] sm:$0xff]
    %v79 = vld [vmem:[%s1 + $0x1c0] sm:$0xff]
    %v80 = vld [vmem:[%s1 + $0x1c8] sm:$0xff]
    %v81 = vld [vmem:[%s1 + $0x1d0] sm:$0xff]
    %v82 = vld [vmem:[%s1 + $0x1d8] sm:$0xff]
    %v83 = vld [vmem:[%s1 + $0x1e0] sm:$0xff]
    %v84 = vld [vmem:[%s1 + $0x1e8] sm:$0xff]
    %v85 = vld [vmem:[%s1 + $0x1f0] sm:$0xff]
    %v86 = vld [vmem:[%s1 + $0x1f8] sm:$0xff]
    %v87 = vld [vmem:[%s1 + $0x200] sm:$0xff]
    %v88 = vld [vmem:[%s1 + $0x208] sm:$0xff]
    %v89 = vld [vmem:[%s1 + $0x210] sm:$0xff]
    %v90 = vld [vmem:[%s1 + $0x218] sm:$0xff]
    %v91 = vld [vmem:[%s1 + $0x220] sm:$0xff]
    %v92 = vld [vmem:[%s1 + $0x228] sm:$0xff]
    %v93 = vld [vmem:[%s1 + $0x230] sm:$0xff]
    %v94 = vld [vmem:[%s1 + $0x238] sm:$0xff]
    %v95 = vld [vmem:[%s1 + $0x240] sm:$0xff]
    %v96 = vld [vmem:[%s1 + $0x248] sm:$0xff]
    %v97 = vld [vmem:[%s1 + $0x250] sm:$0xff]
    %v98 = vld [vmem:[%s1 + $0x258] sm:$0xff]
    %v99 = vld [vmem:[%s1 + $0x260] sm:$0xff]
    %v100 = vld [vmem:[%s1 + $0x268] sm:$0xff]
    %v101 = vld [vmem:[%s1 + $0x270] sm:$0xff]
    %v102 = vld [vmem:[%s1 + $0x278] sm:$0xff]
    %v103 = vld [vmem:[%s1 + $0x280] sm:$0xff]
    %v104 = vld [vmem:[%s1 + $0x288] sm:$0xff]
    %v105 = vld [vmem:[%s1 + $0x290] sm:$0xff]
    %v106 = vld [vmem:[%s1 + $0x298] sm:$0xff]
    %v107 = vld [vmem:[%s1 + $0x2a0] sm:$0xff]
    %v108 = vld [vmem:[%s1 + $0x2a8] sm:$0xff]
    %v109 = vld [vmem:[%s1 + $0x2b0] sm:$0xff]
    %v110 = vld [vmem:[%s1 + $0x2b8] sm:$0xff]
    %v111 = vld [vmem:[%s1 + $0x2c0] sm:$0xff]
    %v112 = vld [vmem:[%s1 + $0x2c8] sm:$0xff]
    %v113 = vld [vmem:[%s1 + $0x2d0] sm:$0xff]
    %v114 = vld [vmem:[%s1 + $0x2d8] sm:$0xff]
    %v115 = vld [vmem:[%s1 + $0x2e0] sm:$0xff]
    %v116 = vld [vmem:[%s1 + $0x2e8] sm:$0xff]
    %v117 = vld [vmem:[%s1 + $0x2f0] sm:$0xff]
    %v118 = vld [vmem:[%s1 + $0x2f8] sm:$0xff]
    %v119 = vld [vmem:[%s1 + $0x300] sm:$0xff]
    %v120 = vld [vmem:[%s1 + $0x308] sm:$0xff]
    %v121 = vld [vmem:[%s1 + $0x310] sm:$0xff]
    %v122 = vld [vmem:[%s1 + $0x318] sm:$0xff]
    %v123 = vld [vmem:[%s1 + $0x320] sm:$0xff]
    %v124 = vld [vmem:[%s1 + $0x328] sm:$0xff]
    %v125 = vld [vmem:[%s1 + $0x330] sm:$0xff]
    %v126 = vld [vmem:[%s1 + $0x338] sm:$0xff]
    %v127 = vld [vmem:[%s1 + $0x340] sm:$0xff]
    %v128 = vld [vmem:[%s1 + $0x348] sm:$0xff]
    %v129 = vld [vmem:[%s1 + $0x350] sm:$0xff]
    %v130 = vld [vmem:[%s1 + $0x358] sm:$0xff]
    %v131 = vld [vmem:[%s1 + $0x360] sm:$0xff]
    %v132 = vld [vmem:[%s1 + $0x368] sm:$0xff]
    %v133 = vld [vmem:[%s1 + $0x370] sm:$0xff]
    %v134 = vld [vmem:[%s1 + $0x378] sm:$0xff]
    %v135 = vld [vmem:[%s1 + $0x380] sm:$0xff]
    %v136 = vld [vmem:[%s1 + $0x388] sm:$0xff]
    %v137 = vld [vmem:[%s1 + $0x390] sm:$0xff]
    %v138 = vld [vmem:[%s1 + $0x398] sm:$0xff]
    %v139 = vld [vmem:[%s1 + $0x3a0] sm:$0xff]
    %v140 = vld [vmem:[%s1 + $0x3a8] sm:$0xff]
    %v141 = vld [vmem:[%s1 + $0x3b0] sm:$0xff]
    %v142 = vld [vmem:[%s1 + $0x3b8] sm:$0xff]
    %v143 = vld [vmem:[%s1 + $0x3c0] sm:$0xff]
    %v144 = vld [vmem:[%s1 + $0x3c8] sm:$0xff]
    %v145 = vld [vmem:[%s1 + $0x3d0] sm:$0xff]
    %v146 = vld [vmem:[%s1 + $0x3d8] sm:$0xff]
    %v147 = vld [vmem:[%s1 + $0x3e0] sm:$0xff]
    %v148 = vld [vmem:[%s1 + $0x3e8] sm:$0xff]
    %v149 = vld [vmem:[%s1 + $0x3f0] sm:$0xff]
    %v150 = vld [vmem:[%s1 + $0x3f8] sm:$0xff]
    %v151 = vld [vmem:[%s2] sm:$0x1]
    %v153 = vlaneseq
    %v154 = vshrl.u32 %v153, 7
    %v155 = vsub.s32 0, %v154
    %v156 = vrot.slane %v151, %v155
    %v160 = vcombine.high %v21, %v21
    %v162 = vunpack.c.l.s4 1983009808
    %v163 = vunpack.c.0.s8 %v162
    %v164 = vlaneseq
    %v165 = vshrl.u32 %v164, 7
    %v166 = vsub.s32 %v163, %v165
    %v167 = vrot.slane %v21, %v166
    %v169 = vunpack.c.l.s4 1983009808
    %v170 = vunpack.c.0.s8 %v169
    %v171 = vlaneseq
    %v172 = vshrl.u32 %v171, 7
    %v173 = vsub.s32 %v170, %v172
    %v174 = vrot.slane %v160, %v173
    %v175 = vcombine.high %v167, %v167
    %v176 = vcombine.high %v174, %v174
    %v177 = vcombine.high %v22, %v22
    %v179 = vunpack.c.l.s4 1983009808
    %v180 = vunpack.c.0.s8 %v179
    %v181 = vlaneseq
    %v182 = vshrl.u32 %v181, 7
    %v183 = vsub.s32 %v180, %v182
    %v184 = vrot.slane %v22, %v183
    %v186 = vunpack.c.l.s4 1983009808
    %v187 = vunpack.c.0.s8 %v186
    %v188 = vlaneseq
    %v189 = vshrl.u32 %v188, 7
    %v190 = vsub.s32 %v187, %v189
    %v191 = vrot.slane %v177, %v190
    %v192 = vcombine.high %v184, %v184
    %v193 = vcombine.high %v191, %v191
    %202 = vmatprep.subr.mxu0 0.0
    %203 = vmatpush1.msra.mxu0 %v23
    %204 = vmatprep.subr.mxu0 0.0
    %205 = vmatpush1.msra.mxu0 %v24
    %206 = vmatprep.subr.mxu0 0.0
    %207 = vmatpush1.msra.mxu0 %v25
    %208 = vmatprep.subr.mxu0 0.0
    %209 = vmatpush1.msra.mxu0 %v26
    %210 = vmatprep.subr.mxu0 0.0
    %211 = vmatpush1.msra.mxu0 %v27
    %212 = vmatprep.subr.mxu0 0.0
    %213 = vmatpush1.msra.mxu0 %v28
    %214 = vmatprep.subr.mxu0 0.0
    %215 = vmatpush1.msra.mxu0 %v29
    %216 = vmatprep.subr.mxu0 0.0
    %217 = vmatpush1.msra.mxu0 %v30
    %218 = vmatprep.subr.mxu0 0.0
    %219 = vmatpush1.msra.mxu0 %v31
    %220 = vmatprep.subr.mxu0 0.0
    %221 = vmatpush1.msra.mxu0 %v32
    %222 = vmatprep.subr.mxu0 0.0
    %223 = vmatpush1.msra.mxu0 %v33
    %224 = vmatprep.subr.mxu0 0.0
    %225 = vmatpush1.msra.mxu0 %v34
    %226 = vmatprep.subr.mxu0 0.0
    %227 = vmatpush1.msra.mxu0 %v35
    %228 = vmatprep.subr.mxu0 0.0
    %229 = vmatpush1.msra.mxu0 %v36
    %230 = vmatprep.subr.mxu0 0.0
    %231 = vmatpush1.msra.mxu0 %v37
    %232 = vmatprep.subr.mxu0 0.0
    %233 = vmatpush1.msra.mxu0 %v38
    %234 = vmatprep.subr.mxu0 0.0
    %235 = vmatpush1.msra.mxu0 %v39
    %236 = vmatprep.subr.mxu0 0.0
    %237 = vmatpush1.msra.mxu0 %v40
    %238 = vmatprep.subr.mxu0 0.0
    %239 = vmatpush1.msra.mxu0 %v41
    %240 = vmatprep.subr.mxu0 0.0
    %241 = vmatpush1.msra.mxu0 %v42
    %242 = vmatprep.subr.mxu0 0.0
    %243 = vmatpush1.msra.mxu0 %v43
    %244 = vmatprep.subr.mxu0 0.0
    %245 = vmatpush1.msra.mxu0 %v44
    %246 = vmatprep.subr.mxu0 0.0
    %247 = vmatpush1.msra.mxu0 %v45
    %248 = vmatprep.subr.mxu0 0.0
    %249 = vmatpush1.msra.mxu0 %v46
    %250 = vmatprep.subr.mxu0 0.0
    %251 = vmatpush1.msra.mxu0 %v47
    %252 = vmatprep.subr.mxu0 0.0
    %253 = vmatpush1.msra.mxu0 %v48
    %254 = vmatprep.subr.mxu0 0.0
    %255 = vmatpush1.msra.mxu0 %v49
    %256 = vmatprep.subr.mxu0 0.0
    %257 = vmatpush1.msra.mxu0 %v50
    %258 = vmatprep.subr.mxu0 0.0
    %259 = vmatpush1.msra.mxu0 %v51
    %260 = vmatprep.subr.mxu0 0.0
    %261 = vmatpush1.msra.mxu0 %v52
    %262 = vmatprep.subr.mxu0 0.0
    %263 = vmatpush1.msra.mxu0 %v53
    %264 = vmatprep.subr.mxu0 0.0
    %265 = vmatpush1.msra.mxu0 %v54
    %266 = vmatprep.mubr.f32.mxu0 %v175
    %267 = vmatmul.mubr.f32.gmra.mrb[0].mxu0 %v167
    %v268 = vpop.f32.mrb[0].mxu0
    %v269 = vadd.f32 %v156, %v268
    %v270 = vpop.f32.mrb[0].mxu0
    %271 = vdwg.mxu0
    %272 = vmatprep.subr.mxu0 0.0
    %273 = vmatpush1.msra.mxu0 %v55
    %274 = vmatprep.subr.mxu0 0.0
    %275 = vmatpush1.msra.mxu0 %v56
    %276 = vmatprep.subr.mxu0 0.0
    %277 = vmatpush1.msra.mxu0 %v57
    %278 = vmatprep.subr.mxu0 0.0
    %279 = vmatpush1.msra.mxu0 %v58
    %280 = vmatprep.subr.mxu0 0.0
    %281 = vmatpush1.msra.mxu0 %v59
    %282 = vmatprep.subr.mxu0 0.0
    %283 = vmatpush1.msra.mxu0 %v60
    %284 = vmatprep.subr.mxu0 0.0
    %285 = vmatpush1.msra.mxu0 %v61
    %286 = vmatprep.subr.mxu0 0.0
    %287 = vmatpush1.msra.mxu0 %v62
    %288 = vmatprep.subr.mxu0 0.0
    %289 = vmatpush1.msra.mxu0 %v63
    %290 = vmatprep.subr.mxu0 0.0
    %291 = vmatpush1.msra.mxu0 %v64
    %292 = vmatprep.subr.mxu0 0.0
    %293 = vmatpush1.msra.mxu0 %v65
    %294 = vmatprep.subr.mxu0 0.0
    %295 = vmatpush1.msra.mxu0 %v66
    %296 = vmatprep.subr.mxu0 0.0
    %297 = vmatpush1.msra.mxu0 %v67
    %298 = vmatprep.subr.mxu0 0.0
    %299 = vmatpush1.msra.mxu0 %v68
    %300 = vmatprep.subr.mxu0 0.0
    %301 = vmatpush1.msra.mxu0 %v69
    %302 = vmatprep.subr.mxu0 0.0
    %303 = vmatpush1.msra.mxu0 %v70
    %304 = vmatprep.subr.mxu0 0.0
    %305 = vmatpush1.msra.mxu0 %v71
    %306 = vmatprep.subr.mxu0 0.0
    %307 = vmatpush1.msra.mxu0 %v72
    %308 = vmatprep.subr.mxu0 0.0
    %309 = vmatpush1.msra.mxu0 %v73
    %310 = vmatprep.subr.mxu0 0.0
    %311 = vmatpush1.msra.mxu0 %v74
    %312 = vmatprep.subr.mxu0 0.0
    %313 = vmatpush1.msra.mxu0 %v75
    %314 = vmatprep.subr.mxu0 0.0
    %315 = vmatpush1.msra.mxu0 %v76
    %316 = vmatprep.subr.mxu0 0.0
    %317 = vmatpush1.msra.mxu0 %v77
    %318 = vmatprep.subr.mxu0 0.0
    %319 = vmatpush1.msra.mxu0 %v78
    %320 = vmatprep.subr.mxu0 0.0
    %321 = vmatpush1.msra.mxu0 %v79
    %322 = vmatprep.subr.mxu0 0.0
    %323 = vmatpush1.msra.mxu0 %v80
    %324 = vmatprep.subr.mxu0 0.0
    %325 = vmatpush1.msra.mxu0 %v81
    %326 = vmatprep.subr.mxu0 0.0
    %327 = vmatpush1.msra.mxu0 %v82
    %328 = vmatprep.subr.mxu0 0.0
    %329 = vmatpush1.msra.mxu0 %v83
    %330 = vmatprep.subr.mxu0 0.0
    %331 = vmatpush1.msra.mxu0 %v84
    %332 = vmatprep.subr.mxu0 0.0
    %333 = vmatpush1.msra.mxu0 %v85
    %334 = vmatprep.subr.mxu0 0.0
    %335 = vmatpush1.msra.mxu0 %v86
    %336 = vmatprep.mubr.f32.mxu0 %v176
    %337 = vmatmul.mubr.f32.gmra.mrb[0].mxu0 %v174
    %v338 = vpop.f32.mrb[0].mxu0
    %v339 = vadd.f32 %v269, %v338
    %v340 = vpop.f32.mrb[0].mxu0
    %341 = vdwg.mxu0
    %342 = vmatprep.subr.mxu0 0.0
    %343 = vmatpush1.msra.mxu0 %v87
    %344 = vmatprep.subr.mxu0 0.0
    %345 = vmatpush1.msra.mxu0 %v88
    %346 = vmatprep.subr.mxu0 0.0
    %347 = vmatpush1.msra.mxu0 %v89
    %348 = vmatprep.subr.mxu0 0.0
    %349 = vmatpush1.msra.mxu0 %v90
    %350 = vmatprep.subr.mxu0 0.0
    %351 = vmatpush1.msra.mxu0 %v91
    %352 = vmatprep.subr.mxu0 0.0
    %353 = vmatpush1.msra.mxu0 %v92
    %354 = vmatprep.subr.mxu0 0.0
    %355 = vmatpush1.msra.mxu0 %v93
    %356 = vmatprep.subr.mxu0 0.0
    %357 = vmatpush1.msra.mxu0 %v94
    %358 = vmatprep.subr.mxu0 0.0
    %359 = vmatpush1.msra.mxu0 %v95
    %360 = vmatprep.subr.mxu0 0.0
    %361 = vmatpush1.msra.mxu0 %v96
    %362 = vmatprep.subr.mxu0 0.0
    %363 = vmatpush1.msra.mxu0 %v97
    %364 = vmatprep.subr.mxu0 0.0
    %365 = vmatpush1.msra.mxu0 %v98
    %366 = vmatprep.subr.mxu0 0.0
    %367 = vmatpush1.msra.mxu0 %v99
    %368 = vmatprep.subr.mxu0 0.0
    %369 = vmatpush1.msra.mxu0 %v100
    %370 = vmatprep.subr.mxu0 0.0
    %371 = vmatpush1.msra.mxu0 %v101
    %372 = vmatprep.subr.mxu0 0.0
    %373 = vmatpush1.msra.mxu0 %v102
    %374 = vmatprep.subr.mxu0 0.0
    %375 = vmatpush1.msra.mxu0 %v103
    %376 = vmatprep.subr.mxu0 0.0
    %377 = vmatpush1.msra.mxu0 %v104
    %378 = vmatprep.subr.mxu0 0.0
    %379 = vmatpush1.msra.mxu0 %v105
    %380 = vmatprep.subr.mxu0 0.0
    %381 = vmatpush1.msra.mxu0 %v106
    %382 = vmatprep.subr.mxu0 0.0
    %383 = vmatpush1.msra.mxu0 %v107
    %384 = vmatprep.subr.mxu0 0.0
    %385 = vmatpush1.msra.mxu0 %v108
    %386 = vmatprep.subr.mxu0 0.0
    %387 = vmatpush1.msra.mxu0 %v109
    %388 = vmatprep.subr.mxu0 0.0
    %389 = vmatpush1.msra.mxu0 %v110
    %390 = vmatprep.subr.mxu0 0.0
    %391 = vmatpush1.msra.mxu0 %v111
    %392 = vmatprep.subr.mxu0 0.0
    %393 = vmatpush1.msra.mxu0 %v112
    %394 = vmatprep.subr.mxu0 0.0
    %395 = vmatpush1.msra.mxu0 %v113
    %396 = vmatprep.subr.mxu0 0.0
    %397 = vmatpush1.msra.mxu0 %v114
    %398 = vmatprep.subr.mxu0 0.0
    %399 = vmatpush1.msra.mxu0 %v115
    %400 = vmatprep.subr.mxu0 0.0
    %401 = vmatpush1.msra.mxu0 %v116
    %402 = vmatprep.subr.mxu0 0.0
    %403 = vmatpush1.msra.mxu0 %v117
    %404 = vmatprep.subr.mxu0 0.0
    %405 = vmatpush1.msra.mxu0 %v118
    %406 = vmatprep.mubr.f32.mxu0 %v192
    %407 = vmatmul.mubr.f32.gmra.mrb[0].mxu0 %v184
    %v408 = vpop.f32.mrb[0].mxu0
    %v409 = vadd.f32 %v339, %v408
    %v410 = vpop.f32.mrb[0].mxu0
    %411 = vdwg.mxu0
    %412 = vmatprep.subr.mxu0 0.0
    %413 = vmatpush1.msra.mxu0 %v119
    %414 = vmatprep.subr.mxu0 0.0
    %415 = vmatpush1.msra.mxu0 %v120
    %416 = vmatprep.subr.mxu0 0.0
    %417 = vmatpush1.msra.mxu0 %v121
    %418 = vmatprep.subr.mxu0 0.0
    %419 = vmatpush1.msra.mxu0 %v122
    %420 = vmatprep.subr.mxu0 0.0
    %421 = vmatpush1.msra.mxu0 %v123
    %422 = vmatprep.subr.mxu0 0.0
    %423 = vmatpush1.msra.mxu0 %v124
    %424 = vmatprep.subr.mxu0 0.0
    %425 = vmatpush1.msra.mxu0 %v125
    %426 = vmatprep.subr.mxu0 0.0
    %427 = vmatpush1.msra.mxu0 %v126
    %428 = vmatprep.subr.mxu0 0.0
    %429 = vmatpush1.msra.mxu0 %v127
    %430 = vmatprep.subr.mxu0 0.0
    %431 = vmatpush1.msra.mxu0 %v128
    %432 = vmatprep.subr.mxu0 0.0
    %433 = vmatpush1.msra.mxu0 %v129
    %434 = vmatprep.subr.mxu0 0.0
    %435 = vmatpush1.msra.mxu0 %v130
    %436 = vmatprep.subr.mxu0 0.0
    %437 = vmatpush1.msra.mxu0 %v131
    %438 = vmatprep.subr.mxu0 0.0
    %439 = vmatpush1.msra.mxu0 %v132
    %440 = vmatprep.subr.mxu0 0.0
    %441 = vmatpush1.msra.mxu0 %v133
    %442 = vmatprep.subr.mxu0 0.0
    %443 = vmatpush1.msra.mxu0 %v134
    %444 = vmatprep.subr.mxu0 0.0
    %445 = vmatpush1.msra.mxu0 %v135
    %446 = vmatprep.subr.mxu0 0.0
    %447 = vmatpush1.msra.mxu0 %v136
    %448 = vmatprep.subr.mxu0 0.0
    %449 = vmatpush1.msra.mxu0 %v137
    %450 = vmatprep.subr.mxu0 0.0
    %451 = vmatpush1.msra.mxu0 %v138
    %452 = vmatprep.subr.mxu0 0.0
    %453 = vmatpush1.msra.mxu0 %v139
    %454 = vmatprep.subr.mxu0 0.0
    %455 = vmatpush1.msra.mxu0 %v140
    %456 = vmatprep.subr.mxu0 0.0
    %457 = vmatpush1.msra.mxu0 %v141
    %458 = vmatprep.subr.mxu0 0.0
    %459 = vmatpush1.msra.mxu0 %v142
    %460 = vmatprep.subr.mxu0 0.0
    %461 = vmatpush1.msra.mxu0 %v143
    %462 = vmatprep.subr.mxu0 0.0
    %463 = vmatpush1.msra.mxu0 %v144
    %464 = vmatprep.subr.mxu0 0.0
    %465 = vmatpush1.msra.mxu0 %v145
    %466 = vmatprep.subr.mxu0 0.0
    %467 = vmatpush1.msra.mxu0 %v146
    %468 = vmatprep.subr.mxu0 0.0
    %469 = vmatpush1.msra.mxu0 %v147
    %470 = vmatprep.subr.mxu0 0.0
    %471 = vmatpush1.msra.mxu0 %v148
    %472 = vmatprep.subr.mxu0 0.0
    %473 = vmatpush1.msra.mxu0 %v149
    %474 = vmatprep.subr.mxu0 0.0
    %475 = vmatpush1.msra.mxu0 %v150
    %476 = vmatprep.mubr.f32.mxu0 %v193
    %477 = vmatmul.mubr.f32.gmra.mrb[0].mxu0 %v191
    %v478 = vpop.f32.mrb[0].mxu0
    %v479 = vadd.f32 %v409, %v478
    %v480 = vpop.f32.mrb[0].mxu0
    %481 = vdwg.mxu0
    %v482 = vmax.f32 %v479, 0.0
    %v483 = vld [vmem:[%s3] sm:$0xff]
    %v484 = vld [vmem:[%s3 + $0x8] sm:$0xff]
    %v485 = vld [vmem:[%s3 + $0x10] sm:$0xff]
    %v486 = vld [vmem:[%s3 + $0x18] sm:$0xff]
    %v487 = vld [vmem:[%s4] sm:$0x1]
    %v489 = vlaneseq
    %v490 = vshrl.u32 %v489, 7
    %v491 = vsub.s32 0, %v490
    %v492 = vrot.slane %v487, %v491
    %vm494 = vcmask 261120
    %v496 = vsel %vm494, %v482, 0
    %498 = vmatprep.subr.mxu0 0.0
    %499 = vmatpush1.msra.mxu0 %v483
    %500 = vmatprep.subr.mxu0 0.0
    %501 = vmatpush1.msra.mxu0 %v484
    %502 = vmatprep.subr.mxu0 0.0
    %503 = vmatpush1.msra.mxu0 %v485
    %504 = vmatprep.subr.mxu0 0.0
    %505 = vmatpush1.msra.mxu0 %v486
    %506 = vmatprep.subr.mxu0 0.0
    %507 = vmatpush1.msra.mxu0 0.0
    %508 = vmatprep.subr.mxu0 0.0
    %509 = vmatpush1.msra.mxu0 0.0
    %510 = vmatprep.subr.mxu0 0.0
    %511 = vmatpush1.msra.mxu0 0.0
    %512 = vmatprep.subr.mxu0 0.0
    %513 = vmatpush1.msra.mxu0 0.0
    %514 = vmatprep.subr.mxu0 0.0
    %515 = vmatpush1.msra.mxu0 0.0
    %516 = vmatprep.subr.mxu0 0.0
    %517 = vmatpush1.msra.mxu0 0.0
    %518 = vmatprep.subr.mxu0 0.0
    %519 = vmatpush1.msra.mxu0 0.0
    %520 = vmatprep.subr.mxu0 0.0
    %521 = vmatpush1.msra.mxu0 0.0
    %522 = vmatprep.subr.mxu0 0.0
    %523 = vmatpush1.msra.mxu0 0.0
    %524 = vmatprep.subr.mxu0 0.0
    %525 = vmatpush1.msra.mxu0 0.0
    %526 = vmatprep.subr.mxu0 0.0
    %527 = vmatpush1.msra.mxu0 0.0
    %528 = vmatprep.subr.mxu0 0.0
    %529 = vmatpush1.msra.mxu0 0.0
    %530 = vmatprep.subr.mxu0 0.0
    %531 = vmatpush1.msra.mxu0 0.0
    %532 = vmatprep.subr.mxu0 0.0
    %533 = vmatpush1.msra.mxu0 0.0
    %534 = vmatprep.subr.mxu0 0.0
    %535 = vmatpush1.msra.mxu0 0.0
    %536 = vmatprep.subr.mxu0 0.0
    %537 = vmatpush1.msra.mxu0 0.0
    %538 = vmatprep.subr.mxu0 0.0
    %539 = vmatpush1.msra.mxu0 0.0
    %540 = vmatprep.subr.mxu0 0.0
    %541 = vmatpush1.msra.mxu0 0.0
    %542 = vmatprep.subr.mxu0 0.0
    %543 = vmatpush1.msra.mxu0 0.0
    %544 = vmatprep.subr.mxu0 0.0
    %545 = vmatpush1.msra.mxu0 0.0
    %546 = vmatprep.subr.mxu0 0.0
    %547 = vmatpush1.msra.mxu0 0.0
    %548 = vmatprep.subr.mxu0 0.0
    %549 = vmatpush1.msra.mxu0 0.0
    %550 = vmatprep.subr.mxu0 0.0
    %551 = vmatpush1.msra.mxu0 0.0
    %552 = vmatprep.subr.mxu0 0.0
    %553 = vmatpush1.msra.mxu0 0.0
    %554 = vmatprep.subr.mxu0 0.0
    %555 = vmatpush1.msra.mxu0 0.0
    %556 = vmatprep.subr.mxu0 0.0
    %557 = vmatpush1.msra.mxu0 0.0
    %558 = vmatprep.subr.mxu0 0.0
    %559 = vmatpush1.msra.mxu0 0.0
    %560 = vmatprep.subr.mxu0 0.0
    %561 = vmatpush1.msra.mxu0 0.0
    %562 = vmatprep.mubr.f32.mxu0 0.0
    %563 = vmatmul.mubr.f32.gmra.mrb[0].mxu0 %v496
    %v564 = vpop.f32.mrb[0].mxu0
    %v565 = vadd.f32 %v492, %v564
    %v566 = vpop.f32.mrb[0].mxu0
    %567 = vdwg.mxu0
    %vm568 = vcmask 254976
    %569 = vst.msk [vmem:[#allocation2] sm:$0x3] %vm568, %v565
    // Predicated region
    $region22: #{image_mlp_forward.5} parent=1 // pred_check
      _
    $region23: #{image_mlp_forward.5} parent=1 // pred_check_branch
      %571 = sbr.rel (0) target = $region25
    $region24: #{image_mlp_forward.5} parent=1 // pred_region
      %s573 = ssub.s32 32, 32
      %574 = vsyncadd [#allocation3], %s573
      %s576 = sshll.u32 [#allocation2], 4
      %s577 = int_to_ptr.vmem [resolvable:$true] %s576
      %579 = dma.vmem_to_hbm [thread:$0]  %s577, 32, %s5, [#allocation3]
    $region25: #{image_mlp_forward.5} parent=1 // pred_fallthru
      _
    // Predicated region
    $region26: #{image_mlp_forward.5} parent=1 // pred_check
      _
    $region27: #{image_mlp_forward.5} parent=1 // pred_check_branch
      %581 = sbr.rel (0) target = $region29
    $region28: #{image_mlp_forward.5} parent=1 // pred_region
      %582 = dma.done [#allocation3], 32
    $region29: #{image_mlp_forward.5} parent=1 // pred_fallthru
      _
    %583 = vsyncpa [#allocation3], 1

// kernel: image_mlp_forward.3
$region0: #{image_mlp_forward.3}
  #allocation0 [shape = 'u32[]', space=smem, size = 0x4, offset = 0x4, fixed_abs, tag = 'smem constant byte address 0x4 - core index']
  #allocation1 [shape = 'u32[144,128]{1,0:T(1,128)}', space=vmem, size = 0x12000, scoped, tag = 'internal scratch']
  %s0 = inlined_call_operand.vmem [shape: f32[2,18,72], index: 0, kind: input, shape index: {}]
  %s1 = inlined_call_operand.vmem [shape: f32[72,512], index: 1, kind: input, shape index: {}]
  %s2 = inlined_call_operand.hbm [shape: f32[72,512], index: 2, kind: input, shape index: {}]
  %s3 = inlined_call_operand.hbm [shape: f32[72,512], index: 3, kind: input, shape index: {}]
  %s4 = inlined_call_operand.vmem [shape: f32[1,256], index: 4, kind: input, shape index: {}]
  %s5 = inlined_call_operand.vmem [shape: f32[2,8,256], index: 5, kind: output, shape index: {}]
  %s6 = sld [smem:[#allocation0]]
  $region61: #{image_mlp_forward.3} parent=0
    _
  %s8 = ssub.s32 1, %s6
  %s9 = scalar_select 0, %s8, %s6
  $region1: #{image_mlp_forward.3} parent=0
    #allocation2 [shape = 'u8[147456]{0}', space=vmem, size = 0x24000, scoped, tag = 'input window, operand 2, single buffered']
    #allocation3 [shape = 's32[2]{0}', space=sflag, size = 0x8, scoped, tag = 'scoped memory for image_mlp_forward.3']
    #allocation4 [shape = 'u8[147456]{0}', space=vmem, size = 0x24000, scoped, tag = 'input window, operand 3, single buffered']
    #allocation5 [shape = 's32[1]{0}', space=sflag, size = 0x4, scoped, tag = 'scoped memory for image_mlp_forward.3']
    %10 = vsyncpa [#allocation3], 0
    %11 = vsyncpa [#allocation5], 0
    loop: start=0, step=1, limit=4
    $region2: #{image_mlp_forward.3} parent=1 // loop_pre_header
      _
    $region3: #{image_mlp_forward.3} parent=1 // loop_header
      %s13 = sphi 0, %s17
      %p14 = scmp.ge.s32.totalorder %s13, 4
      %s23 = sphi 0, %s25
      %s26 = sphi 0, %s23
      %s27 = sphi 0, %s26
      %s43 = sphi 0, %s27
      %s47 = sphi 0, %s47
      %s49 = sphi 0, %s47
      %s50 = sphi 0, %s49
      %s64 = sphi 0, %s50
      %s68 = sphi 0, %s68
      %s70 = sphi 0, %s68
      %s71 = sphi 0, %s70
      %s85 = sphi 0, %s71
      %s89 = sphi 0, %s89
      %s91 = sphi 0, %s89
      %s92 = sphi 0, %s91
      %s106 = sphi 0, %s92
      %s110 = sphi 0, %s110
      %s112 = sphi 0, %s110
      %s113 = sphi 0, %s112
      %s127 = sphi 0, %s113
      %s133 = sphi 0, %s135
      %s136 = sphi 0, %s133
      %s137 = sphi 0, %s136
      %s153 = sphi 0, %s137
    $region4: #{image_mlp_forward.3} parent=1 // loop_header_branch
      %16 = sbr.rel (%p14) target = $region8
    $region5: #{image_mlp_forward.3} parent=1 // loop_body
      %s18 = ssub.s32 %s13, 1
      %s19 = ssub.s32 %s13, 2
      %s20 = sadd.s32 %s13, 1
      %s21 = ssub.s32 %s13, %s20
      %p22 = scmp.eq.s32.totalorder %s21, 0
      %s24 = sadd.s32 %s23, 1
      %s25 = scalar_select %p22, %s23, %s24
      %p28 = pneg %p22
      %p29 = scmp.eq.s32.totalorder %s13, 1
      %p30 = por %p28, %p29
      %p31 = scmp.ne.s32.totalorder %s23, %s26
      %p32 = scmp.eq.s32.totalorder %s13, 0
      %p33 = por %p31, %p32
      %p34 = scmp.ne.s32.totalorder %s23, %s26
      %p35 = scmp.eq.s32.totalorder %s18, 1
      %p36 = por %p34, %p35
      %p37 = scmp.ne.s32.totalorder %s26, %s27
      %p38 = scmp.eq.s32.totalorder %s18, 0
      %p39 = por %p37, %p38
      %p40 = scmp.ne.s32.totalorder %s26, %s27
      %p41 = scmp.eq.s32.totalorder %s19, 1
      %p42 = por %p40, %p41
      %p44 = scmp.ne.s32.totalorder %s27, %s43
      %p45 = scmp.eq.s32.totalorder %s19, 0
      %p46 = por %p44, %p45
      %s48 = sadd.s32 %s47, 1
      %p51 = scmp.eq.s32.totalorder %s13, 1
      %p52 = scmp.ne.s32.totalorder %s47, %s49
      %p53 = scmp.eq.s32.totalorder %s13, 0
      %p54 = por %p52, %p53
      %p55 = scmp.ne.s32.totalorder %s47, %s49
      %p56 = scmp.eq.s32.totalorder %s18, 1
      %p57 = por %p55, %p56
      %p58 = scmp.ne.s32.totalorder %s49, %s50
      %p59 = scmp.eq.s32.totalorder %s18, 0
      %p60 = por %p58, %p59
      %p61 = scmp.ne.s32.totalorder %s49, %s50
      %p62 = scmp.eq.s32.totalorder %s19, 1
      %p63 = por %p61, %p62
      %p65 = scmp.ne.s32.totalorder %s50, %s64
      %p66 = scmp.eq.s32.totalorder %s19, 0
      %p67 = por %p65, %p66
      %s69 = sadd.s32 %s68, 1
      %p72 = scmp.eq.s32.totalorder %s13, 1
      %p73 = scmp.ne.s32.totalorder %s68, %s70
      %p74 = scmp.eq.s32.totalorder %s13, 0
      %p75 = por %p73, %p74
      %p76 = scmp.ne.s32.totalorder %s68, %s70
      %p77 = scmp.eq.s32.totalorder %s18, 1
      %p78 = por %p76, %p77
      %p79 = scmp.ne.s32.totalorder %s70, %s71
      %p80 = scmp.eq.s32.totalorder %s18, 0
      %p81 = por %p79, %p80
      %p82 = scmp.ne.s32.totalorder %s70, %s71
      %p83 = scmp.eq.s32.totalorder %s19, 1
      %p84 = por %p82, %p83
      %p86 = scmp.ne.s32.totalorder %s71, %s85
      %p87 = scmp.eq.s32.totalorder %s19, 0
      %p88 = por %p86, %p87
      %s90 = sadd.s32 %s89, 1
      %p93 = scmp.eq.s32.totalorder %s13, 1
      %p94 = scmp.ne.s32.totalorder %s89, %s91
      %p95 = scmp.eq.s32.totalorder %s13, 0
      %p96 = por %p94, %p95
      %p97 = scmp.ne.s32.totalorder %s89, %s91
      %p98 = scmp.eq.s32.totalorder %s18, 1
      %p99 = por %p97, %p98
      %p100 = scmp.ne.s32.totalorder %s91, %s92
      %p101 = scmp.eq.s32.totalorder %s18, 0
      %p102 = por %p100, %p101
      %p103 = scmp.ne.s32.totalorder %s91, %s92
      %p104 = scmp.eq.s32.totalorder %s19, 1
      %p105 = por %p103, %p104
      %p107 = scmp.ne.s32.totalorder %s92, %s106
      %p108 = scmp.eq.s32.totalorder %s19, 0
      %p109 = por %p107, %p108
      %s111 = sadd.s32 %s110, 1
      %p114 = scmp.eq.s32.totalorder %s13, 1
      %p115 = scmp.ne.s32.totalorder %s110, %s112
      %p116 = scmp.eq.s32.totalorder %s13, 0
      %p117 = por %p115, %p116
      %p118 = scmp.ne.s32.totalorder %s110, %s112
      %p119 = scmp.eq.s32.totalorder %s18, 1
      %p120 = por %p118, %p119
      %p121 = scmp.ne.s32.totalorder %s112, %s113
      %p122 = scmp.eq.s32.totalorder %s18, 0
      %p123 = por %p121, %p122
      %p124 = scmp.ne.s32.totalorder %s112, %s113
      %p125 = scmp.eq.s32.totalorder %s19, 1
      %p126 = por %p124, %p125
      %p128 = scmp.ne.s32.totalorder %s113, %s127
      %p129 = scmp.eq.s32.totalorder %s19, 0
      %p130 = por %p128, %p129
      %s131 = ssub.s32 %s13, %s20
      %p132 = scmp.eq.s32.totalorder %s131, 0
      %s134 = sadd.s32 %s133, 1
      %s135 = scalar_select %p132, %s133, %s134
      %p138 = pneg %p132
      %p139 = scmp.eq.s32.totalorder %s13, 1
      %p140 = por %p138, %p139
      %p141 = scmp.ne.s32.totalorder %s133, %s136
      %p142 = scmp.eq.s32.totalorder %s13, 0
      %p143 = por %p141, %p142
      %p144 = scmp.ne.s32.totalorder %s133, %s136
      %p145 = scmp.eq.s32.totalorder %s18, 1
      %p146 = por %p144, %p145
      %p147 = scmp.ne.s32.totalorder %s136, %s137
      %p148 = scmp.eq.s32.totalorder %s18, 0
      %p149 = por %p147, %p148
      %p150 = scmp.ne.s32.totalorder %s136, %s137
      %p151 = scmp.eq.s32.totalorder %s19, 1
      %p152 = por %p150, %p151
      %p154 = scmp.ne.s32.totalorder %s137, %s153
      %p155 = scmp.eq.s32.totalorder %s19, 0
      %p156 = por %p154, %p155
      %p157 = scmp.le.s32.totalorder 1, %s13
      %p158 = scmp.lt.s32.totalorder %s13, 3
      %p159 = pnand %p157, %p158
      %p160 = pneg %p159
      // Predicated region
      $region9: #{image_mlp_forward.3} parent=5 // pred_check
        _
      $region10: #{image_mlp_forward.3} parent=5 // pred_check_branch
        %162 = sbr.rel (%p159) target = $region12
      $region11: #{image_mlp_forward.3} parent=5 // pred_region
        %s163 = ssub.s32 %s13, 1
        // Predicated region
        $region13: #{image_mlp_forward.3} parent=11 // pred_check
          %p164 = pneg %p60
        $region14: #{image_mlp_forward.3} parent=11 // pred_check_branch
          %166 = sbr.rel (%p164) target = $region16
        $region15: #{image_mlp_forward.3} parent=11 // pred_region
          _
        $region16: #{image_mlp_forward.3} parent=11 // pred_fallthru
          _
        // Predicated region
        $region17: #{image_mlp_forward.3} parent=11 // pred_check
          %p167 = pneg %p81
        $region18: #{image_mlp_forward.3} parent=11 // pred_check_branch
          %169 = sbr.rel (%p167) target = $region20
        $region19: #{image_mlp_forward.3} parent=11 // pred_region
          %s171 = ssub.s32 4608, 4608
          %172 = vsyncadd [#allocation3], %s171
          %s173 = sshll.u32 [#allocation2], 4
          %s174 = int_to_ptr.vmem [resolvable:$true] %s173
          %179 = dma.hbm_to_vmem [thread:$0]  %s2, 4608, %s174, [#allocation3], 512, 512, 32
        $region20: #{image_mlp_forward.3} parent=11 // pred_fallthru
          _
        // Predicated region
        $region21: #{image_mlp_forward.3} parent=11 // pred_check
          %p180 = pneg %p102
        $region22: #{image_mlp_forward.3} parent=11 // pred_check_branch
          %182 = sbr.rel (%p180) target = $region24
        $region23: #{image_mlp_forward.3} parent=11 // pred_region
          %s184 = ssub.s32 4608, 4608
          %185 = vsyncadd [#allocation5], %s184
          %s186 = sshll.u32 [#allocation4], 4
          %s187 = int_to_ptr.vmem [resolvable:$true] %s186
          %192 = dma.hbm_to_vmem [thread:$0]  %s3, 4608, %s187, [#allocation5], 512, 512, 32
        $region24: #{image_mlp_forward.3} parent=11 // pred_fallthru
          _
        // Predicated region
        $region25: #{image_mlp_forward.3} parent=11 // pred_check
          %p193 = pneg %p123
        $region26: #{image_mlp_forward.3} parent=11 // pred_check_branch
          %195 = sbr.rel (%p193) target = $region28
        $region27: #{image_mlp_forward.3} parent=11 // pred_region
          _
        $region28: #{image_mlp_forward.3} parent=11 // pred_fallthru
          _
      $region12: #{image_mlp_forward.3} parent=5 // pred_fallthru
        _
      %p196 = scmp.lt.s32.totalorder %s13, 2
      // Predicated region
      $region29: #{image_mlp_forward.3} parent=5 // pred_check
        %p197 = pneg %p196
      $region30: #{image_mlp_forward.3} parent=5 // pred_check_branch
        %199 = sbr.rel (%p197) target = $region32
      $region31: #{image_mlp_forward.3} parent=5 // pred_region
        // Predicated region
        $region33: #{image_mlp_forward.3} parent=31 // pred_check
          %p200 = pneg %p33
        $region34: #{image_mlp_forward.3} parent=31 // pred_check_branch
          %202 = sbr.rel (%p200) target = $region36
        $region35: #{image_mlp_forward.3} parent=31 // pred_region
          %p203 = scmp.lt.s32.totalorder %s13, 1
          %s204 = scalar_select %p203, %s13, 1
          %s205 = smul.addr %s204, 3
          %s206 = smul.addr %s205, 8
          %s207 = scalar_lea.vmem %s0, %s206
        $region36: #{image_mlp_forward.3} parent=31 // pred_fallthru
          _
      $region32: #{image_mlp_forward.3} parent=5 // pred_fallthru
        _
      %p208 = scmp.le.s32.totalorder 1, %s13
      %p209 = scmp.lt.s32.totalorder %s13, 3
      %p210 = pnand %p208, %p209
      %p211 = pneg %p210
      // Predicated region
      $region37: #{image_mlp_forward.3} parent=5 // pred_check
        _
      $region38: #{image_mlp_forward.3} parent=5 // pred_check_branch
        %213 = sbr.rel (%p210) target = $region40
      $region39: #{image_mlp_forward.3} parent=5 // pred_region
        %s214 = ssub.s32 %s13, 1
        // Predicated region
        $region41: #{image_mlp_forward.3} parent=39 // pred_check
          %p215 = pneg %p81
        $region42: #{image_mlp_forward.3} parent=39 // pred_check_branch
          %217 = sbr.rel (%p215) target = $region44
        $region43: #{image_mlp_forward.3} parent=39 // pred_region
          %218 = dma.done [#allocation3], 4608
        $region44: #{image_mlp_forward.3} parent=39 // pred_fallthru
          _
        // Predicated region
        $region45: #{image_mlp_forward.3} parent=39 // pred_check
          %p219 = pneg %p102
        $region46: #{image_mlp_forward.3} parent=39 // pred_check_branch
          %221 = sbr.rel (%p219) target = $region48
        $region47: #{image_mlp_forward.3} parent=39 // pred_region
          %222 = dma.done [#allocation5], 4608
        $region48: #{image_mlp_forward.3} parent=39 // pred_fallthru
          _
        %p223 = scmp.lt.s32.totalorder %s18, 1
        %s224 = scalar_select %p223, %s18, 1
        %s225 = smul.addr %s224, 3
        %s226 = smul.addr %s225, 8
        %s227 = scalar_lea.vmem %s0, %s226
        %p228 = pneg %p39
        %p229 = pneg %p36
        %p230 = pneg %p60
        %p231 = pneg %p57
        %p232 = pneg %p81
        %p233 = pneg %p78
        %p234 = pneg %p102
        %p235 = pneg %p99
        %p236 = pneg %p123
        %p237 = pneg %p120
        %p238 = pneg %p149
        %p239 = pneg %p146
        %p240 = scmp.lt.s32.totalorder %s18, 1
        %s241 = scalar_select %p240, %s18, 1
        %s242 = smul.addr %s241, 2
        %s243 = smul.addr %s242, 8
        %s244 = scalar_lea.vmem %s5, %s243
        %p245 = scmp.lt.s32.totalorder %s18, 1
        %s246 = scalar_select %p245, %s18, 1
        %s247 = smul.addr %s246, 3
        %s248 = smul.addr %s247, 8
        %s249 = scalar_lea.vmem %s0, %s248
        %p250 = scmp.lt.s32.totalorder %s18, 1
        %s251 = scalar_select %p250, %s18, 1
        %s252 = smul.addr %s251, 2
        %s253 = smul.addr %s252, 8
        %s254 = scalar_lea.vmem %s5, %s253
        %v255 = vld [vmem:[%s249] sm:$0xff]
        %v256 = vld [vmem:[%s249 + $0x1] sm:$0xff]
        %v257 = vld [vmem:[%s249 + $0x9] sm:$0xff]
        %v258 = vld [vmem:[%s249 + $0xa] sm:$0xff]
        %v259 = vld [vmem:[%s1] sm:$0xff]
        %v260 = vld [vmem:[%s1 + $0x8] sm:$0xff]
        %v261 = vld [vmem:[%s1 + $0x10] sm:$0xff]
        %v262 = vld [vmem:[%s1 + $0x18] sm:$0xff]
        %v263 = vld [vmem:[%s1 + $0x20] sm:$0xff]
        %v264 = vld [vmem:[%s1 + $0x28] sm:$0xff]
        %v265 = vld [vmem:[%s1 + $0x30] sm:$0xff]
        %v266 = vld [vmem:[%s1 + $0x38] sm:$0xff]
        %v267 = vld [vmem:[%s1 + $0x40] sm:$0xff]
        %v268 = vld [vmem:[%s1 + $0x48] sm:$0xff]
        %v269 = vld [vmem:[%s1 + $0x50] sm:$0xff]
        %v270 = vld [vmem:[%s1 + $0x58] sm:$0xff]
        %v271 = vld [vmem:[%s1 + $0x60] sm:$0xff]
        %v272 = vld [vmem:[%s1 + $0x68] sm:$0xff]
        %v273 = vld [vmem:[%s1 + $0x70] sm:$0xff]
        %v274 = vld [vmem:[%s1 + $0x78] sm:$0xff]
        %v275 = vld [vmem:[%s1 + $0x80] sm:$0xff]
        %v276 = vld [vmem:[%s1 + $0x88] sm:$0xff]
        %v277 = vld [vmem:[%s1 + $0x90] sm:$0xff]
        %v278 = vld [vmem:[%s1 + $0x98] sm:$0xff]
        %v279 = vld [vmem:[%s1 + $0xa0] sm:$0xff]
        %v280 = vld [vmem:[%s1 + $0xa8] sm:$0xff]
        %v281 = vld [vmem:[%s1 + $0xb0] sm:$0xff]
        %v282 = vld [vmem:[%s1 + $0xb8] sm:$0xff]
        %v283 = vld [vmem:[%s1 + $0xc0] sm:$0xff]
        %v284 = vld [vmem:[%s1 + $0xc8] sm:$0xff]
        %v285 = vld [vmem:[%s1 + $0xd0] sm:$0xff]
        %v286 = vld [vmem:[%s1 + $0xd8] sm:$0xff]
        %v287 = vld [vmem:[%s1 + $0xe0] sm:$0xff]
        %v288 = vld [vmem:[%s1 + $0xe8] sm:$0xff]
        %v289 = vld [vmem:[%s1 + $0xf0] sm:$0xff]
        %v290 = vld [vmem:[%s1 + $0xf8] sm:$0xff]
        %v291 = vld [vmem:[%s1 + $0x100] sm:$0xff]
        %v292 = vld [vmem:[%s1 + $0x108] sm:$0xff]
        %v293 = vld [vmem:[%s1 + $0x110] sm:$0xff]
        %v294 = vld [vmem:[%s1 + $0x118] sm:$0xff]
        %v295 = vld [vmem:[#allocation2] sm:$0xff]
        %v296 = vld [vmem:[#allocation2 + $0x8] sm:$0xff]
        %v297 = vld [vmem:[#allocation2 + $0x10] sm:$0xff]
        %v298 = vld [vmem:[#allocation2 + $0x18] sm:$0xff]
        %v299 = vld [vmem:[#allocation2 + $0x20] sm:$0xff]
        %v300 = vld [vmem:[#allocation2 + $0x28] sm:$0xff]
        %v301 = vld [vmem:[#allocation2 + $0x30] sm:$0xff]
        %v302 = vld [vmem:[#allocation2 + $0x38] sm:$0xff]
        %v303 = vld [vmem:[#allocation2 + $0x40] sm:$0xff]
        %v304 = vld [vmem:[#allocation2 + $0x48] sm:$0xff]
        %v305 = vld [vmem:[#allocation2 + $0x50] sm:$0xff]
        %v306 = vld [vmem:[#allocation2 + $0x58] sm:$0xff]
        %v307 = vld [vmem:[#allocation2 + $0x60] sm:$0xff]
        %v308 = vld [vmem:[#allocation2 + $0x68] sm:$0xff]
        %v309 = vld [vmem:[#allocation2 + $0x70] sm:$0xff]
        %v310 = vld [vmem:[#allocation2 + $0x78] sm:$0xff]
        %v311 = vld [vmem:[#allocation2 + $0x80] sm:$0xff]
        %v312 = vld [vmem:[#allocation2 + $0x88] sm:$0xff]
        %v313 = vld [vmem:[#allocation2 + $0x90] sm:$0xff]
        %v314 = vld [vmem:[#allocation2 + $0x98] sm:$0xff]
        %v315 = vld [vmem:[#allocation2 + $0xa0] sm:$0xff]
        %v316 = vld [vmem:[#allocation2 + $0xa8] sm:$0xff]
        %v317 = vld [vmem:[#allocation2 + $0xb0] sm:$0xff]
        %v318 = vld [vmem:[#allocation2 + $0xb8] sm:$0xff]
        %v319 = vld [vmem:[#allocation2 + $0xc0] sm:$0xff]
        %v320 = vld [vmem:[#allocation2 + $0xc8] sm:$0xff]
        %v321 = vld [vmem:[#allocation2 + $0xd0] sm:$0xff]
        %v322 = vld [vmem:[#allocation2 + $0xd8] sm:$0xff]
        %v323 = vld [vmem:[#allocation2 + $0xe0] sm:$0xff]
        %v324 = vld [vmem:[#allocation2 + $0xe8] sm:$0xff]
        %v325 = vld [vmem:[#allocation2 + $0xf0] sm:$0xff]
        %v326 = vld [vmem:[#allocation2 + $0xf8] sm:$0xff]
        %v327 = vld [vmem:[#allocation2 + $0x100] sm:$0xff]
        %v328 = vld [vmem:[#allocation2 + $0x108] sm:$0xff]
        %v329 = vld [vmem:[#allocation2 + $0x110] sm:$0xff]
        %v330 = vld [vmem:[#allocation2 + $0x118] sm:$0xff]
        %v331 = vld [vmem:[#allocation4] sm:$0xff]
        %v332 = vld [vmem:[#allocation4 + $0x8] sm:$0xff]
        %v333 = vld [vmem:[#allocation4 + $0x10] sm:$0xff]
        %v334 = vld [vmem:[#allocation4 + $0x18] sm:$0xff]
        %v335 = vld [vmem:[#allocation4 + $0x20] sm:$0xff]
        %v336 = vld [vmem:[#allocation4 + $0x28] sm:$0xff]
        %v337 = vld [vmem:[#allocation4 + $0x30] sm:$0xff]
        %v338 = vld [vmem:[#allocation4 + $0x38] sm:$0xff]
        %v339 = vld [vmem:[#allocation4 + $0x40] sm:$0xff]
        %v340 = vld [vmem:[#allocation4 + $0x48] sm:$0xff]
        %v341 = vld [vmem:[#allocation4 + $0x50] sm:$0xff]
        %v342 = vld [vmem:[#allocation4 + $0x58] sm:$0xff]
        %v343 = vld [vmem:[#allocation4 + $0x60] sm:$0xff]
        %v344 = vld [vmem:[#allocation4 + $0x68] sm:$0xff]
        %v345 = vld [vmem:[#allocation4 + $0x70] sm:$0xff]
        %v346 = vld [vmem:[#allocation4 + $0x78] sm:$0xff]
        %v347 = vld [vmem:[#allocation4 + $0x80] sm:$0xff]
        %v348 = vld [vmem:[#allocation4 + $0x88] sm:$0xff]
        %v349 = vld [vmem:[#allocation4 + $0x90] sm:$0xff]
        %v350 = vld [vmem:[#allocation4 + $0x98] sm:$0xff]
        %v351 = vld [vmem:[#allocation4 + $0xa0] sm:$0xff]
        %v352 = vld [vmem:[#allocation4 + $0xa8] sm:$0xff]
        %v353 = vld [vmem:[#allocation4 + $0xb0] sm:$0xff]
        %v354 = vld [vmem:[#allocation4 + $0xb8] sm:$0xff]
        %v355 = vld [vmem:[#allocation4 + $0xc0] sm:$0xff]
        %v356 = vld [vmem:[#allocation4 + $0xc8] sm:$0xff]
        %v357 = vld [vmem:[#allocation4 + $0xd0] sm:$0xff]
        %v358 = vld [vmem:[#allocation4 + $0xd8] sm:$0xff]
        %v359 = vld [vmem:[#allocation4 + $0xe0] sm:$0xff]
        %v360 = vld [vmem:[#allocation4 + $0xe8] sm:$0xff]
        %v361 = vld [vmem:[#allocation4 + $0xf0] sm:$0xff]
        %v362 = vld [vmem:[#allocation4 + $0xf8] sm:$0xff]
        %v363 = vld [vmem:[#allocation4 + $0x100] sm:$0xff]
        %v364 = vld [vmem:[#allocation4 + $0x108] sm:$0xff]
        %v365 = vld [vmem:[#allocation4 + $0x110] sm:$0xff]
        %v366 = vld [vmem:[#allocation4 + $0x118] sm:$0xff]
        %vm367 = vcmask 588800
        %v369 = vsel %vm367, %v257, 0
        %371 = vmatprep.subr.mxu0 %v296
        %372 = vmatpush1.msra.mxu0 %v295
        %373 = vmatprep.subr.mxu0 %v300
        %374 = vmatpush1.msra.mxu0 %v299
        %375 = vmatprep.subr.mxu0 %v304
        %376 = vmatpush1.msra.mxu0 %v303
        %377 = vmatprep.subr.mxu0 %v308
        %378 = vmatpush1.msra.mxu0 %v307
        %379 = vmatprep.subr.mxu0 %v312
        %380 = vmatpush1.msra.mxu0 %v311
        %381 = vmatprep.subr.mxu0 %v316
        %382 = vmatpush1.msra.mxu0 %v315
        %383 = vmatprep.subr.mxu0 %v320
        %384 = vmatpush1.msra.mxu0 %v319
        %385 = vmatprep.subr.mxu0 %v324
        %386 = vmatpush1.msra.mxu0 %v323
        %387 = vmatprep.subr.mxu0 %v328
        %388 = vmatpush1.msra.mxu0 %v327
        %389 = vmatprep.subr.mxu0 0.0
        %390 = vmatpush1.msra.mxu0 0.0
        %391 = vmatprep.subr.mxu0 0.0
        %392 = vmatpush1.msra.mxu0 0.0
        %393 = vmatprep.subr.mxu0 0.0
        %394 = vmatpush1.msra.mxu0 0.0
        %395 = vmatprep.subr.mxu0 0.0
        %396 = vmatpush1.msra.mxu0 0.0
        %397 = vmatprep.subr.mxu0 0.0
        %398 = vmatpush1.msra.mxu0 0.0
        %399 = vmatprep.subr.mxu0 0.0
        %400 = vmatpush1.msra.mxu0 0.0
        %401 = vmatprep.subr.mxu0 0.0
        %402 = vmatpush1.msra.mxu0 0.0
        %403 = vmatprep.subr.mxu0 0.0
        %404 = vmatpush1.msra.mxu0 0.0
        %405 = vmatprep.subr.mxu0 0.0
        %406 = vmatpush1.msra.mxu0 0.0
        %407 = vmatprep.subr.mxu0 0.0
        %408 = vmatpush1.msra.mxu0 0.0
        %409 = vmatprep.subr.mxu0 0.0
        %410 = vmatpush1.msra.mxu0 0.0
        %411 = vmatprep.subr.mxu0 0.0
        %412 = vmatpush1.msra.mxu0 0.0
        %413 = vmatprep.subr.mxu0 0.0
        %414 = vmatpush1.msra.mxu0 0.0
        %415 = vmatprep.subr.mxu0 0.0
        %416 = vmatpush1.msra.mxu0 0.0
        %417 = vmatprep.subr.mxu0 0.0
        %418 = vmatpush1.msra.mxu0 0.0
        %419 = vmatprep.subr.mxu0 0.0
        %420 = vmatpush1.msra.mxu0 0.0
        %421 = vmatprep.subr.mxu0 0.0
        %422 = vmatpush1.msra.mxu0 0.0
        %423 = vmatprep.subr.mxu0 0.0
        %424 = vmatpush1.msra.mxu0 0.0
        %425 = vmatprep.subr.mxu0 0.0
        %426 = vmatpush1.msra.mxu0 0.0
        %427 = vmatprep.subr.mxu0 0.0
        %428 = vmatpush1.msra.mxu0 0.0
        %429 = vmatprep.subr.mxu0 0.0
        %430 = vmatpush1.msra.mxu0 0.0
        %431 = vmatprep.subr.mxu0 0.0
        %432 = vmatpush1.msra.mxu0 0.0
        %433 = vmatprep.subr.mxu0 0.0
        %434 = vmatpush1.msra.mxu0 0.0
        %435 = vmatprep.mubr.f32.mxu0 0.0
        %436 = vmatmul.mubr.f32.gmra.mrb[0].mxu0 %v369
        %v437 = vpop.f32.mrb[0].mxu0
        %v438 = vadd.f32 0.0, %v437
        %v439 = vpop.f32.mrb[0].mxu0
        %v440 = vadd.f32 0.0, %v439
        %441 = vdwg.mxu0
        %442 = vmatprep.subr.mxu0 %v298
        %443 = vmatpush1.msra.mxu0 %v297
        %444 = vmatprep.subr.mxu0 %v302
        %445 = vmatpush1.msra.mxu0 %v301
        %446 = vmatprep.subr.mxu0 %v306
        %447 = vmatpush1.msra.mxu0 %v305
        %448 = vmatprep.subr.mxu0 %v310
        %449 = vmatpush1.msra.mxu0 %v309
        %450 = vmatprep.subr.mxu0 %v314
        %451 = vmatpush1.msra.mxu0 %v313
        %452 = vmatprep.subr.mxu0 %v318
        %453 = vmatpush1.msra.mxu0 %v317
        %454 = vmatprep.subr.mxu0 %v322
        %455 = vmatpush1.msra.mxu0 %v321
        %456 = vmatprep.subr.mxu0 %v326
        %457 = vmatpush1.msra.mxu0 %v325
        %458 = vmatprep.subr.mxu0 %v330
        %459 = vmatpush1.msra.mxu0 %v329
        %460 = vmatprep.subr.mxu0 0.0
        %461 = vmatpush1.msra.mxu0 0.0
        %462 = vmatprep.subr.mxu0 0.0
        %463 = vmatpush1.msra.mxu0 0.0
        %464 = vmatprep.subr.mxu0 0.0
        %465 = vmatpush1.msra.mxu0 0.0
        %466 = vmatprep.subr.mxu0 0.0
        %467 = vmatpush1.msra.mxu0 0.0
        %468 = vmatprep.subr.mxu0 0.0
        %469 = vmatpush1.msra.mxu0 0.0
        %470 = vmatprep.subr.mxu0 0.0
        %471 = vmatpush1.msra.mxu0 0.0
        %472 = vmatprep.subr.mxu0 0.0
        %473 = vmatpush1.msra.mxu0 0.0
        %474 = vmatprep.subr.mxu0 0.0
        %475 = vmatpush1.msra.mxu0 0.0
        %476 = vmatprep.subr.mxu0 0.0
        %477 = vmatpush1.msra.mxu0 0.0
        %478 = vmatprep.subr.mxu0 0.0
        %479 = vmatpush1.msra.mxu0 0.0
        %480 = vmatprep.subr.mxu0 0.0
        %481 = vmatpush1.msra.mxu0 0.0
        %482 = vmatprep.subr.mxu0 0.0
        %483 = vmatpush1.msra.mxu0 0.0
        %484 = vmatprep.subr.mxu0 0.0
        %485 = vmatpush1.msra.mxu0 0.0
        %486 = vmatprep.subr.mxu0 0.0
        %487 = vmatpush1.msra.mxu0 0.0
        %488 = vmatprep.subr.mxu0 0.0
        %489 = vmatpush1.msra.mxu0 0.0
        %490 = vmatprep.subr.mxu0 0.0
        %491 = vmatpush1.msra.mxu0 0.0
        %492 = vmatprep.subr.mxu0 0.0
        %493 = vmatpush1.msra.mxu0 0.0
        %494 = vmatprep.subr.mxu0 0.0
        %495 = vmatpush1.msra.mxu0 0.0
        %496 = vmatprep.subr.mxu0 0.0
        %497 = vmatpush1.msra.mxu0 0.0
        %498 = vmatprep.subr.mxu0 0.0
        %499 = vmatpush1.msra.mxu0 0.0
        %500 = vmatprep.subr.mxu0 0.0
        %501 = vmatpush1.msra.mxu0 0.0
        %502 = vmatprep.subr.mxu0 0.0
        %503 = vmatpush1.msra.mxu0 0.0
        %504 = vmatprep.subr.mxu0 0.0
        %505 = vmatpush1.msra.mxu0 0.0
        %506 = vmatprep.mubr.f32.mxu0 0.0
        %507 = vmatmul.mubr.f32.gmra.mrb[0].mxu0 %v369
        %v508 = vpop.f32.mrb[0].mxu0
        %v509 = vadd.f32 0.0, %v508
        %v510 = vpop.f32.mrb[0].mxu0
        %v511 = vadd.f32 0.0, %v510
        %512 = vdwg.mxu0
        %v514 = vsel %vm367, %v255, 0
        %516 = vmatprep.subr.mxu0 %v260
        %517 = vmatpush1.msra.mxu0 %v259
        %518 = vmatprep.subr.mxu0 %v264
        %519 = vmatpush1.msra.mxu0 %v263
        %520 = vmatprep.subr.mxu0 %v268
        %521 = vmatpush1.msra.mxu0 %v267
        %522 = vmatprep.subr.mxu0 %v272
        %523 = vmatpush1.msra.mxu0 %v271
        %524 = vmatprep.subr.mxu0 %v276
        %525 = vmatpush1.msra.mxu0 %v275
        %526 = vmatprep.subr.mxu0 %v280
        %527 = vmatpush1.msra.mxu0 %v279
        %528 = vmatprep.subr.mxu0 %v284
        %529 = vmatpush1.msra.mxu0 %v283
        %530 = vmatprep.subr.mxu0 %v288
        %531 = vmatpush1.msra.mxu0 %v287
        %532 = vmatprep.subr.mxu0 %v292
        %533 = vmatpush1.msra.mxu0 %v291
        %534 = vmatprep.subr.mxu0 0.0
        %535 = vmatpush1.msra.mxu0 0.0
        %536 = vmatprep.subr.mxu0 0.0
        %537 = vmatpush1.msra.mxu0 0.0
        %538 = vmatprep.subr.mxu0 0.0
        %539 = vmatpush1.msra.mxu0 0.0
        %540 = vmatprep.subr.mxu0 0.0
        %541 = vmatpush1.msra.mxu0 0.0
        %542 = vmatprep.subr.mxu0 0.0
        %543 = vmatpush1.msra.mxu0 0.0
        %544 = vmatprep.subr.mxu0 0.0
        %545 = vmatpush1.msra.mxu0 0.0
        %546 = vmatprep.subr.mxu0 0.0
        %547 = vmatpush1.msra.mxu0 0.0
        %548 = vmatprep.subr.mxu0 0.0
        %549 = vmatpush1.msra.mxu0 0.0
        %550 = vmatprep.subr.mxu0 0.0
        %551 = vmatpush1.msra.mxu0 0.0
        %552 = vmatprep.subr.mxu0 0.0
        %553 = vmatpush1.msra.mxu0 0.0
        %554 = vmatprep.subr.mxu0 0.0
        %555 = vmatpush1.msra.mxu0 0.0
        %556 = vmatprep.subr.mxu0 0.0
        %557 = vmatpush1.msra.mxu0 0.0
        %558 = vmatprep.subr.mxu0 0.0
        %559 = vmatpush1.msra.mxu0 0.0
        %560 = vmatprep.subr.mxu0 0.0
        %561 = vmatpush1.msra.mxu0 0.0
        %562 = vmatprep.subr.mxu0 0.0
        %563 = vmatpush1.msra.mxu0 0.0
        %564 = vmatprep.subr.mxu0 0.0
        %565 = vmatpush1.msra.mxu0 0.0
        %566 = vmatprep.subr.mxu0 0.0
        %567 = vmatpush1.msra.mxu0 0.0
        %568 = vmatprep.subr.mxu0 0.0
        %569 = vmatpush1.msra.mxu0 0.0
        %570 = vmatprep.subr.mxu0 0.0
        %571 = vmatpush1.msra.mxu0 0.0
        %572 = vmatprep.subr.mxu0 0.0
        %573 = vmatpush1.msra.mxu0 0.0
        %574 = vmatprep.subr.mxu0 0.0
        %575 = vmatpush1.msra.mxu0 0.0
        %576 = vmatprep.subr.mxu0 0.0
        %577 = vmatpush1.msra.mxu0 0.0
        %578 = vmatprep.subr.mxu0 0.0
        %579 = vmatpush1.msra.mxu0 0.0
        %580 = vmatprep.mubr.f32.mxu0 0.0
        %581 = vmatmul.mubr.f32.gmra.mrb[0].mxu0 %v514
        %v582 = vpop.f32.mrb[0].mxu0
        %v583 = vadd.f32 %v438, %v582
        %v584 = vpop.f32.mrb[0].mxu0
        %v585 = vadd.f32 %v440, %v584
        %586 = vdwg.mxu0
        %587 = vmatprep.subr.mxu0 %v262
        %588 = vmatpush1.msra.mxu0 %v261
        %589 = vmatprep.subr.mxu0 %v266
        %590 = vmatpush1.msra.mxu0 %v265
        %591 = vmatprep.subr.mxu0 %v270
        %592 = vmatpush1.msra.mxu0 %v269
        %593 = vmatprep.subr.mxu0 %v274
        %594 = vmatpush1.msra.mxu0 %v273
        %595 = vmatprep.subr.mxu0 %v278
        %596 = vmatpush1.msra.mxu0 %v277
        %597 = vmatprep.subr.mxu0 %v282
        %598 = vmatpush1.msra.mxu0 %v281
        %599 = vmatprep.subr.mxu0 %v286
        %600 = vmatpush1.msra.mxu0 %v285
        %601 = vmatprep.subr.mxu0 %v290
        %602 = vmatpush1.msra.mxu0 %v289
        %603 = vmatprep.subr.mxu0 %v294
        %604 = vmatpush1.msra.mxu0 %v293
        %605 = vmatprep.subr.mxu0 0.0
        %606 = vmatpush1.msra.mxu0 0.0
        %607 = vmatprep.subr.mxu0 0.0
        %608 = vmatpush1.msra.mxu0 0.0
        %609 = vmatprep.subr.mxu0 0.0
        %610 = vmatpush1.msra.mxu0 0.0
        %611 = vmatprep.subr.mxu0 0.0
        %612 = vmatpush1.msra.mxu0 0.0
        %613 = vmatprep.subr.mxu0 0.0
        %614 = vmatpush1.msra.mxu0 0.0
        %615 = vmatprep.subr.mxu0 0.0
        %616 = vmatpush1.msra.mxu0 0.0
        %617 = vmatprep.subr.mxu0 0.0
        %618 = vmatpush1.msra.mxu0 0.0
        %619 = vmatprep.subr.mxu0 0.0
        %620 = vmatpush1.msra.mxu0 0.0
        %621 = vmatprep.subr.mxu0 0.0
        %622 = vmatpush1.msra.mxu0 0.0
        %623 = vmatprep.subr.mxu0 0.0
        %624 = vmatpush1.msra.mxu0 0.0
        %625 = vmatprep.subr.mxu0 0.0
        %626 = vmatpush1.msra.mxu0 0.0
        %627 = vmatprep.subr.mxu0 0.0
        %628 = vmatpush1.msra.mxu0 0.0
        %629 = vmatprep.subr.mxu0 0.0
        %630 = vmatpush1.msra.mxu0 0.0
        %631 = vmatprep.subr.mxu0 0.0
        %632 = vmatpush1.msra.mxu0 0.0
        %633 = vmatprep.subr.mxu0 0.0
        %634 = vmatpush1.msra.mxu0 0.0
        %635 = vmatprep.subr.mxu0 0.0
        %636 = vmatpush1.msra.mxu0 0.0
        %637 = vmatprep.subr.mxu0 0.0
        %638 = vmatpush1.msra.mxu0 0.0
        %639 = vmatprep.subr.mxu0 0.0
        %640 = vmatpush1.msra.mxu0 0.0
        %641 = vmatprep.subr.mxu0 0.0
        %642 = vmatpush1.msra.mxu0 0.0
        %643 = vmatprep.subr.mxu0 0.0
        %644 = vmatpush1.msra.mxu0 0.0
        %645 = vmatprep.subr.mxu0 0.0
        %646 = vmatpush1.msra.mxu0 0.0
        %647 = vmatprep.subr.mxu0 0.0
        %648 = vmatpush1.msra.mxu0 0.0
        %649 = vmatprep.subr.mxu0 0.0
        %650 = vmatpush1.msra.mxu0 0.0
        %651 = vmatprep.mubr.f32.mxu0 0.0
        %652 = vmatmul.mubr.f32.gmra.mrb[0].mxu0 %v514
        %v653 = vpop.f32.mrb[0].mxu0
        %v654 = vadd.f32 %v509, %v653
        %v655 = vpop.f32.mrb[0].mxu0
        %v656 = vadd.f32 %v511, %v655
        %657 = vdwg.mxu0
        %v659 = vsel %vm367, %v256, 0
        %661 = vmatprep.subr.mxu0 %v332
        %662 = vmatpush1.msra.mxu0 %v331
        %663 = vmatprep.subr.mxu0 %v336
        %664 = vmatpush1.msra.mxu0 %v335
        %665 = vmatprep.subr.mxu0 %v340
        %666 = vmatpush1.msra.mxu0 %v339
        %667 = vmatprep.subr.mxu0 %v344
        %668 = vmatpush1.msra.mxu0 %v343
        %669 = vmatprep.subr.mxu0 %v348
        %670 = vmatpush1.msra.mxu0 %v347
        %671 = vmatprep.subr.mxu0 %v352
        %672 = vmatpush1.msra.mxu0 %v351
        %673 = vmatprep.subr.mxu0 %v356
        %674 = vmatpush1.msra.mxu0 %v355
        %675 = vmatprep.subr.mxu0 %v360
        %676 = vmatpush1.msra.mxu0 %v359
        %677 = vmatprep.subr.mxu0 %v364
        %678 = vmatpush1.msra.mxu0 %v363
        %679 = vmatprep.subr.mxu0 0.0
        %680 = vmatpush1.msra.mxu0 0.0
        %681 = vmatprep.subr.mxu0 0.0
        %682 = vmatpush1.msra.mxu0 0.0
        %683 = vmatprep.subr.mxu0 0.0
        %684 = vmatpush1.msra.mxu0 0.0
        %685 = vmatprep.subr.mxu0 0.0
        %686 = vmatpush1.msra.mxu0 0.0
        %687 = vmatprep.subr.mxu0 0.0
        %688 = vmatpush1.msra.mxu0 0.0
        %689 = vmatprep.subr.mxu0 0.0
        %690 = vmatpush1.msra.mxu0 0.0
        %691 = vmatprep.subr.mxu0 0.0
        %692 = vmatpush1.msra.mxu0 0.0
        %693 = vmatprep.subr.mxu0 0.0
        %694 = vmatpush1.msra.mxu0 0.0
        %695 = vmatprep.subr.mxu0 0.0
        %696 = vmatpush1.msra.mxu0 0.0
        %697 = vmatprep.subr.mxu0 0.0
        %698 = vmatpush1.msra.mxu0 0.0
        %699 = vmatprep.subr.mxu0 0.0
        %700 = vmatpush1.msra.mxu0 0.0
        %701 = vmatprep.subr.mxu0 0.0
        %702 = vmatpush1.msra.mxu0 0.0
        %703 = vmatprep.subr.mxu0 0.0
        %704 = vmatpush1.msra.mxu0 0.0
        %705 = vmatprep.subr.mxu0 0.0
        %706 = vmatpush1.msra.mxu0 0.0
        %707 = vmatprep.subr.mxu0 0.0
        %708 = vmatpush1.msra.mxu0 0.0
        %709 = vmatprep.subr.mxu0 0.0
        %710 = vmatpush1.msra.mxu0 0.0
        %711 = vmatprep.subr.mxu0 0.0
        %712 = vmatpush1.msra.mxu0 0.0
        %713 = vmatprep.subr.mxu0 0.0
        %714 = vmatpush1.msra.mxu0 0.0
        %715 = vmatprep.subr.mxu0 0.0
        %716 = vmatpush1.msra.mxu0 0.0
        %717 = vmatprep.subr.mxu0 0.0
        %718 = vmatpush1.msra.mxu0 0.0
        %719 = vmatprep.subr.mxu0 0.0
        %720 = vmatpush1.msra.mxu0 0.0
        %721 = vmatprep.subr.mxu0 0.0
        %722 = vmatpush1.msra.mxu0 0.0
        %723 = vmatprep.subr.mxu0 0.0
        %724 = vmatpush1.msra.mxu0 0.0
        %725 = vmatprep.mubr.f32.mxu0 0.0
        %726 = vmatmul.mubr.f32.gmra.mrb[0].mxu0 %v659
        %v727 = vpop.f32.mrb[0].mxu0
        %v728 = vadd.f32 0.0, %v727
        %v729 = vpop.f32.mrb[0].mxu0
        %v730 = vadd.f32 0.0, %v729
        %731 = vdwg.mxu0
        %732 = vmatprep.subr.mxu0 %v334
        %733 = vmatpush1.msra.mxu0 %v333
        %734 = vmatprep.subr.mxu0 %v338
        %735 = vmatpush1.msra.mxu0 %v337
        %736 = vmatprep.subr.mxu0 %v342
        %737 = vmatpush1.msra.mxu0 %v341
        %738 = vmatprep.subr.mxu0 %v346
        %739 = vmatpush1.msra.mxu0 %v345
        %740 = vmatprep.subr.mxu0 %v350
        %741 = vmatpush1.msra.mxu0 %v349
        %742 = vmatprep.subr.mxu0 %v354
        %743 = vmatpush1.msra.mxu0 %v353
        %744 = vmatprep.subr.mxu0 %v358
        %745 = vmatpush1.msra.mxu0 %v357
        %746 = vmatprep.subr.mxu0 %v362
        %747 = vmatpush1.msra.mxu0 %v361
        %748 = vmatprep.subr.mxu0 %v366
        %749 = vmatpush1.msra.mxu0 %v365
        %750 = vmatprep.subr.mxu0 0.0
        %751 = vmatpush1.msra.mxu0 0.0
        %752 = vmatprep.subr.mxu0 0.0
        %753 = vmatpush1.msra.mxu0 0.0
        %754 = vmatprep.subr.mxu0 0.0
        %755 = vmatpush1.msra.mxu0 0.0
        %756 = vmatprep.subr.mxu0 0.0
        %757 = vmatpush1.msra.mxu0 0.0
        %758 = vmatprep.subr.mxu0 0.0
        %759 = vmatpush1.msra.mxu0 0.0
        %760 = vmatprep.subr.mxu0 0.0
        %761 = vmatpush1.msra.mxu0 0.0
        %762 = vmatprep.subr.mxu0 0.0
        %763 = vmatpush1.msra.mxu0 0.0
        %764 = vmatprep.subr.mxu0 0.0
        %765 = vmatpush1.msra.mxu0 0.0
        %766 = vmatprep.subr.mxu0 0.0
        %767 = vmatpush1.msra.mxu0 0.0
        %768 = vmatprep.subr.mxu0 0.0
        %769 = vmatpush1.msra.mxu0 0.0
        %770 = vmatprep.subr.mxu0 0.0
        %771 = vmatpush1.msra.mxu0 0.0
        %772 = vmatprep.subr.mxu0 0.0
        %773 = vmatpush1.msra.mxu0 0.0
        %774 = vmatprep.subr.mxu0 0.0
        %775 = vmatpush1.msra.mxu0 0.0
        %776 = vmatprep.subr.mxu0 0.0
        %777 = vmatpush1.msra.mxu0 0.0
        %778 = vmatprep.subr.mxu0 0.0
        %779 = vmatpush1.msra.mxu0 0.0
        %780 = vmatprep.subr.mxu0 0.0
        %781 = vmatpush1.msra.mxu0 0.0
        %782 = vmatprep.subr.mxu0 0.0
        %783 = vmatpush1.msra.mxu0 0.0
        %784 = vmatprep.subr.mxu0 0.0
        %785 = vmatpush1.msra.mxu0 0.0
        %786 = vmatprep.subr.mxu0 0.0
        %787 = vmatpush1.msra.mxu0 0.0
        %788 = vmatprep.subr.mxu0 0.0
        %789 = vmatpush1.msra.mxu0 0.0
        %790 = vmatprep.subr.mxu0 0.0
        %791 = vmatpush1.msra.mxu0 0.0
        %792 = vmatprep.subr.mxu0 0.0
        %793 = vmatpush1.msra.mxu0 0.0
        %794 = vmatprep.subr.mxu0 0.0
        %795 = vmatpush1.msra.mxu0 0.0
        %796 = vmatprep.mubr.f32.mxu0 0.0
        %797 = vmatmul.mubr.f32.gmra.mrb[0].mxu0 %v659
        %v798 = vpop.f32.mrb[0].mxu0
        %v799 = vadd.f32 0.0, %v798
        %v800 = vpop.f32.mrb[0].mxu0
        %v801 = vadd.f32 0.0, %v800
        %802 = vdwg.mxu0
        %v803 = vadd.f32 %v583, %v728
        %v804 = vadd.f32 %v585, %v730
        %v805 = vadd.f32 %v654, %v799
        %v806 = vadd.f32 %v656, %v801
        %807 = vmatprep.subr.mxu0 %v296
        %808 = vmatpush1.msra.mxu0 %v295
        %809 = vmatprep.subr.mxu0 %v300
        %810 = vmatpush1.msra.mxu0 %v299
        %811 = vmatprep.subr.mxu0 %v304
        %812 = vmatpush1.msra.mxu0 %v303
        %813 = vmatprep.subr.mxu0 %v308
        %814 = vmatpush1.msra.mxu0 %v307
        %815 = vmatprep.subr.mxu0 %v312
        %816 = vmatpush1.msra.mxu0 %v311
        %817 = vmatprep.subr.mxu0 %v316
        %818 = vmatpush1.msra.mxu0 %v315
        %819 = vmatprep.subr.mxu0 %v320
        %820 = vmatpush1.msra.mxu0 %v319
        %821 = vmatprep.subr.mxu0 %v324
        %822 = vmatpush1.msra.mxu0 %v323
        %823 = vmatprep.subr.mxu0 %v328
        %824 = vmatpush1.msra.mxu0 %v327
        %825 = vmatprep.subr.mxu0 0.0
        %826 = vmatpush1.msra.mxu0 0.0
        %827 = vmatprep.subr.mxu0 0.0
        %828 = vmatpush1.msra.mxu0 0.0
        %829 = vmatprep.subr.mxu0 0.0
        %830 = vmatpush1.msra.mxu0 0.0
        %831 = vmatprep.subr.mxu0 0.0
        %832 = vmatpush1.msra.mxu0 0.0
        %833 = vmatprep.subr.mxu0 0.0
        %834 = vmatpush1.msra.mxu0 0.0
        %835 = vmatprep.subr.mxu0 0.0
        %836 = vmatpush1.msra.mxu0 0.0
        %837 = vmatprep.subr.mxu0 0.0
        %838 = vmatpush1.msra.mxu0 0.0
        %839 = vmatprep.subr.mxu0 0.0
        %840 = vmatpush1.msra.mxu0 0.0
        %841 = vmatprep.subr.mxu0 0.0
        %842 = vmatpush1.msra.mxu0 0.0
        %843 = vmatprep.subr.mxu0 0.0
        %844 = vmatpush1.msra.mxu0 0.0
        %845 = vmatprep.subr.mxu0 0.0
        %846 = vmatpush1.msra.mxu0 0.0
        %847 = vmatprep.subr.mxu0 0.0
        %848 = vmatpush1.msra.mxu0 0.0
        %849 = vmatprep.subr.mxu0 0.0
        %850 = vmatpush1.msra.mxu0 0.0
        %851 = vmatprep.subr.mxu0 0.0
        %852 = vmatpush1.msra.mxu0 0.0
        %853 = vmatprep.subr.mxu0 0.0
        %854 = vmatpush1.msra.mxu0 0.0
        %855 = vmatprep.subr.mxu0 0.0
        %856 = vmatpush1.msra.mxu0 0.0
        %857 = vmatprep.subr.mxu0 0.0
        %858 = vmatpush1.msra.mxu0 0.0
        %859 = vmatprep.subr.mxu0 0.0
        %860 = vmatpush1.msra.mxu0 0.0
        %861 = vmatprep.subr.mxu0 0.0
        %862 = vmatpush1.msra.mxu0 0.0
        %863 = vmatprep.subr.mxu0 0.0
        %864 = vmatpush1.msra.mxu0 0.0
        %865 = vmatprep.subr.mxu0 0.0
        %866 = vmatpush1.msra.mxu0 0.0
        %867 = vmatprep.subr.mxu0 0.0
        %868 = vmatpush1.msra.mxu0 0.0
        %869 = vmatprep.subr.mxu0 0.0
        %870 = vmatpush1.msra.mxu0 0.0
        %871 = vmatprep.mubr.f32.mxu0 0.0
        %872 = vmatmul.mubr.f32.gmra.mrb[0].mxu0 %v659
        %v873 = vpop.f32.mrb[0].mxu0
        %v874 = vadd.f32 0.0, %v873
        %v875 = vpop.f32.mrb[0].mxu0
        %v876 = vadd.f32 0.0, %v875
        %877 = vdwg.mxu0
        %878 = vmatprep.subr.mxu0 %v298
        %879 = vmatpush1.msra.mxu0 %v297
        %880 = vmatprep.subr.mxu0 %v302
        %881 = vmatpush1.msra.mxu0 %v301
        %882 = vmatprep.subr.mxu0 %v306
        %883 = vmatpush1.msra.mxu0 %v305
        %884 = vmatprep.subr.mxu0 %v310
        %885 = vmatpush1.msra.mxu0 %v309
        %886 = vmatprep.subr.mxu0 %v314
        %887 = vmatpush1.msra.mxu0 %v313
        %888 = vmatprep.subr.mxu0 %v318
        %889 = vmatpush1.msra.mxu0 %v317
        %890 = vmatprep.subr.mxu0 %v322
        %891 = vmatpush1.msra.mxu0 %v321
        %892 = vmatprep.subr.mxu0 %v326
        %893 = vmatpush1.msra.mxu0 %v325
        %894 = vmatprep.subr.mxu0 %v330
        %895 = vmatpush1.msra.mxu0 %v329
        %896 = vmatprep.subr.mxu0 0.0
        %897 = vmatpush1.msra.mxu0 0.0
        %898 = vmatprep.subr.mxu0 0.0
        %899 = vmatpush1.msra.mxu0 0.0
        %900 = vmatprep.subr.mxu0 0.0
        %901 = vmatpush1.msra.mxu0 0.0
        %902 = vmatprep.subr.mxu0 0.0
        %903 = vmatpush1.msra.mxu0 0.0
        %904 = vmatprep.subr.mxu0 0.0
        %905 = vmatpush1.msra.mxu0 0.0
        %906 = vmatprep.subr.mxu0 0.0
        %907 = vmatpush1.msra.mxu0 0.0
        %908 = vmatprep.subr.mxu0 0.0
        %909 = vmatpush1.msra.mxu0 0.0
        %910 = vmatprep.subr.mxu0 0.0
        %911 = vmatpush1.msra.mxu0 0.0
        %912 = vmatprep.subr.mxu0 0.0
        %913 = vmatpush1.msra.mxu0 0.0
        %914 = vmatprep.subr.mxu0 0.0
        %915 = vmatpush1.msra.mxu0 0.0
        %916 = vmatprep.subr.mxu0 0.0
        %917 = vmatpush1.msra.mxu0 0.0
        %918 = vmatprep.subr.mxu0 0.0
        %919 = vmatpush1.msra.mxu0 0.0
        %920 = vmatprep.subr.mxu0 0.0
        %921 = vmatpush1.msra.mxu0 0.0
        %922 = vmatprep.subr.mxu0 0.0
        %923 = vmatpush1.msra.mxu0 0.0
        %924 = vmatprep.subr.mxu0 0.0
        %925 = vmatpush1.msra.mxu0 0.0
        %926 = vmatprep.subr.mxu0 0.0
        %927 = vmatpush1.msra.mxu0 0.0
        %928 = vmatprep.subr.mxu0 0.0
        %929 = vmatpush1.msra.mxu0 0.0
        %930 = vmatprep.subr.mxu0 0.0
        %931 = vmatpush1.msra.mxu0 0.0
        %932 = vmatprep.subr.mxu0 0.0
        %933 = vmatpush1.msra.mxu0 0.0
        %934 = vmatprep.subr.mxu0 0.0
        %935 = vmatpush1.msra.mxu0 0.0
        %936 = vmatprep.subr.mxu0 0.0
        %937 = vmatpush1.msra.mxu0 0.0
        %938 = vmatprep.subr.mxu0 0.0
        %939 = vmatpush1.msra.mxu0 0.0
        %940 = vmatprep.subr.mxu0 0.0
        %941 = vmatpush1.msra.mxu0 0.0
        %942 = vmatprep.mubr.f32.mxu0 0.0
        %943 = vmatmul.mubr.f32.gmra.mrb[0].mxu0 %v659
        %v944 = vpop.f32.mrb[0].mxu0
        %v945 = vadd.f32 0.0, %v944
        %v946 = vpop.f32.mrb[0].mxu0
        %v947 = vadd.f32 0.0, %v946
        %948 = vdwg.mxu0
        %949 = vmatprep.subr.mxu0 %v260
        %950 = vmatpush1.msra.mxu0 %v259
        %951 = vmatprep.subr.mxu0 %v264
        %952 = vmatpush1.msra.mxu0 %v263
        %953 = vmatprep.subr.mxu0 %v268
        %954 = vmatpush1.msra.mxu0 %v267
        %955 = vmatprep.subr.mxu0 %v272
        %956 = vmatpush1.msra.mxu0 %v271
        %957 = vmatprep.subr.mxu0 %v276
        %958 = vmatpush1.msra.mxu0 %v275
        %959 = vmatprep.subr.mxu0 %v280
        %960 = vmatpush1.msra.mxu0 %v279
        %961 = vmatprep.subr.mxu0 %v284
        %962 = vmatpush1.msra.mxu0 %v283
        %963 = vmatprep.subr.mxu0 %v288
        %964 = vmatpush1.msra.mxu0 %v287
        %965 = vmatprep.subr.mxu0 %v292
        %966 = vmatpush1.msra.mxu0 %v291
        %967 = vmatprep.subr.mxu0 0.0
        %968 = vmatpush1.msra.mxu0 0.0
        %969 = vmatprep.subr.mxu0 0.0
        %970 = vmatpush1.msra.mxu0 0.0
        %971 = vmatprep.subr.mxu0 0.0
        %972 = vmatpush1.msra.mxu0 0.0
        %973 = vmatprep.subr.mxu0 0.0
        %974 = vmatpush1.msra.mxu0 0.0
        %975 = vmatprep.subr.mxu0 0.0
        %976 = vmatpush1.msra.mxu0 0.0
        %977 = vmatprep.subr.mxu0 0.0
        %978 = vmatpush1.msra.mxu0 0.0
        %979 = vmatprep.subr.mxu0 0.0
        %980 = vmatpush1.msra.mxu0 0.0
        %981 = vmatprep.subr.mxu0 0.0
        %982 = vmatpush1.msra.mxu0 0.0
        %983 = vmatprep.subr.mxu0 0.0
        %984 = vmatpush1.msra.mxu0 0.0
        %985 = vmatprep.subr.mxu0 0.0
        %986 = vmatpush1.msra.mxu0 0.0
        %987 = vmatprep.subr.mxu0 0.0
        %988 = vmatpush1.msra.mxu0 0.0
        %989 = vmatprep.subr.mxu0 0.0
        %990 = vmatpush1.msra.mxu0 0.0
        %991 = vmatprep.subr.mxu0 0.0
        %992 = vmatpush1.msra.mxu0 0.0
        %993 = vmatprep.subr.mxu0 0.0
        %994 = vmatpush1.msra.mxu0 0.0
        %995 = vmatprep.subr.mxu0 0.0
        %996 = vmatpush1.msra.mxu0 0.0
        %997 = vmatprep.subr.mxu0 0.0
        %998 = vmatpush1.msra.mxu0 0.0
        %999 = vmatprep.subr.mxu0 0.0
        %1000 = vmatpush1.msra.mxu0 0.0
        %1001 = vmatprep.subr.mxu0 0.0
        %1002 = vmatpush1.msra.mxu0 0.0
        %1003 = vmatprep.subr.mxu0 0.0
        %1004 = vmatpush1.msra.mxu0 0.0
        %1005 = vmatprep.subr.mxu0 0.0
        %1006 = vmatpush1.msra.mxu0 0.0
        %1007 = vmatprep.subr.mxu0 0.0
        %1008 = vmatpush1.msra.mxu0 0.0
        %1009 = vmatprep.subr.mxu0 0.0
        %1010 = vmatpush1.msra.mxu0 0.0
        %1011 = vmatprep.subr.mxu0 0.0
        %1012 = vmatpush1.msra.mxu0 0.0
        %1013 = vmatprep.mubr.f32.mxu0 0.0
        %1014 = vmatmul.mubr.f32.gmra.mrb[0].mxu0 %v369
        %v1015 = vpop.f32.mrb[0].mxu0
        %v1016 = vadd.f32 %v874, %v1015
        %v1017 = vpop.f32.mrb[0].mxu0
        %v1018 = vadd.f32 %v876, %v1017
        %1019 = vdwg.mxu0
        %1020 = vmatprep.subr.mxu0 %v262
        %1021 = vmatpush1.msra.mxu0 %v261
        %1022 = vmatprep.subr.mxu0 %v266
        %1023 = vmatpush1.msra.mxu0 %v265
        %1024 = vmatprep.subr.mxu0 %v270
        %1025 = vmatpush1.msra.mxu0 %v269
        %1026 = vmatprep.subr.mxu0 %v274
        %1027 = vmatpush1.msra.mxu0 %v273
        %1028 = vmatprep.subr.mxu0 %v278
        %1029 = vmatpush1.msra.mxu0 %v277
        %1030 = vmatprep.subr.mxu0 %v282
        %1031 = vmatpush1.msra.mxu0 %v281
        %1032 = vmatprep.subr.mxu0 %v286
        %1033 = vmatpush1.msra.mxu0 %v285
        %1034 = vmatprep.subr.mxu0 %v290
        %1035 = vmatpush1.msra.mxu0 %v289
        %1036 = vmatprep.subr.mxu0 %v294
        %1037 = vmatpush1.msra.mxu0 %v293
        %1038 = vmatprep.subr.mxu0 0.0
        %1039 = vmatpush1.msra.mxu0 0.0
        %1040 = vmatprep.subr.mxu0 0.0
        %1041 = vmatpush1.msra.mxu0 0.0
        %1042 = vmatprep.subr.mxu0 0.0
        %1043 = vmatpush1.msra.mxu0 0.0
        %1044 = vmatprep.subr.mxu0 0.0
        %1045 = vmatpush1.msra.mxu0 0.0
        %1046 = vmatprep.subr.mxu0 0.0
        %1047 = vmatpush1.msra.mxu0 0.0
        %1048 = vmatprep.subr.mxu0 0.0
        %1049 = vmatpush1.msra.mxu0 0.0
        %1050 = vmatprep.subr.mxu0 0.0
        %1051 = vmatpush1.msra.mxu0 0.0
        %1052 = vmatprep.subr.mxu0 0.0
        %1053 = vmatpush1.msra.mxu0 0.0
        %1054 = vmatprep.subr.mxu0 0.0
        %1055 = vmatpush1.msra.mxu0 0.0
        %1056 = vmatprep.subr.mxu0 0.0
        %1057 = vmatpush1.msra.mxu0 0.0
        %1058 = vmatprep.subr.mxu0 0.0
        %1059 = vmatpush1.msra.mxu0 0.0
        %1060 = vmatprep.subr.mxu0 0.0
        %1061 = vmatpush1.msra.mxu0 0.0
        %1062 = vmatprep.subr.mxu0 0.0
        %1063 = vmatpush1.msra.mxu0 0.0
        %1064 = vmatprep.subr.mxu0 0.0
        %1065 = vmatpush1.msra.mxu0 0.0
        %1066 = vmatprep.subr.mxu0 0.0
        %1067 = vmatpush1.msra.mxu0 0.0
        %1068 = vmatprep.subr.mxu0 0.0
        %1069 = vmatpush1.msra.mxu0 0.0
        %1070 = vmatprep.subr.mxu0 0.0
        %1071 = vmatpush1.msra.mxu0 0.0
        %1072 = vmatprep.subr.mxu0 0.0
        %1073 = vmatpush1.msra.mxu0 0.0
        %1074 = vmatprep.subr.mxu0 0.0
        %1075 = vmatpush1.msra.mxu0 0.0
        %1076 = vmatprep.subr.mxu0 0.0
        %1077 = vmatpush1.msra.mxu0 0.0
        %1078 = vmatprep.subr.mxu0 0.0
        %1079 = vmatpush1.msra.mxu0 0.0
        %1080 = vmatprep.subr.mxu0 0.0
        %1081 = vmatpush1.msra.mxu0 0.0
        %1082 = vmatprep.subr.mxu0 0.0
        %1083 = vmatpush1.msra.mxu0 0.0
        %1084 = vmatprep.mubr.f32.mxu0 0.0
        %1085 = vmatmul.mubr.f32.gmra.mrb[0].mxu0 %v369
        %v1086 = vpop.f32.mrb[0].mxu0
        %v1087 = vadd.f32 %v945, %v1086
        %v1088 = vpop.f32.mrb[0].mxu0
        %v1089 = vadd.f32 %v947, %v1088
        %1090 = vdwg.mxu0
        %v1092 = vsel %vm367, %v258, 0
        %1094 = vmatprep.subr.mxu0 %v332
        %1095 = vmatpush1.msra.mxu0 %v331
        %1096 = vmatprep.subr.mxu0 %v336
        %1097 = vmatpush1.msra.mxu0 %v335
        %1098 = vmatprep.subr.mxu0 %v340
        %1099 = vmatpush1.msra.mxu0 %v339
        %1100 = vmatprep.subr.mxu0 %v344
        %1101 = vmatpush1.msra.mxu0 %v343
        %1102 = vmatprep.subr.mxu0 %v348
        %1103 = vmatpush1.msra.mxu0 %v347
        %1104 = vmatprep.subr.mxu0 %v352
        %1105 = vmatpush1.msra.mxu0 %v351
        %1106 = vmatprep.subr.mxu0 %v356
        %1107 = vmatpush1.msra.mxu0 %v355
        %1108 = vmatprep.subr.mxu0 %v360
        %1109 = vmatpush1.msra.mxu0 %v359
        %1110 = vmatprep.subr.mxu0 %v364
        %1111 = vmatpush1.msra.mxu0 %v363
        %1112 = vmatprep.subr.mxu0 0.0
        %1113 = vmatpush1.msra.mxu0 0.0
        %1114 = vmatprep.subr.mxu0 0.0
        %1115 = vmatpush1.msra.mxu0 0.0
        %1116 = vmatprep.subr.mxu0 0.0
        %1117 = vmatpush1.msra.mxu0 0.0
        %1118 = vmatprep.subr.mxu0 0.0
        %1119 = vmatpush1.msra.mxu0 0.0
        %1120 = vmatprep.subr.mxu0 0.0
        %1121 = vmatpush1.msra.mxu0 0.0
        %1122 = vmatprep.subr.mxu0 0.0
        %1123 = vmatpush1.msra.mxu0 0.0
        %1124 = vmatprep.subr.mxu0 0.0
        %1125 = vmatpush1.msra.mxu0 0.0
        %1126 = vmatprep.subr.mxu0 0.0
        %1127 = vmatpush1.msra.mxu0 0.0
        %1128 = vmatprep.subr.mxu0 0.0
        %1129 = vmatpush1.msra.mxu0 0.0
        %1130 = vmatprep.subr.mxu0 0.0
        %1131 = vmatpush1.msra.mxu0 0.0
        %1132 = vmatprep.subr.mxu0 0.0
        %1133 = vmatpush1.msra.mxu0 0.0
        %1134 = vmatprep.subr.mxu0 0.0
        %1135 = vmatpush1.msra.mxu0 0.0
        %1136 = vmatprep.subr.mxu0 0.0
        %1137 = vmatpush1.msra.mxu0 0.0
        %1138 = vmatprep.subr.mxu0 0.0
        %1139 = vmatpush1.msra.mxu0 0.0
        %1140 = vmatprep.subr.mxu0 0.0
        %1141 = vmatpush1.msra.mxu0 0.0
        %1142 = vmatprep.subr.mxu0 0.0
        %1143 = vmatpush1.msra.mxu0 0.0
        %1144 = vmatprep.subr.mxu0 0.0
        %1145 = vmatpush1.msra.mxu0 0.0
        %1146 = vmatprep.subr.mxu0 0.0
        %1147 = vmatpush1.msra.mxu0 0.0
        %1148 = vmatprep.subr.mxu0 0.0
        %1149 = vmatpush1.msra.mxu0 0.0
        %1150 = vmatprep.subr.mxu0 0.0
        %1151 = vmatpush1.msra.mxu0 0.0
        %1152 = vmatprep.subr.mxu0 0.0
        %1153 = vmatpush1.msra.mxu0 0.0
        %1154 = vmatprep.subr.mxu0 0.0
        %1155 = vmatpush1.msra.mxu0 0.0
        %1156 = vmatprep.subr.mxu0 0.0
        %1157 = vmatpush1.msra.mxu0 0.0
        %1158 = vmatprep.mubr.f32.mxu0 0.0
        %1159 = vmatmul.mubr.f32.gmra.mrb[0].mxu0 %v1092
        %v1160 = vpop.f32.mrb[0].mxu0
        %v1161 = vadd.f32 0.0, %v1160
        %v1162 = vpop.f32.mrb[0].mxu0
        %v1163 = vadd.f32 0.0, %v1162
        %1164 = vdwg.mxu0
        %1165 = vmatprep.subr.mxu0 %v334
        %1166 = vmatpush1.msra.mxu0 %v333
        %1167 = vmatprep.subr.mxu0 %v338
        %1168 = vmatpush1.msra.mxu0 %v337
        %1169 = vmatprep.subr.mxu0 %v342
        %1170 = vmatpush1.msra.mxu0 %v341
        %1171 = vmatprep.subr.mxu0 %v346
        %1172 = vmatpush1.msra.mxu0 %v345
        %1173 = vmatprep.subr.mxu0 %v350
        %1174 = vmatpush1.msra.mxu0 %v349
        %1175 = vmatprep.subr.mxu0 %v354
        %1176 = vmatpush1.msra.mxu0 %v353
        %1177 = vmatprep.subr.mxu0 %v358
        %1178 = vmatpush1.msra.mxu0 %v357
        %1179 = vmatprep.subr.mxu0 %v362
        %1180 = vmatpush1.msra.mxu0 %v361
        %1181 = vmatprep.subr.mxu0 %v366
        %1182 = vmatpush1.msra.mxu0 %v365
        %1183 = vmatprep.subr.mxu0 0.0
        %1184 = vmatpush1.msra.mxu0 0.0
        %1185 = vmatprep.subr.mxu0 0.0
        %1186 = vmatpush1.msra.mxu0 0.0
        %1187 = vmatprep.subr.mxu0 0.0
        %1188 = vmatpush1.msra.mxu0 0.0
        %1189 = vmatprep.subr.mxu0 0.0
        %1190 = vmatpush1.msra.mxu0 0.0
        %1191 = vmatprep.subr.mxu0 0.0
        %1192 = vmatpush1.msra.mxu0 0.0
        %1193 = vmatprep.subr.mxu0 0.0
        %1194 = vmatpush1.msra.mxu0 0.0
        %1195 = vmatprep.subr.mxu0 0.0
        %1196 = vmatpush1.msra.mxu0 0.0
        %1197 = vmatprep.subr.mxu0 0.0
        %1198 = vmatpush1.msra.mxu0 0.0
        %1199 = vmatprep.subr.mxu0 0.0
        %1200 = vmatpush1.msra.mxu0 0.0
        %1201 = vmatprep.subr.mxu0 0.0
        %1202 = vmatpush1.msra.mxu0 0.0
        %1203 = vmatprep.subr.mxu0 0.0
        %1204 = vmatpush1.msra.mxu0 0.0
        %1205 = vmatprep.subr.mxu0 0.0
        %1206 = vmatpush1.msra.mxu0 0.0
        %1207 = vmatprep.subr.mxu0 0.0
        %1208 = vmatpush1.msra.mxu0 0.0
        %1209 = vmatprep.subr.mxu0 0.0
        %1210 = vmatpush1.msra.mxu0 0.0
        %1211 = vmatprep.subr.mxu0 0.0
        %1212 = vmatpush1.msra.mxu0 0.0
        %1213 = vmatprep.subr.mxu0 0.0
        %1214 = vmatpush1.msra.mxu0 0.0
        %1215 = vmatprep.subr.mxu0 0.0
        %1216 = vmatpush1.msra.mxu0 0.0
        %1217 = vmatprep.subr.mxu0 0.0
        %1218 = vmatpush1.msra.mxu0 0.0
        %1219 = vmatprep.subr.mxu0 0.0
        %1220 = vmatpush1.msra.mxu0 0.0
        %1221 = vmatprep.subr.mxu0 0.0
        %1222 = vmatpush1.msra.mxu0 0.0
        %1223 = vmatprep.subr.mxu0 0.0
        %1224 = vmatpush1.msra.mxu0 0.0
        %1225 = vmatprep.subr.mxu0 0.0
        %1226 = vmatpush1.msra.mxu0 0.0
        %1227 = vmatprep.subr.mxu0 0.0
        %1228 = vmatpush1.msra.mxu0 0.0
        %1229 = vmatprep.mubr.f32.mxu0 0.0
        %1230 = vmatmul.mubr.f32.gmra.mrb[0].mxu0 %v1092
        %v1231 = vpop.f32.mrb[0].mxu0
        %v1232 = vadd.f32 0.0, %v1231
        %v1233 = vpop.f32.mrb[0].mxu0
        %v1234 = vadd.f32 0.0, %v1233
        %1235 = vdwg.mxu0
        %v1236 = vadd.f32 %v1016, %v1161
        %v1237 = vadd.f32 %v1018, %v1163
        %v1238 = vadd.f32 %v1087, %v1232
        %v1239 = vadd.f32 %v1089, %v1234
        %v1240 = vmax.f32 %v803, %v1236
        %v1241 = vmax.f32 %v804, %v1237
        %v1242 = vmax.f32 %v805, %v1238
        %v1243 = vmax.f32 %v806, %v1239
        %v1244 = vmax.f32 %v1240, %v1242
        %v1245 = vmax.f32 %v1241, %v1243
        %v1246 = vld [vmem:[%s4] sm:$0x3]
        %v1248 = vlaneseq
        %v1249 = vshrl.u32 %v1248, 7
        %v1250 = vsub.s32 0, %v1249
        %v1251 = vrot.slane %v1246, %v1250
        %v1252 = vlaneseq
        %v1253 = vshrl.u32 %v1252, 7
        %v1254 = vsub.s32 1, %v1253
        %v1255 = vrot.slane %v1246, %v1254
        %v1258 = vadd.f32 %v1244, %v1251
        %v1259 = vadd.f32 %v1245, %v1255
        %v1260 = vmax.f32 %v1258, 0.0
        %v1261 = vmax.f32 %v1259, 0.0
        %1262 = vst [vmem:[%s254] sm:$0xff] %v1260
        %1263 = vst [vmem:[%s254 + $0x8] sm:$0xff] %v1261
        %p1264 = scmp.lt.s32.totalorder %s18, 1
        %s1265 = scalar_select %p1264, %s18, 1
        %s1266 = smul.addr %s1265, 2
        %s1267 = smul.addr %s1266, 8
        %s1268 = scalar_lea.vmem %s5, %s1267
        // Predicated region
        $region49: #{image_mlp_forward.3} parent=39 // pred_check
          %p1269 = pneg %p146
        $region50: #{image_mlp_forward.3} parent=39 // pred_check_branch
          %1271 = sbr.rel (%p1269) target = $region52
        $region51: #{image_mlp_forward.3} parent=39 // pred_region
          _
        $region52: #{image_mlp_forward.3} parent=39 // pred_fallthru
          _
      $region40: #{image_mlp_forward.3} parent=5 // pred_fallthru
        _
      %p1272 = scmp.le.s32.totalorder 2, %s13
      // Predicated region
      $region53: #{image_mlp_forward.3} parent=5 // pred_check
        %p1273 = pneg %p1272
      $region54: #{image_mlp_forward.3} parent=5 // pred_check_branch
        %1275 = sbr.rel (%p1273) target = $region56
      $region55: #{image_mlp_forward.3} parent=5 // pred_region
        %s1276 = ssub.s32 %s13, 2
        // Predicated region
        $region57: #{image_mlp_forward.3} parent=55 // pred_check
          %p1277 = pneg %p152
        $region58: #{image_mlp_forward.3} parent=55 // pred_check_branch
          %1279 = sbr.rel (%p1277) target = $region60
        $region59: #{image_mlp_forward.3} parent=55 // pred_region
          %p1280 = scmp.lt.s32.totalorder %s19, 1
          %s1281 = scalar_select %p1280, %s19, 1
          %s1282 = smul.addr %s1281, 2
          %s1283 = smul.addr %s1282, 8
          %s1284 = scalar_lea.vmem %s5, %s1283
        $region60: #{image_mlp_forward.3} parent=55 // pred_fallthru
          _
      $region56: #{image_mlp_forward.3} parent=5 // pred_fallthru
        _
    $region6: #{image_mlp_forward.3} parent=1 // loop_footer
      %s17 = sadd.s32 1, %s13
    $region7: #{image_mlp_forward.3} parent=1 // loop_footer_branch
      %12 = sbr.rel target = $region3
    $region8: #{image_mlp_forward.3} parent=1 // loop_exit
      _
    %1285 = vsyncpa [#allocation3], 1
    %s1286 = scalar_lea.sflag [#allocation3], 1
    %1287 = vsyncpa %s1286, 1
    %1288 = vsyncpa [#allocation5], 1

// kernel: image_mlp_forward.4
$region0: #{image_mlp_forward.4}
  #allocation0 [shape = 'u32[]', space=smem, size = 0x4, offset = 0x4, fixed_abs, tag = 'smem constant byte address 0x4 - core index']
  #allocation1 [shape = 'u32[144,128]{1,0:T(1,128)}', space=vmem, size = 0x12000, scoped, tag = 'internal scratch']
  %s0 = inlined_call_operand.vmem [shape: f32[2,10,320], index: 0, kind: input, shape index: {}]
  %s1 = inlined_call_operand.vmem [shape: f32[320,512], index: 1, kind: input, shape index: {}]
  %s2 = inlined_call_operand.vmem [shape: f32[320,512], index: 2, kind: input, shape index: {}]
  %s3 = inlined_call_operand.vmem [shape: f32[320,512], index: 3, kind: input, shape index: {}]
  %s4 = inlined_call_operand.vmem [shape: f32[1,256], index: 4, kind: input, shape index: {}]
  %s5 = inlined_call_operand.vmem [shape: f32[2,4,256], index: 5, kind: output, shape index: {}]
  %s6 = sld [smem:[#allocation0]]
  $region53: #{image_mlp_forward.4} parent=0
    _
  %s8 = ssub.s32 1, %s6
  %s9 = scalar_select 0, %s8, %s6
  loop: start=0, step=1, limit=4
  $region2: #{image_mlp_forward.4} parent=0 // loop_pre_header
    _
  $region3: #{image_mlp_forward.4} parent=0 // loop_header
    %s11 = sphi 0, %s15
    %p12 = scmp.ge.s32.totalorder %s11, 4
    %s21 = sphi 0, %s23
    %s24 = sphi 0, %s21
    %s25 = sphi 0, %s24
    %s41 = sphi 0, %s25
    %s45 = sphi 0, %s45
    %s47 = sphi 0, %s45
    %s48 = sphi 0, %s47
    %s62 = sphi 0, %s48
    %s66 = sphi 0, %s66
    %s68 = sphi 0, %s66
    %s69 = sphi 0, %s68
    %s83 = sphi 0, %s69
    %s87 = sphi 0, %s87
    %s89 = sphi 0, %s87
    %s90 = sphi 0, %s89
    %s104 = sphi 0, %s90
    %s108 = sphi 0, %s108
    %s110 = sphi 0, %s108
    %s111 = sphi 0, %s110
    %s125 = sphi 0, %s111
    %s131 = sphi 0, %s133
    %s134 = sphi 0, %s131
    %s135 = sphi 0, %s134
    %s151 = sphi 0, %s135
  $region4: #{image_mlp_forward.4} parent=0 // loop_header_branch
    %14 = sbr.rel (%p12) target = $region8
  $region5: #{image_mlp_forward.4} parent=0 // loop_body
    %s16 = ssub.s32 %s11, 1
    %s17 = ssub.s32 %s11, 2
    %s18 = sadd.s32 %s11, 1
    %s19 = ssub.s32 %s11, %s18
    %p20 = scmp.eq.s32.totalorder %s19, 0
    %s22 = sadd.s32 %s21, 1
    %s23 = scalar_select %p20, %s21, %s22
    %p26 = pneg %p20
    %p27 = scmp.eq.s32.totalorder %s11, 1
    %p28 = por %p26, %p27
    %p29 = scmp.ne.s32.totalorder %s21, %s24
    %p30 = scmp.eq.s32.totalorder %s11, 0
    %p31 = por %p29, %p30
    %p32 = scmp.ne.s32.totalorder %s21, %s24
    %p33 = scmp.eq.s32.totalorder %s16, 1
    %p34 = por %p32, %p33
    %p35 = scmp.ne.s32.totalorder %s24, %s25
    %p36 = scmp.eq.s32.totalorder %s16, 0
    %p37 = por %p35, %p36
    %p38 = scmp.ne.s32.totalorder %s24, %s25
    %p39 = scmp.eq.s32.totalorder %s17, 1
    %p40 = por %p38, %p39
    %p42 = scmp.ne.s32.totalorder %s25, %s41
    %p43 = scmp.eq.s32.totalorder %s17, 0
    %p44 = por %p42, %p43
    %s46 = sadd.s32 %s45, 1
    %p49 = scmp.eq.s32.totalorder %s11, 1
    %p50 = scmp.ne.s32.totalorder %s45, %s47
    %p51 = scmp.eq.s32.totalorder %s11, 0
    %p52 = por %p50, %p51
    %p53 = scmp.ne.s32.totalorder %s45, %s47
    %p54 = scmp.eq.s32.totalorder %s16, 1
    %p55 = por %p53, %p54
    %p56 = scmp.ne.s32.totalorder %s47, %s48
    %p57 = scmp.eq.s32.totalorder %s16, 0
    %p58 = por %p56, %p57
    %p59 = scmp.ne.s32.totalorder %s47, %s48
    %p60 = scmp.eq.s32.totalorder %s17, 1
    %p61 = por %p59, %p60
    %p63 = scmp.ne.s32.totalorder %s48, %s62
    %p64 = scmp.eq.s32.totalorder %s17, 0
    %p65 = por %p63, %p64
    %s67 = sadd.s32 %s66, 1
    %p70 = scmp.eq.s32.totalorder %s11, 1
    %p71 = scmp.ne.s32.totalorder %s66, %s68
    %p72 = scmp.eq.s32.totalorder %s11, 0
    %p73 = por %p71, %p72
    %p74 = scmp.ne.s32.totalorder %s66, %s68
    %p75 = scmp.eq.s32.totalorder %s16, 1
    %p76 = por %p74, %p75
    %p77 = scmp.ne.s32.totalorder %s68, %s69
    %p78 = scmp.eq.s32.totalorder %s16, 0
    %p79 = por %p77, %p78
    %p80 = scmp.ne.s32.totalorder %s68, %s69
    %p81 = scmp.eq.s32.totalorder %s17, 1
    %p82 = por %p80, %p81
    %p84 = scmp.ne.s32.totalorder %s69, %s83
    %p85 = scmp.eq.s32.totalorder %s17, 0
    %p86 = por %p84, %p85
    %s88 = sadd.s32 %s87, 1
    %p91 = scmp.eq.s32.totalorder %s11, 1
    %p92 = scmp.ne.s32.totalorder %s87, %s89
    %p93 = scmp.eq.s32.totalorder %s11, 0
    %p94 = por %p92, %p93
    %p95 = scmp.ne.s32.totalorder %s87, %s89
    %p96 = scmp.eq.s32.totalorder %s16, 1
    %p97 = por %p95, %p96
    %p98 = scmp.ne.s32.totalorder %s89, %s90
    %p99 = scmp.eq.s32.totalorder %s16, 0
    %p100 = por %p98, %p99
    %p101 = scmp.ne.s32.totalorder %s89, %s90
    %p102 = scmp.eq.s32.totalorder %s17, 1
    %p103 = por %p101, %p102
    %p105 = scmp.ne.s32.totalorder %s90, %s104
    %p106 = scmp.eq.s32.totalorder %s17, 0
    %p107 = por %p105, %p106
    %s109 = sadd.s32 %s108, 1
    %p112 = scmp.eq.s32.totalorder %s11, 1
    %p113 = scmp.ne.s32.totalorder %s108, %s110
    %p114 = scmp.eq.s32.totalorder %s11, 0
    %p115 = por %p113, %p114
    %p116 = scmp.ne.s32.totalorder %s108, %s110
    %p117 = scmp.eq.s32.totalorder %s16, 1
    %p118 = por %p116, %p117
    %p119 = scmp.ne.s32.totalorder %s110, %s111
    %p120 = scmp.eq.s32.totalorder %s16, 0
    %p121 = por %p119, %p120
    %p122 = scmp.ne.s32.totalorder %s110, %s111
    %p123 = scmp.eq.s32.totalorder %s17, 1
    %p124 = por %p122, %p123
    %p126 = scmp.ne.s32.totalorder %s111, %s125
    %p127 = scmp.eq.s32.totalorder %s17, 0
    %p128 = por %p126, %p127
    %s129 = ssub.s32 %s11, %s18
    %p130 = scmp.eq.s32.totalorder %s129, 0
    %s132 = sadd.s32 %s131, 1
    %s133 = scalar_select %p130, %s131, %s132
    %p136 = pneg %p130
    %p137 = scmp.eq.s32.totalorder %s11, 1
    %p138 = por %p136, %p137
    %p139 = scmp.ne.s32.totalorder %s131, %s134
    %p140 = scmp.eq.s32.totalorder %s11, 0
    %p141 = por %p139, %p140
    %p142 = scmp.ne.s32.totalorder %s131, %s134
    %p143 = scmp.eq.s32.totalorder %s16, 1
    %p144 = por %p142, %p143
    %p145 = scmp.ne.s32.totalorder %s134, %s135
    %p146 = scmp.eq.s32.totalorder %s16, 0
    %p147 = por %p145, %p146
    %p148 = scmp.ne.s32.totalorder %s134, %s135
    %p149 = scmp.eq.s32.totalorder %s17, 1
    %p150 = por %p148, %p149
    %p152 = scmp.ne.s32.totalorder %s135, %s151
    %p153 = scmp.eq.s32.totalorder %s17, 0
    %p154 = por %p152, %p153
    %p155 = scmp.le.s32.totalorder 1, %s11
    %p156 = scmp.lt.s32.totalorder %s11, 3
    %p157 = pnand %p155, %p156
    %p158 = pneg %p157
    // Predicated region
    $region9: #{image_mlp_forward.4} parent=5 // pred_check
      _
    $region10: #{image_mlp_forward.4} parent=5 // pred_check_branch
      %160 = sbr.rel (%p157) target = $region12
    $region11: #{image_mlp_forward.4} parent=5 // pred_region
      %s161 = ssub.s32 %s11, 1
      // Predicated region
      $region13: #{image_mlp_forward.4} parent=11 // pred_check
        %p162 = pneg %p58
      $region14: #{image_mlp_forward.4} parent=11 // pred_check_branch
        %164 = sbr.rel (%p162) target = $region16
      $region15: #{image_mlp_forward.4} parent=11 // pred_region
        _
      $region16: #{image_mlp_forward.4} parent=11 // pred_fallthru
        _
      // Predicated region
      $region17: #{image_mlp_forward.4} parent=11 // pred_check
        %p165 = pneg %p79
      $region18: #{image_mlp_forward.4} parent=11 // pred_check_branch
        %167 = sbr.rel (%p165) target = $region20
      $region19: #{image_mlp_forward.4} parent=11 // pred_region
        _
      $region20: #{image_mlp_forward.4} parent=11 // pred_fallthru
        _
      // Predicated region
      $region21: #{image_mlp_forward.4} parent=11 // pred_check
        %p168 = pneg %p100
      $region22: #{image_mlp_forward.4} parent=11 // pred_check_branch
        %170 = sbr.rel (%p168) target = $region24
      $region23: #{image_mlp_forward.4} parent=11 // pred_region
        _
      $region24: #{image_mlp_forward.4} parent=11 // pred_fallthru
        _
      // Predicated region
      $region25: #{image_mlp_forward.4} parent=11 // pred_check
        %p171 = pneg %p121
      $region26: #{image_mlp_forward.4} parent=11 // pred_check_branch
        %173 = sbr.rel (%p171) target = $region28
      $region27: #{image_mlp_forward.4} parent=11 // pred_region
        _
      $region28: #{image_mlp_forward.4} parent=11 // pred_fallthru
        _
    $region12: #{image_mlp_forward.4} parent=5 // pred_fallthru
      _
    %p174 = scmp.lt.s32.totalorder %s11, 2
    // Predicated region
    $region29: #{image_mlp_forward.4} parent=5 // pred_check
      %p175 = pneg %p174
    $region30: #{image_mlp_forward.4} parent=5 // pred_check_branch
      %177 = sbr.rel (%p175) target = $region32
    $region31: #{image_mlp_forward.4} parent=5 // pred_region
      // Predicated region
      $region33: #{image_mlp_forward.4} parent=31 // pred_check
        %p178 = pneg %p31
      $region34: #{image_mlp_forward.4} parent=31 // pred_check_branch
        %180 = sbr.rel (%p178) target = $region36
      $region35: #{image_mlp_forward.4} parent=31 // pred_region
        %p181 = scmp.lt.s32.totalorder %s11, 1
        %s182 = scalar_select %p181, %s11, 1
        %s183 = smul.addr %s182, 6
        %s184 = smul.addr %s183, 8
        %s185 = scalar_lea.vmem %s0, %s184
      $region36: #{image_mlp_forward.4} parent=31 // pred_fallthru
        _
    $region32: #{image_mlp_forward.4} parent=5 // pred_fallthru
      _
    %p186 = scmp.le.s32.totalorder 1, %s11
    %p187 = scmp.lt.s32.totalorder %s11, 3
    %p188 = pnand %p186, %p187
    %p189 = pneg %p188
    // Predicated region
    $region37: #{image_mlp_forward.4} parent=5 // pred_check
      _
    $region38: #{image_mlp_forward.4} parent=5 // pred_check_branch
      %191 = sbr.rel (%p188) target = $region40
    $region39: #{image_mlp_forward.4} parent=5 // pred_region
      %s192 = ssub.s32 %s11, 1
      %p193 = scmp.lt.s32.totalorder %s16, 1
      %s194 = scalar_select %p193, %s16, 1
      %s195 = smul.addr %s194, 6
      %s196 = smul.addr %s195, 8
      %s197 = scalar_lea.vmem %s0, %s196
      %p198 = pneg %p37
      %p199 = pneg %p34
      %p200 = pneg %p58
      %p201 = pneg %p55
      %p202 = pneg %p79
      %p203 = pneg %p76
      %p204 = pneg %p100
      %p205 = pneg %p97
      %p206 = pneg %p121
      %p207 = pneg %p118
      %p208 = pneg %p147
      %p209 = pneg %p144
      %p210 = scmp.lt.s32.totalorder %s16, 1
      %s211 = scalar_select %p210, %s16, 1
      %s212 = smul.addr %s211, 2
      %s213 = smul.addr %s212, 4
      %s214 = scalar_lea.vmem %s5, %s213
      %p215 = scmp.lt.s32.totalorder %s16, 1
      %s216 = scalar_select %p215, %s16, 1
      %s217 = smul.addr %s216, 6
      %s218 = smul.addr %s217, 8
      %s219 = scalar_lea.vmem %s0, %s218
      %p220 = scmp.lt.s32.totalorder %s16, 1
      %s221 = scalar_select %p220, %s16, 1
      %s222 = smul.addr %s221, 2
      %s223 = smul.addr %s222, 4
      %s224 = scalar_lea.vmem %s5, %s223
      %v225 = vld [vmem:[%s219] sm:$0xf]
      %v226 = vld [vmem:[%s219 + $0x8] sm:$0xf]
      %v227 = vld [vmem:[%s219 + $0x10] sm:$0xf]
      %v228 = vld [vmem:[%s219] sm:$0x1e]
      %v229 = vld [vmem:[%s219 + $0x8] sm:$0x1e]
      %v230 = vld [vmem:[%s219 + $0x10] sm:$0x1e]
      %v231 = vld [vmem:[%s219] sm:$0xe0]
      %v232 = vld [vmem:[%s219 + $0x8] sm:$0xe0]
      %v233 = vld [vmem:[%s219 + $0x10] sm:$0xe0]
      %v234 = vld [vmem:[%s219 + $0x18] sm:$0x1]
      %v235 = vld [vmem:[%s219 + $0x20] sm:$0x1]
      %v236 = vld [vmem:[%s219 + $0x28] sm:$0x1]
      %v237 = vld [vmem:[%s219] sm:$0xc0]
      %v238 = vld [vmem:[%s219 + $0x8] sm:$0xc0]
      %v239 = vld [vmem:[%s219 + $0x10] sm:$0xc0]
      %v240 = vld [vmem:[%s219 + $0x18] sm:$0x3]
      %v241 = vld [vmem:[%s219 + $0x20] sm:$0x3]
      %v242 = vld [vmem:[%s219 + $0x28] sm:$0x3]
      %v243 = vld [vmem:[%s1] sm:$0xff]
      %v244 = vld [vmem:[%s1 + $0x8] sm:$0xff]
      %v245 = vld [vmem:[%s1 + $0x10] sm:$0xff]
      %v246 = vld [vmem:[%s1 + $0x18] sm:$0xff]
      %v247 = vld [vmem:[%s1 + $0x20] sm:$0xff]
      %v248 = vld [vmem:[%s1 + $0x28] sm:$0xff]
      %v249 = vld [vmem:[%s1 + $0x30] sm:$0xff]
      %v250 = vld [vmem:[%s1 + $0x38] sm:$0xff]
      %v251 = vld [vmem:[%s1 + $0x40] sm:$0xff]
      %v252 = vld [vmem:[%s1 + $0x48] sm:$0xff]
      %v253 = vld [vmem:[%s1 + $0x50] sm:$0xff]
      %v254 = vld [vmem:[%s1 + $0x58] sm:$0xff]
      %v255 = vld [vmem:[%s1 + $0x60] sm:$0xff]
      %v256 = vld [vmem:[%s1 + $0x68] sm:$0xff]
      %v257 = vld [vmem:[%s1 + $0x70] sm:$0xff]
      %v258 = vld [vmem:[%s1 + $0x78] sm:$0xff]
      %v259 = vld [vmem:[%s1 + $0x80] sm:$0xff]
      %v260 = vld [vmem:[%s1 + $0x88] sm:$0xff]
      %v261 = vld [vmem:[%s1 + $0x90] sm:$0xff]
      %v262 = vld [vmem:[%s1 + $0x98] sm:$0xff]
      %v263 = vld [vmem:[%s1 + $0xa0] sm:$0xff]
      %v264 = vld [vmem:[%s1 + $0xa8] sm:$0xff]
      %v265 = vld [vmem:[%s1 + $0xb0] sm:$0xff]
      %v266 = vld [vmem:[%s1 + $0xb8] sm:$0xff]
      %v267 = vld [vmem:[%s1 + $0xc0] sm:$0xff]
      %v268 = vld [vmem:[%s1 + $0xc8] sm:$0xff]
      %v269 = vld [vmem:[%s1 + $0xd0] sm:$0xff]
      %v270 = vld [vmem:[%s1 + $0xd8] sm:$0xff]
      %v271 = vld [vmem:[%s1 + $0xe0] sm:$0xff]
      %v272 = vld [vmem:[%s1 + $0xe8] sm:$0xff]
      %v273 = vld [vmem:[%s1 + $0xf0] sm:$0xff]
      %v274 = vld [vmem:[%s1 + $0xf8] sm:$0xff]
      %v275 = vld [vmem:[%s1 + $0x100] sm:$0xff]
      %v276 = vld [vmem:[%s1 + $0x108] sm:$0xff]
      %v277 = vld [vmem:[%s1 + $0x110] sm:$0xff]
      %v278 = vld [vmem:[%s1 + $0x118] sm:$0xff]
      %v279 = vld [vmem:[%s1 + $0x120] sm:$0xff]
      %v280 = vld [vmem:[%s1 + $0x128] sm:$0xff]
      %v281 = vld [vmem:[%s1 + $0x130] sm:$0xff]
      %v282 = vld [vmem:[%s1 + $0x138] sm:$0xff]
      %v283 = vld [vmem:[%s1 + $0x140] sm:$0xff]
      %v284 = vld [vmem:[%s1 + $0x148] sm:$0xff]
      %v285 = vld [vmem:[%s1 + $0x150] sm:$0xff]
      %v286 = vld [vmem:[%s1 + $0x158] sm:$0xff]
      %v287 = vld [vmem:[%s1 + $0x160] sm:$0xff]
      %v288 = vld [vmem:[%s1 + $0x168] sm:$0xff]
      %v289 = vld [vmem:[%s1 + $0x170] sm:$0xff]
      %v290 = vld [vmem:[%s1 + $0x178] sm:$0xff]
      %v291 = vld [vmem:[%s1 + $0x180] sm:$0xff]
      %v292 = vld [vmem:[%s1 + $0x188] sm:$0xff]
      %v293 = vld [vmem:[%s1 + $0x190] sm:$0xff]
      %v294 = vld [vmem:[%s1 + $0x198] sm:$0xff]
      %v295 = vld [vmem:[%s1 + $0x1a0] sm:$0xff]
      %v296 = vld [vmem:[%s1 + $0x1a8] sm:$0xff]
      %v297 = vld [vmem:[%s1 + $0x1b0] sm:$0xff]
      %v298 = vld [vmem:[%s1 + $0x1b8] sm:$0xff]
      %v299 = vld [vmem:[%s1 + $0x1c0] sm:$0xff]
      %v300 = vld [vmem:[%s1 + $0x1c8] sm:$0xff]
      %v301 = vld [vmem:[%s1 + $0x1d0] sm:$0xff]
      %v302 = vld [vmem:[%s1 + $0x1d8] sm:$0xff]
      %v303 = vld [vmem:[%s1 + $0x1e0] sm:$0xff]
      %v304 = vld [vmem:[%s1 + $0x1e8] sm:$0xff]
      %v305 = vld [vmem:[%s1 + $0x1f0] sm:$0xff]
      %v306 = vld [vmem:[%s1 + $0x1f8] sm:$0xff]
      %v307 = vld [vmem:[%s1 + $0x200] sm:$0xff]
      %v308 = vld [vmem:[%s1 + $0x208] sm:$0xff]
      %v309 = vld [vmem:[%s1 + $0x210] sm:$0xff]
      %v310 = vld [vmem:[%s1 + $0x218] sm:$0xff]
      %v311 = vld [vmem:[%s1 + $0x220] sm:$0xff]
      %v312 = vld [vmem:[%s1 + $0x228] sm:$0xff]
      %v313 = vld [vmem:[%s1 + $0x230] sm:$0xff]
      %v314 = vld [vmem:[%s1 + $0x238] sm:$0xff]
      %v315 = vld [vmem:[%s1 + $0x240] sm:$0xff]
      %v316 = vld [vmem:[%s1 + $0x248] sm:$0xff]
      %v317 = vld [vmem:[%s1 + $0x250] sm:$0xff]
      %v318 = vld [vmem:[%s1 + $0x258] sm:$0xff]
      %v319 = vld [vmem:[%s1 + $0x260] sm:$0xff]
      %v320 = vld [vmem:[%s1 + $0x268] sm:$0xff]
      %v321 = vld [vmem:[%s1 + $0x270] sm:$0xff]
      %v322 = vld [vmem:[%s1 + $0x278] sm:$0xff]
      %v323 = vld [vmem:[%s1 + $0x280] sm:$0xff]
      %v324 = vld [vmem:[%s1 + $0x288] sm:$0xff]
      %v325 = vld [vmem:[%s1 + $0x290] sm:$0xff]
      %v326 = vld [vmem:[%s1 + $0x298] sm:$0xff]
      %v327 = vld [vmem:[%s1 + $0x2a0] sm:$0xff]
      %v328 = vld [vmem:[%s1 + $0x2a8] sm:$0xff]
      %v329 = vld [vmem:[%s1 + $0x2b0] sm:$0xff]
      %v330 = vld [vmem:[%s1 + $0x2b8] sm:$0xff]
      %v331 = vld [vmem:[%s1 + $0x2c0] sm:$0xff]
      %v332 = vld [vmem:[%s1 + $0x2c8] sm:$0xff]
      %v333 = vld [vmem:[%s1 + $0x2d0] sm:$0xff]
      %v334 = vld [vmem:[%s1 + $0x2d8] sm:$0xff]
      %v335 = vld [vmem:[%s1 + $0x2e0] sm:$0xff]
      %v336 = vld [vmem:[%s1 + $0x2e8] sm:$0xff]
      %v337 = vld [vmem:[%s1 + $0x2f0] sm:$0xff]
      %v338 = vld [vmem:[%s1 + $0x2f8] sm:$0xff]
      %v339 = vld [vmem:[%s1 + $0x300] sm:$0xff]
      %v340 = vld [vmem:[%s1 + $0x308] sm:$0xff]
      %v341 = vld [vmem:[%s1 + $0x310] sm:$0xff]
      %v342 = vld [vmem:[%s1 + $0x318] sm:$0xff]
      %v343 = vld [vmem:[%s1 + $0x320] sm:$0xff]
      %v344 = vld [vmem:[%s1 + $0x328] sm:$0xff]
      %v345 = vld [vmem:[%s1 + $0x330] sm:$0xff]
      %v346 = vld [vmem:[%s1 + $0x338] sm:$0xff]
      %v347 = vld [vmem:[%s1 + $0x340] sm:$0xff]
      %v348 = vld [vmem:[%s1 + $0x348] sm:$0xff]
      %v349 = vld [vmem:[%s1 + $0x350] sm:$0xff]
      %v350 = vld [vmem:[%s1 + $0x358] sm:$0xff]
      %v351 = vld [vmem:[%s1 + $0x360] sm:$0xff]
      %v352 = vld [vmem:[%s1 + $0x368] sm:$0xff]
      %v353 = vld [vmem:[%s1 + $0x370] sm:$0xff]
      %v354 = vld [vmem:[%s1 + $0x378] sm:$0xff]
      %v355 = vld [vmem:[%s1 + $0x380] sm:$0xff]
      %v356 = vld [vmem:[%s1 + $0x388] sm:$0xff]
      %v357 = vld [vmem:[%s1 + $0x390] sm:$0xff]
      %v358 = vld [vmem:[%s1 + $0x398] sm:$0xff]
      %v359 = vld [vmem:[%s1 + $0x3a0] sm:$0xff]
      %v360 = vld [vmem:[%s1 + $0x3a8] sm:$0xff]
      %v361 = vld [vmem:[%s1 + $0x3b0] sm:$0xff]
      %v362 = vld [vmem:[%s1 + $0x3b8] sm:$0xff]
      %v363 = vld [vmem:[%s1 + $0x3c0] sm:$0xff]
      %v364 = vld [vmem:[%s1 + $0x3c8] sm:$0xff]
      %v365 = vld [vmem:[%s1 + $0x3d0] sm:$0xff]
      %v366 = vld [vmem:[%s1 + $0x3d8] sm:$0xff]
      %v367 = vld [vmem:[%s1 + $0x3e0] sm:$0xff]
      %v368 = vld [vmem:[%s1 + $0x3e8] sm:$0xff]
      %v369 = vld [vmem:[%s1 + $0x3f0] sm:$0xff]
      %v370 = vld [vmem:[%s1 + $0x3f8] sm:$0xff]
      %v371 = vld [vmem:[%s1 + $0x400] sm:$0xff]
      %v372 = vld [vmem:[%s1 + $0x408] sm:$0xff]
      %v373 = vld [vmem:[%s1 + $0x410] sm:$0xff]
      %v374 = vld [vmem:[%s1 + $0x418] sm:$0xff]
      %v375 = vld [vmem:[%s1 + $0x420] sm:$0xff]
      %v376 = vld [vmem:[%s1 + $0x428] sm:$0xff]
      %v377 = vld [vmem:[%s1 + $0x430] sm:$0xff]
      %v378 = vld [vmem:[%s1 + $0x438] sm:$0xff]
      %v379 = vld [vmem:[%s1 + $0x440] sm:$0xff]
      %v380 = vld [vmem:[%s1 + $0x448] sm:$0xff]
      %v381 = vld [vmem:[%s1 + $0x450] sm:$0xff]
      %v382 = vld [vmem:[%s1 + $0x458] sm:$0xff]
      %v383 = vld [vmem:[%s1 + $0x460] sm:$0xff]
      %v384 = vld [vmem:[%s1 + $0x468] sm:$0xff]
      %v385 = vld [vmem:[%s1 + $0x470] sm:$0xff]
      %v386 = vld [vmem:[%s1 + $0x478] sm:$0xff]
      %v387 = vld [vmem:[%s1 + $0x480] sm:$0xff]
      %v388 = vld [vmem:[%s1 + $0x488] sm:$0xff]
      %v389 = vld [vmem:[%s1 + $0x490] sm:$0xff]
      %v390 = vld [vmem:[%s1 + $0x498] sm:$0xff]
      %v391 = vld [vmem:[%s1 + $0x4a0] sm:$0xff]
      %v392 = vld [vmem:[%s1 + $0x4a8] sm:$0xff]
      %v393 = vld [vmem:[%s1 + $0x4b0] sm:$0xff]
      %v394 = vld [vmem:[%s1 + $0x4b8] sm:$0xff]
      %v395 = vld [vmem:[%s1 + $0x4c0] sm:$0xff]
      %v396 = vld [vmem:[%s1 + $0x4c8] sm:$0xff]
      %v397 = vld [vmem:[%s1 + $0x4d0] sm:$0xff]
      %v398 = vld [vmem:[%s1 + $0x4d8] sm:$0xff]
      %v399 = vld [vmem:[%s1 + $0x4e0] sm:$0xff]
      %v400 = vld [vmem:[%s1 + $0x4e8] sm:$0xff]
      %v401 = vld [vmem:[%s1 + $0x4f0] sm:$0xff]
      %v402 = vld [vmem:[%s1 + $0x4f8] sm:$0xff]
      %v403 = vld [vmem:[%s2] sm:$0xff]
      %v404 = vld [vmem:[%s2 + $0x8] sm:$0xff]
      %v405 = vld [vmem:[%s2 + $0x10] sm:$0xff]
      %v406 = vld [vmem:[%s2 + $0x18] sm:$0xff]
      %v407 = vld [vmem:[%s2 + $0x20] sm:$0xff]
      %v408 = vld [vmem:[%s2 + $0x28] sm:$0xff]
      %v409 = vld [vmem:[%s2 + $0x30] sm:$0xff]
      %v410 = vld [vmem:[%s2 + $0x38] sm:$0xff]
      %v411 = vld [vmem:[%s2 + $0x40] sm:$0xff]
      %v412 = vld [vmem:[%s2 + $0x48] sm:$0xff]
      %v413 = vld [vmem:[%s2 + $0x50] sm:$0xff]
      %v414 = vld [vmem:[%s2 + $0x58] sm:$0xff]
      %v415 = vld [vmem:[%s2 + $0x60] sm:$0xff]
      %v416 = vld [vmem:[%s2 + $0x68] sm:$0xff]
      %v417 = vld [vmem:[%s2 + $0x70] sm:$0xff]
      %v418 = vld [vmem:[%s2 + $0x78] sm:$0xff]
      %v419 = vld [vmem:[%s2 + $0x80] sm:$0xff]
      %v420 = vld [vmem:[%s2 + $0x88] sm:$0xff]
      %v421 = vld [vmem:[%s2 + $0x90] sm:$0xff]
      %v422 = vld [vmem:[%s2 + $0x98] sm:$0xff]
      %v423 = vld [vmem:[%s2 + $0xa0] sm:$0xff]
      %v424 = vld [vmem:[%s2 + $0xa8] sm:$0xff]
      %v425 = vld [vmem:[%s2 + $0xb0] sm:$0xff]
      %v426 = vld [vmem:[%s2 + $0xb8] sm:$0xff]
      %v427 = vld [vmem:[%s2 + $0xc0] sm:$0xff]
      %v428 = vld [vmem:[%s2 + $0xc8] sm:$0xff]
      %v429 = vld [vmem:[%s2 + $0xd0] sm:$0xff]
      %v430 = vld [vmem:[%s2 + $0xd8] sm:$0xff]
      %v431 = vld [vmem:[%s2 + $0xe0] sm:$0xff]
      %v432 = vld [vmem:[%s2 + $0xe8] sm:$0xff]
      %v433 = vld [vmem:[%s2 + $0xf0] sm:$0xff]
      %v434 = vld [vmem:[%s2 + $0xf8] sm:$0xff]
      %v435 = vld [vmem:[%s2 + $0x100] sm:$0xff]
      %v436 = vld [vmem:[%s2 + $0x108] sm:$0xff]
      %v437 = vld [vmem:[%s2 + $0x110] sm:$0xff]
      %v438 = vld [vmem:[%s2 + $0x118] sm:$0xff]
      %v439 = vld [vmem:[%s2 + $0x120] sm:$0xff]
      %v440 = vld [vmem:[%s2 + $0x128] sm:$0xff]
      %v441 = vld [vmem:[%s2 + $0x130] sm:$0xff]
      %v442 = vld [vmem:[%s2 + $0x138] sm:$0xff]
      %v443 = vld [vmem:[%s2 + $0x140] sm:$0xff]
      %v444 = vld [vmem:[%s2 + $0x148] sm:$0xff]
      %v445 = vld [vmem:[%s2 + $0x150] sm:$0xff]
      %v446 = vld [vmem:[%s2 + $0x158] sm:$0xff]
      %v447 = vld [vmem:[%s2 + $0x160] sm:$0xff]
      %v448 = vld [vmem:[%s2 + $0x168] sm:$0xff]
      %v449 = vld [vmem:[%s2 + $0x170] sm:$0xff]
      %v450 = vld [vmem:[%s2 + $0x178] sm:$0xff]
      %v451 = vld [vmem:[%s2 + $0x180] sm:$0xff]
      %v452 = vld [vmem:[%s2 + $0x188] sm:$0xff]
      %v453 = vld [vmem:[%s2 + $0x190] sm:$0xff]
      %v454 = vld [vmem:[%s2 + $0x198] sm:$0xff]
      %v455 = vld [vmem:[%s2 + $0x1a0] sm:$0xff]
      %v456 = vld [vmem:[%s2 + $0x1a8] sm:$0xff]
      %v457 = vld [vmem:[%s2 + $0x1b0] sm:$0xff]
      %v458 = vld [vmem:[%s2 + $0x1b8] sm:$0xff]
      %v459 = vld [vmem:[%s2 + $0x1c0] sm:$0xff]
      %v460 = vld [vmem:[%s2 + $0x1c8] sm:$0xff]
      %v461 = vld [vmem:[%s2 + $0x1d0] sm:$0xff]
      %v462 = vld [vmem:[%s2 + $0x1d8] sm:$0xff]
      %v463 = vld [vmem:[%s2 + $0x1e0] sm:$0xff]
      %v464 = vld [vmem:[%s2 + $0x1e8] sm:$0xff]
      %v465 = vld [vmem:[%s2 + $0x1f0] sm:$0xff]
      %v466 = vld [vmem:[%s2 + $0x1f8] sm:$0xff]
      %v467 = vld [vmem:[%s2 + $0x200] sm:$0xff]
      %v468 = vld [vmem:[%s2 + $0x208] sm:$0xff]
      %v469 = vld [vmem:[%s2 + $0x210] sm:$0xff]
      %v470 = vld [vmem:[%s2 + $0x218] sm:$0xff]
      %v471 = vld [vmem:[%s2 + $0x220] sm:$0xff]
      %v472 = vld [vmem:[%s2 + $0x228] sm:$0xff]
      %v473 = vld [vmem:[%s2 + $0x230] sm:$0xff]
      %v474 = vld [vmem:[%s2 + $0x238] sm:$0xff]
      %v475 = vld [vmem:[%s2 + $0x240] sm:$0xff]
      %v476 = vld [vmem:[%s2 + $0x248] sm:$0xff]
      %v477 = vld [vmem:[%s2 + $0x250] sm:$0xff]
      %v478 = vld [vmem:[%s2 + $0x258] sm:$0xff]
      %v479 = vld [vmem:[%s2 + $0x260] sm:$0xff]
      %v480 = vld [vmem:[%s2 + $0x268] sm:$0xff]
      %v481 = vld [vmem:[%s2 + $0x270] sm:$0xff]
      %v482 = vld [vmem:[%s2 + $0x278] sm:$0xff]
      %v483 = vld [vmem:[%s2 + $0x280] sm:$0xff]
      %v484 = vld [vmem:[%s2 + $0x288] sm:$0xff]
      %v485 = vld [vmem:[%s2 + $0x290] sm:$0xff]
      %v486 = vld [vmem:[%s2 + $0x298] sm:$0xff]
      %v487 = vld [vmem:[%s2 + $0x2a0] sm:$0xff]
      %v488 = vld [vmem:[%s2 + $0x2a8] sm:$0xff]
      %v489 = vld [vmem:[%s2 + $0x2b0] sm:$0xff]
      %v490 = vld [vmem:[%s2 + $0x2b8] sm:$0xff]
      %v491 = vld [vmem:[%s2 + $0x2c0] sm:$0xff]
      %v492 = vld [vmem:[%s2 + $0x2c8] sm:$0xff]
      %v493 = vld [vmem:[%s2 + $0x2d0] sm:$0xff]
      %v494 = vld [vmem:[%s2 + $0x2d8] sm:$0xff]
      %v495 = vld [vmem:[%s2 + $0x2e0] sm:$0xff]
      %v496 = vld [vmem:[%s2 + $0x2e8] sm:$0xff]
      %v497 = vld [vmem:[%s2 + $0x2f0] sm:$0xff]
      %v498 = vld [vmem:[%s2 + $0x2f8] sm:$0xff]
      %v499 = vld [vmem:[%s2 + $0x300] sm:$0xff]
      %v500 = vld [vmem:[%s2 + $0x308] sm:$0xff]
      %v501 = vld [vmem:[%s2 + $0x310] sm:$0xff]
      %v502 = vld [vmem:[%s2 + $0x318] sm:$0xff]
      %v503 = vld [vmem:[%s2 + $0x320] sm:$0xff]
      %v504 = vld [vmem:[%s2 + $0x328] sm:$0xff]
      %v505 = vld [vmem:[%s2 + $0x330] sm:$0xff]
      %v506 = vld [vmem:[%s2 + $0x338] sm:$0xff]
      %v507 = vld [vmem:[%s2 + $0x340] sm:$0xff]
      %v508 = vld [vmem:[%s2 + $0x348] sm:$0xff]
      %v509 = vld [vmem:[%s2 + $0x350] sm:$0xff]
      %v510 = vld [vmem:[%s2 + $0x358] sm:$0xff]
      %v511 = vld [vmem:[%s2 + $0x360] sm:$0xff]
      %v512 = vld [vmem:[%s2 + $0x368] sm:$0xff]
      %v513 = vld [vmem:[%s2 + $0x370] sm:$0xff]
      %v514 = vld [vmem:[%s2 + $0x378] sm:$0xff]
      %v515 = vld [vmem:[%s2 + $0x380] sm:$0xff]
      %v516 = vld [vmem:[%s2 + $0x388] sm:$0xff]
      %v517 = vld [vmem:[%s2 + $0x390] sm:$0xff]
      %v518 = vld [vmem:[%s2 + $0x398] sm:$0xff]
      %v519 = vld [vmem:[%s2 + $0x3a0] sm:$0xff]
      %v520 = vld [vmem:[%s2 + $0x3a8] sm:$0xff]
      %v521 = vld [vmem:[%s2 + $0x3b0] sm:$0xff]
      %v522 = vld [vmem:[%s2 + $0x3b8] sm:$0xff]
      %v523 = vld [vmem:[%s2 + $0x3c0] sm:$0xff]
      %v524 = vld [vmem:[%s2 + $0x3c8] sm:$0xff]
      %v525 = vld [vmem:[%s2 + $0x3d0] sm:$0xff]
      %v526 = vld [vmem:[%s2 + $0x3d8] sm:$0xff]
      %v527 = vld [vmem:[%s2 + $0x3e0] sm:$0xff]
      %v528 = vld [vmem:[%s2 + $0x3e8] sm:$0xff]
      %v529 = vld [vmem:[%s2 + $0x3f0] sm:$0xff]
      %v530 = vld [vmem:[%s2 + $0x3f8] sm:$0xff]
      %v531 = vld [vmem:[%s2 + $0x400] sm:$0xff]
      %v532 = vld [vmem:[%s2 + $0x408] sm:$0xff]
      %v533 = vld [vmem:[%s2 + $0x410] sm:$0xff]
      %v534 = vld [vmem:[%s2 + $0x418] sm:$0xff]
      %v535 = vld [vmem:[%s2 + $0x420] sm:$0xff]
      %v536 = vld [vmem:[%s2 + $0x428] sm:$0xff]
      %v537 = vld [vmem:[%s2 + $0x430] sm:$0xff]
      %v538 = vld [vmem:[%s2 + $0x438] sm:$0xff]
      %v539 = vld [vmem:[%s2 + $0x440] sm:$0xff]
      %v540 = vld [vmem:[%s2 + $0x448] sm:$0xff]
      %v541 = vld [vmem:[%s2 + $0x450] sm:$0xff]
      %v542 = vld [vmem:[%s2 + $0x458] sm:$0xff]
      %v543 = vld [vmem:[%s2 + $0x460] sm:$0xff]
      %v544 = vld [vmem:[%s2 + $0x468] sm:$0xff]
      %v545 = vld [vmem:[%s2 + $0x470] sm:$0xff]
      %v546 = vld [vmem:[%s2 + $0x478] sm:$0xff]
      %v547 = vld [vmem:[%s2 + $0x480] sm:$0xff]
      %v548 = vld [vmem:[%s2 + $0x488] sm:$0xff]
      %v549 = vld [vmem:[%s2 + $0x490] sm:$0xff]
      %v550 = vld [vmem:[%s2 + $0x498] sm:$0xff]
      %v551 = vld [vmem:[%s2 + $0x4a0] sm:$0xff]
      %v552 = vld [vmem:[%s2 + $0x4a8] sm:$0xff]
      %v553 = vld [vmem:[%s2 + $0x4b0] sm:$0xff]
      %v554 = vld [vmem:[%s2 + $0x4b8] sm:$0xff]
      %v555 = vld [vmem:[%s2 + $0x4c0] sm:$0xff]
      %v556 = vld [vmem:[%s2 + $0x4c8] sm:$0xff]
      %v557 = vld [vmem:[%s2 + $0x4d0] sm:$0xff]
      %v558 = vld [vmem:[%s2 + $0x4d8] sm:$0xff]
      %v559 = vld [vmem:[%s2 + $0x4e0] sm:$0xff]
      %v560 = vld [vmem:[%s2 + $0x4e8] sm:$0xff]
      %v561 = vld [vmem:[%s2 + $0x4f0] sm:$0xff]
      %v562 = vld [vmem:[%s2 + $0x4f8] sm:$0xff]
      %v563 = vld [vmem:[%s3] sm:$0xff]
      %v564 = vld [vmem:[%s3 + $0x8] sm:$0xff]
      %v565 = vld [vmem:[%s3 + $0x10] sm:$0xff]
      %v566 = vld [vmem:[%s3 + $0x18] sm:$0xff]
      %v567 = vld [vmem:[%s3 + $0x20] sm:$0xff]
      %v568 = vld [vmem:[%s3 + $0x28] sm:$0xff]
      %v569 = vld [vmem:[%s3 + $0x30] sm:$0xff]
      %v570 = vld [vmem:[%s3 + $0x38] sm:$0xff]
      %v571 = vld [vmem:[%s3 + $0x40] sm:$0xff]
      %v572 = vld [vmem:[%s3 + $0x48] sm:$0xff]
      %v573 = vld [vmem:[%s3 + $0x50] sm:$0xff]
      %v574 = vld [vmem:[%s3 + $0x58] sm:$0xff]
      %v575 = vld [vmem:[%s3 + $0x60] sm:$0xff]
      %v576 = vld [vmem:[%s3 + $0x68] sm:$0xff]
      %v577 = vld [vmem:[%s3 + $0x70] sm:$0xff]
      %v578 = vld [vmem:[%s3 + $0x78] sm:$0xff]
      %v579 = vld [vmem:[%s3 + $0x80] sm:$0xff]
      %v580 = vld [vmem:[%s3 + $0x88] sm:$0xff]
      %v581 = vld [vmem:[%s3 + $0x90] sm:$0xff]
      %v582 = vld [vmem:[%s3 + $0x98] sm:$0xff]
      %v583 = vld [vmem:[%s3 + $0xa0] sm:$0xff]
      %v584 = vld [vmem:[%s3 + $0xa8] sm:$0xff]
      %v585 = vld [vmem:[%s3 + $0xb0] sm:$0xff]
      %v586 = vld [vmem:[%s3 + $0xb8] sm:$0xff]
      %v587 = vld [vmem:[%s3 + $0xc0] sm:$0xff]
      %v588 = vld [vmem:[%s3 + $0xc8] sm:$0xff]
      %v589 = vld [vmem:[%s3 + $0xd0] sm:$0xff]
      %v590 = vld [vmem:[%s3 + $0xd8] sm:$0xff]
      %v591 = vld [vmem:[%s3 + $0xe0] sm:$0xff]
      %v592 = vld [vmem:[%s3 + $0xe8] sm:$0xff]
      %v593 = vld [vmem:[%s3 + $0xf0] sm:$0xff]
      %v594 = vld [vmem:[%s3 + $0xf8] sm:$0xff]
      %v595 = vld [vmem:[%s3 + $0x100] sm:$0xff]
      %v596 = vld [vmem:[%s3 + $0x108] sm:$0xff]
      %v597 = vld [vmem:[%s3 + $0x110] sm:$0xff]
      %v598 = vld [vmem:[%s3 + $0x118] sm:$0xff]
      %v599 = vld [vmem:[%s3 + $0x120] sm:$0xff]
      %v600 = vld [vmem:[%s3 + $0x128] sm:$0xff]
      %v601 = vld [vmem:[%s3 + $0x130] sm:$0xff]
      %v602 = vld [vmem:[%s3 + $0x138] sm:$0xff]
      %v603 = vld [vmem:[%s3 + $0x140] sm:$0xff]
      %v604 = vld [vmem:[%s3 + $0x148] sm:$0xff]
      %v605 = vld [vmem:[%s3 + $0x150] sm:$0xff]
      %v606 = vld [vmem:[%s3 + $0x158] sm:$0xff]
      %v607 = vld [vmem:[%s3 + $0x160] sm:$0xff]
      %v608 = vld [vmem:[%s3 + $0x168] sm:$0xff]
      %v609 = vld [vmem:[%s3 + $0x170] sm:$0xff]
      %v610 = vld [vmem:[%s3 + $0x178] sm:$0xff]
      %v611 = vld [vmem:[%s3 + $0x180] sm:$0xff]
      %v612 = vld [vmem:[%s3 + $0x188] sm:$0xff]
      %v613 = vld [vmem:[%s3 + $0x190] sm:$0xff]
      %v614 = vld [vmem:[%s3 + $0x198] sm:$0xff]
      %v615 = vld [vmem:[%s3 + $0x1a0] sm:$0xff]
      %v616 = vld [vmem:[%s3 + $0x1a8] sm:$0xff]
      %v617 = vld [vmem:[%s3 + $0x1b0] sm:$0xff]
      %v618 = vld [vmem:[%s3 + $0x1b8] sm:$0xff]
      %v619 = vld [vmem:[%s3 + $0x1c0] sm:$0xff]
      %v620 = vld [vmem:[%s3 + $0x1c8] sm:$0xff]
      %v621 = vld [vmem:[%s3 + $0x1d0] sm:$0xff]
      %v622 = vld [vmem:[%s3 + $0x1d8] sm:$0xff]
      %v623 = vld [vmem:[%s3 + $0x1e0] sm:$0xff]
      %v624 = vld [vmem:[%s3 + $0x1e8] sm:$0xff]
      %v625 = vld [vmem:[%s3 + $0x1f0] sm:$0xff]
      %v626 = vld [vmem:[%s3 + $0x1f8] sm:$0xff]
      %v627 = vld [vmem:[%s3 + $0x200] sm:$0xff]
      %v628 = vld [vmem:[%s3 + $0x208] sm:$0xff]
      %v629 = vld [vmem:[%s3 + $0x210] sm:$0xff]
      %v630 = vld [vmem:[%s3 + $0x218] sm:$0xff]
      %v631 = vld [vmem:[%s3 + $0x220] sm:$0xff]
      %v632 = vld [vmem:[%s3 + $0x228] sm:$0xff]
      %v633 = vld [vmem:[%s3 + $0x230] sm:$0xff]
      %v634 = vld [vmem:[%s3 + $0x238] sm:$0xff]
      %v635 = vld [vmem:[%s3 + $0x240] sm:$0xff]
      %v636 = vld [vmem:[%s3 + $0x248] sm:$0xff]
      %v637 = vld [vmem:[%s3 + $0x250] sm:$0xff]
      %v638 = vld [vmem:[%s3 + $0x258] sm:$0xff]
      %v639 = vld [vmem:[%s3 + $0x260] sm:$0xff]
      %v640 = vld [vmem:[%s3 + $0x268] sm:$0xff]
      %v641 = vld [vmem:[%s3 + $0x270] sm:$0xff]
      %v642 = vld [vmem:[%s3 + $0x278] sm:$0xff]
      %v643 = vld [vmem:[%s3 + $0x280] sm:$0xff]
      %v644 = vld [vmem:[%s3 + $0x288] sm:$0xff]
      %v645 = vld [vmem:[%s3 + $0x290] sm:$0xff]
      %v646 = vld [vmem:[%s3 + $0x298] sm:$0xff]
      %v647 = vld [vmem:[%s3 + $0x2a0] sm:$0xff]
      %v648 = vld [vmem:[%s3 + $0x2a8] sm:$0xff]
      %v649 = vld [vmem:[%s3 + $0x2b0] sm:$0xff]
      %v650 = vld [vmem:[%s3 + $0x2b8] sm:$0xff]
      %v651 = vld [vmem:[%s3 + $0x2c0] sm:$0xff]
      %v652 = vld [vmem:[%s3 + $0x2c8] sm:$0xff]
      %v653 = vld [vmem:[%s3 + $0x2d0] sm:$0xff]
      %v654 = vld [vmem:[%s3 + $0x2d8] sm:$0xff]
      %v655 = vld [vmem:[%s3 + $0x2e0] sm:$0xff]
      %v656 = vld [vmem:[%s3 + $0x2e8] sm:$0xff]
      %v657 = vld [vmem:[%s3 + $0x2f0] sm:$0xff]
      %v658 = vld [vmem:[%s3 + $0x2f8] sm:$0xff]
      %v659 = vld [vmem:[%s3 + $0x300] sm:$0xff]
      %v660 = vld [vmem:[%s3 + $0x308] sm:$0xff]
      %v661 = vld [vmem:[%s3 + $0x310] sm:$0xff]
      %v662 = vld [vmem:[%s3 + $0x318] sm:$0xff]
      %v663 = vld [vmem:[%s3 + $0x320] sm:$0xff]
      %v664 = vld [vmem:[%s3 + $0x328] sm:$0xff]
      %v665 = vld [vmem:[%s3 + $0x330] sm:$0xff]
      %v666 = vld [vmem:[%s3 + $0x338] sm:$0xff]
      %v667 = vld [vmem:[%s3 + $0x340] sm:$0xff]
      %v668 = vld [vmem:[%s3 + $0x348] sm:$0xff]
      %v669 = vld [vmem:[%s3 + $0x350] sm:$0xff]
      %v670 = vld [vmem:[%s3 + $0x358] sm:$0xff]
      %v671 = vld [vmem:[%s3 + $0x360] sm:$0xff]
      %v672 = vld [vmem:[%s3 + $0x368] sm:$0xff]
      %v673 = vld [vmem:[%s3 + $0x370] sm:$0xff]
      %v674 = vld [vmem:[%s3 + $0x378] sm:$0xff]
      %v675 = vld [vmem:[%s3 + $0x380] sm:$0xff]
      %v676 = vld [vmem:[%s3 + $0x388] sm:$0xff]
      %v677 = vld [vmem:[%s3 + $0x390] sm:$0xff]
      %v678 = vld [vmem:[%s3 + $0x398] sm:$0xff]
      %v679 = vld [vmem:[%s3 + $0x3a0] sm:$0xff]
      %v680 = vld [vmem:[%s3 + $0x3a8] sm:$0xff]
      %v681 = vld [vmem:[%s3 + $0x3b0] sm:$0xff]
      %v682 = vld [vmem:[%s3 + $0x3b8] sm:$0xff]
      %v683 = vld [vmem:[%s3 + $0x3c0] sm:$0xff]
      %v684 = vld [vmem:[%s3 + $0x3c8] sm:$0xff]
      %v685 = vld [vmem:[%s3 + $0x3d0] sm:$0xff]
      %v686 = vld [vmem:[%s3 + $0x3d8] sm:$0xff]
      %v687 = vld [vmem:[%s3 + $0x3e0] sm:$0xff]
      %v688 = vld [vmem:[%s3 + $0x3e8] sm:$0xff]
      %v689 = vld [vmem:[%s3 + $0x3f0] sm:$0xff]
      %v690 = vld [vmem:[%s3 + $0x3f8] sm:$0xff]
      %v691 = vld [vmem:[%s3 + $0x400] sm:$0xff]
      %v692 = vld [vmem:[%s3 + $0x408] sm:$0xff]
      %v693 = vld [vmem:[%s3 + $0x410] sm:$0xff]
      %v694 = vld [vmem:[%s3 + $0x418] sm:$0xff]
      %v695 = vld [vmem:[%s3 + $0x420] sm:$0xff]
      %v696 = vld [vmem:[%s3 + $0x428] sm:$0xff]
      %v697 = vld [vmem:[%s3 + $0x430] sm:$0xff]
      %v698 = vld [vmem:[%s3 + $0x438] sm:$0xff]
      %v699 = vld [vmem:[%s3 + $0x440] sm:$0xff]
      %v700 = vld [vmem:[%s3 + $0x448] sm:$0xff]
      %v701 = vld [vmem:[%s3 + $0x450] sm:$0xff]
      %v702 = vld [vmem:[%s3 + $0x458] sm:$0xff]
      %v703 = vld [vmem:[%s3 + $0x460] sm:$0xff]
      %v704 = vld [vmem:[%s3 + $0x468] sm:$0xff]
      %v705 = vld [vmem:[%s3 + $0x470] sm:$0xff]
      %v706 = vld [vmem:[%s3 + $0x478] sm:$0xff]
      %v707 = vld [vmem:[%s3 + $0x480] sm:$0xff]
      %v708 = vld [vmem:[%s3 + $0x488] sm:$0xff]
      %v709 = vld [vmem:[%s3 + $0x490] sm:$0xff]
      %v710 = vld [vmem:[%s3 + $0x498] sm:$0xff]
      %v711 = vld [vmem:[%s3 + $0x4a0] sm:$0xff]
      %v712 = vld [vmem:[%s3 + $0x4a8] sm:$0xff]
      %v713 = vld [vmem:[%s3 + $0x4b0] sm:$0xff]
      %v714 = vld [vmem:[%s3 + $0x4b8] sm:$0xff]
      %v715 = vld [vmem:[%s3 + $0x4c0] sm:$0xff]
      %v716 = vld [vmem:[%s3 + $0x4c8] sm:$0xff]
      %v717 = vld [vmem:[%s3 + $0x4d0] sm:$0xff]
      %v718 = vld [vmem:[%s3 + $0x4d8] sm:$0xff]
      %v719 = vld [vmem:[%s3 + $0x4e0] sm:$0xff]
      %v720 = vld [vmem:[%s3 + $0x4e8] sm:$0xff]
      %v721 = vld [vmem:[%s3 + $0x4f0] sm:$0xff]
      %v722 = vld [vmem:[%s3 + $0x4f8] sm:$0xff]
      %vm729 = vcmask 1042432
      %v730 = vrot.slane %v231, 5
      %v731 = vrot.slane %v234, 5
      %v732 = vsel %vm729, %v730, %v731
      %v733 = vrot.slane %v232, 5
      %v734 = vrot.slane %v235, 5
      %v735 = vsel %vm729, %v733, %v734
      %v736 = vrot.slane %v233, 5
      %v737 = vrot.slane %v236, 5
      %v738 = vsel %vm729, %v736, %v737
      %vm741 = vcmask 523264
      %v742 = vsel %vm741, %v738, 0
      %744 = vmatprep.subr.mxu0 %v404
      %745 = vmatpush1.msra.mxu0 %v403
      %746 = vmatprep.subr.mxu0 %v408
      %747 = vmatpush1.msra.mxu0 %v407
      %748 = vmatprep.subr.mxu0 %v412
      %749 = vmatpush1.msra.mxu0 %v411
      %750 = vmatprep.subr.mxu0 %v416
      %751 = vmatpush1.msra.mxu0 %v415
      %752 = vmatprep.subr.mxu0 %v420
      %753 = vmatpush1.msra.mxu0 %v419
      %754 = vmatprep.subr.mxu0 %v424
      %755 = vmatpush1.msra.mxu0 %v423
      %756 = vmatprep.subr.mxu0 %v428
      %757 = vmatpush1.msra.mxu0 %v427
      %758 = vmatprep.subr.mxu0 %v432
      %759 = vmatpush1.msra.mxu0 %v431
      %760 = vmatprep.subr.mxu0 %v436
      %761 = vmatpush1.msra.mxu0 %v435
      %762 = vmatprep.subr.mxu0 %v440
      %763 = vmatpush1.msra.mxu0 %v439
      %764 = vmatprep.subr.mxu0 %v444
      %765 = vmatpush1.msra.mxu0 %v443
      %766 = vmatprep.subr.mxu0 %v448
      %767 = vmatpush1.msra.mxu0 %v447
      %768 = vmatprep.subr.mxu0 %v452
      %769 = vmatpush1.msra.mxu0 %v451
      %770 = vmatprep.subr.mxu0 %v456
      %771 = vmatpush1.msra.mxu0 %v455
      %772 = vmatprep.subr.mxu0 %v460
      %773 = vmatpush1.msra.mxu0 %v459
      %774 = vmatprep.subr.mxu0 %v464
      %775 = vmatpush1.msra.mxu0 %v463
      %776 = vmatprep.subr.mxu0 %v468
      %777 = vmatpush1.msra.mxu0 %v467
      %778 = vmatprep.subr.mxu0 %v472
      %779 = vmatpush1.msra.mxu0 %v471
      %780 = vmatprep.subr.mxu0 %v476
      %781 = vmatpush1.msra.mxu0 %v475
      %782 = vmatprep.subr.mxu0 %v480
      %783 = vmatpush1.msra.mxu0 %v479
      %784 = vmatprep.subr.mxu0 %v484
      %785 = vmatpush1.msra.mxu0 %v483
      %786 = vmatprep.subr.mxu0 %v488
      %787 = vmatpush1.msra.mxu0 %v487
      %788 = vmatprep.subr.mxu0 %v492
      %789 = vmatpush1.msra.mxu0 %v491
      %790 = vmatprep.subr.mxu0 %v496
      %791 = vmatpush1.msra.mxu0 %v495
      %792 = vmatprep.subr.mxu0 %v500
      %793 = vmatpush1.msra.mxu0 %v499
      %794 = vmatprep.subr.mxu0 %v504
      %795 = vmatpush1.msra.mxu0 %v503
      %796 = vmatprep.subr.mxu0 %v508
      %797 = vmatpush1.msra.mxu0 %v507
      %798 = vmatprep.subr.mxu0 %v512
      %799 = vmatpush1.msra.mxu0 %v511
      %800 = vmatprep.subr.mxu0 %v516
      %801 = vmatpush1.msra.mxu0 %v515
      %802 = vmatprep.subr.mxu0 %v520
      %803 = vmatpush1.msra.mxu0 %v519
      %804 = vmatprep.subr.mxu0 %v524
      %805 = vmatpush1.msra.mxu0 %v523
      %806 = vmatprep.subr.mxu0 %v528
      %807 = vmatpush1.msra.mxu0 %v527
      %808 = vmatprep.mubr.f32.mxu0 %v735
      %809 = vmatmul.mubr.f32.gmra.mrb[0].mxu0 %v732
      %v810 = vpop.f32.mrb[0].mxu0
      %v811 = vadd.f32 0.0, %v810
      %v812 = vpop.f32.mrb[0].mxu0
      %v813 = vadd.f32 0.0, %v812
      %814 = vdwg.mxu0
      %815 = vmatprep.subr.mxu0 %v532
      %816 = vmatpush1.msra.mxu0 %v531
      %817 = vmatprep.subr.mxu0 %v536
      %818 = vmatpush1.msra.mxu0 %v535
      %819 = vmatprep.subr.mxu0 %v540
      %820 = vmatpush1.msra.mxu0 %v539
      %821 = vmatprep.subr.mxu0 %v544
      %822 = vmatpush1.msra.mxu0 %v543
      %823 = vmatprep.subr.mxu0 %v548
      %824 = vmatpush1.msra.mxu0 %v547
      %825 = vmatprep.subr.mxu0 %v552
      %826 = vmatpush1.msra.mxu0 %v551
      %827 = vmatprep.subr.mxu0 %v556
      %828 = vmatpush1.msra.mxu0 %v555
      %829 = vmatprep.subr.mxu0 %v560
      %830 = vmatpush1.msra.mxu0 %v559
      %831 = vmatprep.subr.mxu0 0.0
      %832 = vmatpush1.msra.mxu0 0.0
      %833 = vmatprep.subr.mxu0 0.0
      %834 = vmatpush1.msra.mxu0 0.0
      %835 = vmatprep.subr.mxu0 0.0
      %836 = vmatpush1.msra.mxu0 0.0
      %837 = vmatprep.subr.mxu0 0.0
      %838 = vmatpush1.msra.mxu0 0.0
      %839 = vmatprep.subr.mxu0 0.0
      %840 = vmatpush1.msra.mxu0 0.0
      %841 = vmatprep.subr.mxu0 0.0
      %842 = vmatpush1.msra.mxu0 0.0
      %843 = vmatprep.subr.mxu0 0.0
      %844 = vmatpush1.msra.mxu0 0.0
      %845 = vmatprep.subr.mxu0 0.0
      %846 = vmatpush1.msra.mxu0 0.0
      %847 = vmatprep.subr.mxu0 0.0
      %848 = vmatpush1.msra.mxu0 0.0
      %849 = vmatprep.subr.mxu0 0.0
      %850 = vmatpush1.msra.mxu0 0.0
      %851 = vmatprep.subr.mxu0 0.0
      %852 = vmatpush1.msra.mxu0 0.0
      %853 = vmatprep.subr.mxu0 0.0
      %854 = vmatpush1.msra.mxu0 0.0
      %855 = vmatprep.subr.mxu0 0.0
      %856 = vmatpush1.msra.mxu0 0.0
      %857 = vmatprep.subr.mxu0 0.0
      %858 = vmatpush1.msra.mxu0 0.0
      %859 = vmatprep.subr.mxu0 0.0
      %860 = vmatpush1.msra.mxu0 0.0
      %861 = vmatprep.subr.mxu0 0.0
      %862 = vmatpush1.msra.mxu0 0.0
      %863 = vmatprep.subr.mxu0 0.0
      %864 = vmatpush1.msra.mxu0 0.0
      %865 = vmatprep.subr.mxu0 0.0
      %866 = vmatpush1.msra.mxu0 0.0
      %867 = vmatprep.subr.mxu0 0.0
      %868 = vmatpush1.msra.mxu0 0.0
      %869 = vmatprep.subr.mxu0 0.0
      %870 = vmatpush1.msra.mxu0 0.0
      %871 = vmatprep.subr.mxu0 0.0
      %872 = vmatpush1.msra.mxu0 0.0
      %873 = vmatprep.subr.mxu0 0.0
      %874 = vmatpush1.msra.mxu0 0.0
      %875 = vmatprep.subr.mxu0 0.0
      %876 = vmatpush1.msra.mxu0 0.0
      %877 = vmatprep.subr.mxu0 0.0
      %878 = vmatpush1.msra.mxu0 0.0
      %879 = vmatprep.mubr.f32.mxu0 0.0
      %880 = vmatmul.mubr.f32.gmra.mrb[0].mxu0 %v742
      %v881 = vpop.f32.mrb[0].mxu0
      %v882 = vadd.f32 %v811, %v881
      %v883 = vpop.f32.mrb[0].mxu0
      %v884 = vadd.f32 %v813, %v883
      %885 = vdwg.mxu0
      %886 = vmatprep.subr.mxu0 %v406
      %887 = vmatpush1.msra.mxu0 %v405
      %888 = vmatprep.subr.mxu0 %v410
      %889 = vmatpush1.msra.mxu0 %v409
      %890 = vmatprep.subr.mxu0 %v414
      %891 = vmatpush1.msra.mxu0 %v413
      %892 = vmatprep.subr.mxu0 %v418
      %893 = vmatpush1.msra.mxu0 %v417
      %894 = vmatprep.subr.mxu0 %v422
      %895 = vmatpush1.msra.mxu0 %v421
      %896 = vmatprep.subr.mxu0 %v426
      %897 = vmatpush1.msra.mxu0 %v425
      %898 = vmatprep.subr.mxu0 %v430
      %899 = vmatpush1.msra.mxu0 %v429
      %900 = vmatprep.subr.mxu0 %v434
      %901 = vmatpush1.msra.mxu0 %v433
      %902 = vmatprep.subr.mxu0 %v438
      %903 = vmatpush1.msra.mxu0 %v437
      %904 = vmatprep.subr.mxu0 %v442
      %905 = vmatpush1.msra.mxu0 %v441
      %906 = vmatprep.subr.mxu0 %v446
      %907 = vmatpush1.msra.mxu0 %v445
      %908 = vmatprep.subr.mxu0 %v450
      %909 = vmatpush1.msra.mxu0 %v449
      %910 = vmatprep.subr.mxu0 %v454
      %911 = vmatpush1.msra.mxu0 %v453
      %912 = vmatprep.subr.mxu0 %v458
      %913 = vmatpush1.msra.mxu0 %v457
      %914 = vmatprep.subr.mxu0 %v462
      %915 = vmatpush1.msra.mxu0 %v461
      %916 = vmatprep.subr.mxu0 %v466
      %917 = vmatpush1.msra.mxu0 %v465
      %918 = vmatprep.subr.mxu0 %v470
      %919 = vmatpush1.msra.mxu0 %v469
      %920 = vmatprep.subr.mxu0 %v474
      %921 = vmatpush1.msra.mxu0 %v473
      %922 = vmatprep.subr.mxu0 %v478
      %923 = vmatpush1.msra.mxu0 %v477
      %924 = vmatprep.subr.mxu0 %v482
      %925 = vmatpush1.msra.mxu0 %v481
      %926 = vmatprep.subr.mxu0 %v486
      %927 = vmatpush1.msra.mxu0 %v485
      %928 = vmatprep.subr.mxu0 %v490
      %929 = vmatpush1.msra.mxu0 %v489
      %930 = vmatprep.subr.mxu0 %v494
      %931 = vmatpush1.msra.mxu0 %v493
      %932 = vmatprep.subr.mxu0 %v498
      %933 = vmatpush1.msra.mxu0 %v497
      %934 = vmatprep.subr.mxu0 %v502
      %935 = vmatpush1.msra.mxu0 %v501
      %936 = vmatprep.subr.mxu0 %v506
      %937 = vmatpush1.msra.mxu0 %v505
      %938 = vmatprep.subr.mxu0 %v510
      %939 = vmatpush1.msra.mxu0 %v509
      %940 = vmatprep.subr.mxu0 %v514
      %941 = vmatpush1.msra.mxu0 %v513
      %942 = vmatprep.subr.mxu0 %v518
      %943 = vmatpush1.msra.mxu0 %v517
      %944 = vmatprep.subr.mxu0 %v522
      %945 = vmatpush1.msra.mxu0 %v521
      %946 = vmatprep.subr.mxu0 %v526
      %947 = vmatpush1.msra.mxu0 %v525
      %948 = vmatprep.subr.mxu0 %v530
      %949 = vmatpush1.msra.mxu0 %v529
      %950 = vmatprep.mubr.f32.mxu0 %v735
      %951 = vmatmul.mubr.f32.gmra.mrb[0].mxu0 %v732
      %v952 = vpop.f32.mrb[0].mxu0
      %v953 = vadd.f32 0.0, %v952
      %v954 = vpop.f32.mrb[0].mxu0
      %v955 = vadd.f32 0.0, %v954
      %956 = vdwg.mxu0
      %957 = vmatprep.subr.mxu0 %v534
      %958 = vmatpush1.msra.mxu0 %v533
      %959 = vmatprep.subr.mxu0 %v538
      %960 = vmatpush1.msra.mxu0 %v537
      %961 = vmatprep.subr.mxu0 %v542
      %962 = vmatpush1.msra.mxu0 %v541
      %963 = vmatprep.subr.mxu0 %v546
      %964 = vmatpush1.msra.mxu0 %v545
      %965 = vmatprep.subr.mxu0 %v550
      %966 = vmatpush1.msra.mxu0 %v549
      %967 = vmatprep.subr.mxu0 %v554
      %968 = vmatpush1.msra.mxu0 %v553
      %969 = vmatprep.subr.mxu0 %v558
      %970 = vmatpush1.msra.mxu0 %v557
      %971 = vmatprep.subr.mxu0 %v562
      %972 = vmatpush1.msra.mxu0 %v561
      %973 = vmatprep.subr.mxu0 0.0
      %974 = vmatpush1.msra.mxu0 0.0
      %975 = vmatprep.subr.mxu0 0.0
      %976 = vmatpush1.msra.mxu0 0.0
      %977 = vmatprep.subr.mxu0 0.0
      %978 = vmatpush1.msra.mxu0 0.0
      %979 = vmatprep.subr.mxu0 0.0
      %980 = vmatpush1.msra.mxu0 0.0
      %981 = vmatprep.subr.mxu0 0.0
      %982 = vmatpush1.msra.mxu0 0.0
      %983 = vmatprep.subr.mxu0 0.0
      %984 = vmatpush1.msra.mxu0 0.0
      %985 = vmatprep.subr.mxu0 0.0
      %986 = vmatpush1.msra.mxu0 0.0
      %987 = vmatprep.subr.mxu0 0.0
      %988 = vmatpush1.msra.mxu0 0.0
      %989 = vmatprep.subr.mxu0 0.0
      %990 = vmatpush1.msra.mxu0 0.0
      %991 = vmatprep.subr.mxu0 0.0
      %992 = vmatpush1.msra.mxu0 0.0
      %993 = vmatprep.subr.mxu0 0.0
      %994 = vmatpush1.msra.mxu0 0.0
      %995 = vmatprep.subr.mxu0 0.0
      %996 = vmatpush1.msra.mxu0 0.0
      %997 = vmatprep.subr.mxu0 0.0
      %998 = vmatpush1.msra.mxu0 0.0
      %999 = vmatprep.subr.mxu0 0.0
      %1000 = vmatpush1.msra.mxu0 0.0
      %1001 = vmatprep.subr.mxu0 0.0
      %1002 = vmatpush1.msra.mxu0 0.0
      %1003 = vmatprep.subr.mxu0 0.0
      %1004 = vmatpush1.msra.mxu0 0.0
      %1005 = vmatprep.subr.mxu0 0.0
      %1006 = vmatpush1.msra.mxu0 0.0
      %1007 = vmatprep.subr.mxu0 0.0
      %1008 = vmatpush1.msra.mxu0 0.0
      %1009 = vmatprep.subr.mxu0 0.0
      %1010 = vmatpush1.msra.mxu0 0.0
      %1011 = vmatprep.subr.mxu0 0.0
      %1012 = vmatpush1.msra.mxu0 0.0
      %1013 = vmatprep.subr.mxu0 0.0
      %1014 = vmatpush1.msra.mxu0 0.0
      %1015 = vmatprep.subr.mxu0 0.0
      %1016 = vmatpush1.msra.mxu0 0.0
      %1017 = vmatprep.subr.mxu0 0.0
      %1018 = vmatpush1.msra.mxu0 0.0
      %1019 = vmatprep.subr.mxu0 0.0
      %1020 = vmatpush1.msra.mxu0 0.0
      %1021 = vmatprep.mubr.f32.mxu0 0.0
      %1022 = vmatmul.mubr.f32.gmra.mrb[0].mxu0 %v742
      %v1023 = vpop.f32.mrb[0].mxu0
      %v1024 = vadd.f32 %v953, %v1023
      %v1025 = vpop.f32.mrb[0].mxu0
      %v1026 = vadd.f32 %v955, %v1025
      %1027 = vdwg.mxu0
      %v1029 = vsel %vm741, %v227, 0
      %1031 = vmatprep.subr.mxu0 %v244
      %1032 = vmatpush1.msra.mxu0 %v243
      %1033 = vmatprep.subr.mxu0 %v248
      %1034 = vmatpush1.msra.mxu0 %v247
      %1035 = vmatprep.subr.mxu0 %v252
      %1036 = vmatpush1.msra.mxu0 %v251
      %1037 = vmatprep.subr.mxu0 %v256
      %1038 = vmatpush1.msra.mxu0 %v255
      %1039 = vmatprep.subr.mxu0 %v260
      %1040 = vmatpush1.msra.mxu0 %v259
      %1041 = vmatprep.subr.mxu0 %v264
      %1042 = vmatpush1.msra.mxu0 %v263
      %1043 = vmatprep.subr.mxu0 %v268
      %1044 = vmatpush1.msra.mxu0 %v267
      %1045 = vmatprep.subr.mxu0 %v272
      %1046 = vmatpush1.msra.mxu0 %v271
      %1047 = vmatprep.subr.mxu0 %v276
      %1048 = vmatpush1.msra.mxu0 %v275
      %1049 = vmatprep.subr.mxu0 %v280
      %1050 = vmatpush1.msra.mxu0 %v279
      %1051 = vmatprep.subr.mxu0 %v284
      %1052 = vmatpush1.msra.mxu0 %v283
      %1053 = vmatprep.subr.mxu0 %v288
      %1054 = vmatpush1.msra.mxu0 %v287
      %1055 = vmatprep.subr.mxu0 %v292
      %1056 = vmatpush1.msra.mxu0 %v291
      %1057 = vmatprep.subr.mxu0 %v296
      %1058 = vmatpush1.msra.mxu0 %v295
      %1059 = vmatprep.subr.mxu0 %v300
      %1060 = vmatpush1.msra.mxu0 %v299
      %1061 = vmatprep.subr.mxu0 %v304
      %1062 = vmatpush1.msra.mxu0 %v303
      %1063 = vmatprep.subr.mxu0 %v308
      %1064 = vmatpush1.msra.mxu0 %v307
      %1065 = vmatprep.subr.mxu0 %v312
      %1066 = vmatpush1.msra.mxu0 %v311
      %1067 = vmatprep.subr.mxu0 %v316
      %1068 = vmatpush1.msra.mxu0 %v315
      %1069 = vmatprep.subr.mxu0 %v320
      %1070 = vmatpush1.msra.mxu0 %v319
      %1071 = vmatprep.subr.mxu0 %v324
      %1072 = vmatpush1.msra.mxu0 %v323
      %1073 = vmatprep.subr.mxu0 %v328
      %1074 = vmatpush1.msra.mxu0 %v327
      %1075 = vmatprep.subr.mxu0 %v332
      %1076 = vmatpush1.msra.mxu0 %v331
      %1077 = vmatprep.subr.mxu0 %v336
      %1078 = vmatpush1.msra.mxu0 %v335
      %1079 = vmatprep.subr.mxu0 %v340
      %1080 = vmatpush1.msra.mxu0 %v339
      %1081 = vmatprep.subr.mxu0 %v344
      %1082 = vmatpush1.msra.mxu0 %v343
      %1083 = vmatprep.subr.mxu0 %v348
      %1084 = vmatpush1.msra.mxu0 %v347
      %1085 = vmatprep.subr.mxu0 %v352
      %1086 = vmatpush1.msra.mxu0 %v351
      %1087 = vmatprep.subr.mxu0 %v356
      %1088 = vmatpush1.msra.mxu0 %v355
      %1089 = vmatprep.subr.mxu0 %v360
      %1090 = vmatpush1.msra.mxu0 %v359
      %1091 = vmatprep.subr.mxu0 %v364
      %1092 = vmatpush1.msra.mxu0 %v363
      %1093 = vmatprep.subr.mxu0 %v368
      %1094 = vmatpush1.msra.mxu0 %v367
      %1095 = vmatprep.mubr.f32.mxu0 %v226
      %1096 = vmatmul.mubr.f32.gmra.mrb[0].mxu0 %v225
      %v1097 = vpop.f32.mrb[0].mxu0
      %v1098 = vadd.f32 %v882, %v1097
      %v1099 = vpop.f32.mrb[0].mxu0
      %v1100 = vadd.f32 %v884, %v1099
      %1101 = vdwg.mxu0
      %1102 = vmatprep.subr.mxu0 %v372
      %1103 = vmatpush1.msra.mxu0 %v371
      %1104 = vmatprep.subr.mxu0 %v376
      %1105 = vmatpush1.msra.mxu0 %v375
      %1106 = vmatprep.subr.mxu0 %v380
      %1107 = vmatpush1.msra.mxu0 %v379
      %1108 = vmatprep.subr.mxu0 %v384
      %1109 = vmatpush1.msra.mxu0 %v383
      %1110 = vmatprep.subr.mxu0 %v388
      %1111 = vmatpush1.msra.mxu0 %v387
      %1112 = vmatprep.subr.mxu0 %v392
      %1113 = vmatpush1.msra.mxu0 %v391
      %1114 = vmatprep.subr.mxu0 %v396
      %1115 = vmatpush1.msra.mxu0 %v395
      %1116 = vmatprep.subr.mxu0 %v400
      %1117 = vmatpush1.msra.mxu0 %v399
      %1118 = vmatprep.subr.mxu0 0.0
      %1119 = vmatpush1.msra.mxu0 0.0
      %1120 = vmatprep.subr.mxu0 0.0
      %1121 = vmatpush1.msra.mxu0 0.0
      %1122 = vmatprep.subr.mxu0 0.0
      %1123 = vmatpush1.msra.mxu0 0.0
      %1124 = vmatprep.subr.mxu0 0.0
      %1125 = vmatpush1.msra.mxu0 0.0
      %1126 = vmatprep.subr.mxu0 0.0
      %1127 = vmatpush1.msra.mxu0 0.0
      %1128 = vmatprep.subr.mxu0 0.0
      %1129 = vmatpush1.msra.mxu0 0.0
      %1130 = vmatprep.subr.mxu0 0.0
      %1131 = vmatpush1.msra.mxu0 0.0
      %1132 = vmatprep.subr.mxu0 0.0
      %1133 = vmatpush1.msra.mxu0 0.0
      %1134 = vmatprep.subr.mxu0 0.0
      %1135 = vmatpush1.msra.mxu0 0.0
      %1136 = vmatprep.subr.mxu0 0.0
      %1137 = vmatpush1.msra.mxu0 0.0
      %1138 = vmatprep.subr.mxu0 0.0
      %1139 = vmatpush1.msra.mxu0 0.0
      %1140 = vmatprep.subr.mxu0 0.0
      %1141 = vmatpush1.msra.mxu0 0.0
      %1142 = vmatprep.subr.mxu0 0.0
      %1143 = vmatpush1.msra.mxu0 0.0
      %1144 = vmatprep.subr.mxu0 0.0
      %1145 = vmatpush1.msra.mxu0 0.0
      %1146 = vmatprep.subr.mxu0 0.0
      %1147 = vmatpush1.msra.mxu0 0.0
      %1148 = vmatprep.subr.mxu0 0.0
      %1149 = vmatpush1.msra.mxu0 0.0
      %1150 = vmatprep.subr.mxu0 0.0
      %1151 = vmatpush1.msra.mxu0 0.0
      %1152 = vmatprep.subr.mxu0 0.0
      %1153 = vmatpush1.msra.mxu0 0.0
      %1154 = vmatprep.subr.mxu0 0.0
      %1155 = vmatpush1.msra.mxu0 0.0
      %1156 = vmatprep.subr.mxu0 0.0
      %1157 = vmatpush1.msra.mxu0 0.0
      %1158 = vmatprep.subr.mxu0 0.0
      %1159 = vmatpush1.msra.mxu0 0.0
      %1160 = vmatprep.subr.mxu0 0.0
      %1161 = vmatpush1.msra.mxu0 0.0
      %1162 = vmatprep.subr.mxu0 0.0
      %1163 = vmatpush1.msra.mxu0 0.0
      %1164 = vmatprep.subr.mxu0 0.0
      %1165 = vmatpush1.msra.mxu0 0.0
      %1166 = vmatprep.mubr.f32.mxu0 0.0
      %1167 = vmatmul.mubr.f32.gmra.mrb[0].mxu0 %v1029
      %v1168 = vpop.f32.mrb[0].mxu0
      %v1169 = vadd.f32 %v1098, %v1168
      %v1170 = vpop.f32.mrb[0].mxu0
      %v1171 = vadd.f32 %v1100, %v1170
      %1172 = vdwg.mxu0
      %1173 = vmatprep.subr.mxu0 %v246
      %1174 = vmatpush1.msra.mxu0 %v245
      %1175 = vmatprep.subr.mxu0 %v250
      %1176 = vmatpush1.msra.mxu0 %v249
      %1177 = vmatprep.subr.mxu0 %v254
      %1178 = vmatpush1.msra.mxu0 %v253
      %1179 = vmatprep.subr.mxu0 %v258
      %1180 = vmatpush1.msra.mxu0 %v257
      %1181 = vmatprep.subr.mxu0 %v262
      %1182 = vmatpush1.msra.mxu0 %v261
      %1183 = vmatprep.subr.mxu0 %v266
      %1184 = vmatpush1.msra.mxu0 %v265
      %1185 = vmatprep.subr.mxu0 %v270
      %1186 = vmatpush1.msra.mxu0 %v269
      %1187 = vmatprep.subr.mxu0 %v274
      %1188 = vmatpush1.msra.mxu0 %v273
      %1189 = vmatprep.subr.mxu0 %v278
      %1190 = vmatpush1.msra.mxu0 %v277
      %1191 = vmatprep.subr.mxu0 %v282
      %1192 = vmatpush1.msra.mxu0 %v281
      %1193 = vmatprep.subr.mxu0 %v286
      %1194 = vmatpush1.msra.mxu0 %v285
      %1195 = vmatprep.subr.mxu0 %v290
      %1196 = vmatpush1.msra.mxu0 %v289
      %1197 = vmatprep.subr.mxu0 %v294
      %1198 = vmatpush1.msra.mxu0 %v293
      %1199 = vmatprep.subr.mxu0 %v298
      %1200 = vmatpush1.msra.mxu0 %v297
      %1201 = vmatprep.subr.mxu0 %v302
      %1202 = vmatpush1.msra.mxu0 %v301
      %1203 = vmatprep.subr.mxu0 %v306
      %1204 = vmatpush1.msra.mxu0 %v305
      %1205 = vmatprep.subr.mxu0 %v310
      %1206 = vmatpush1.msra.mxu0 %v309
      %1207 = vmatprep.subr.mxu0 %v314
      %1208 = vmatpush1.msra.mxu0 %v313
      %1209 = vmatprep.subr.mxu0 %v318
      %1210 = vmatpush1.msra.mxu0 %v317
      %1211 = vmatprep.subr.mxu0 %v322
      %1212 = vmatpush1.msra.mxu0 %v321
      %1213 = vmatprep.subr.mxu0 %v326
      %1214 = vmatpush1.msra.mxu0 %v325
      %1215 = vmatprep.subr.mxu0 %v330
      %1216 = vmatpush1.msra.mxu0 %v329
      %1217 = vmatprep.subr.mxu0 %v334
      %1218 = vmatpush1.msra.mxu0 %v333
      %1219 = vmatprep.subr.mxu0 %v338
      %1220 = vmatpush1.msra.mxu0 %v337
      %1221 = vmatprep.subr.mxu0 %v342
      %1222 = vmatpush1.msra.mxu0 %v341
      %1223 = vmatprep.subr.mxu0 %v346
      %1224 = vmatpush1.msra.mxu0 %v345
      %1225 = vmatprep.subr.mxu0 %v350
      %1226 = vmatpush1.msra.mxu0 %v349
      %1227 = vmatprep.subr.mxu0 %v354
      %1228 = vmatpush1.msra.mxu0 %v353
      %1229 = vmatprep.subr.mxu0 %v358
      %1230 = vmatpush1.msra.mxu0 %v357
      %1231 = vmatprep.subr.mxu0 %v362
      %1232 = vmatpush1.msra.mxu0 %v361
      %1233 = vmatprep.subr.mxu0 %v366
      %1234 = vmatpush1.msra.mxu0 %v365
      %1235 = vmatprep.subr.mxu0 %v370
      %1236 = vmatpush1.msra.mxu0 %v369
      %1237 = vmatprep.mubr.f32.mxu0 %v226
      %1238 = vmatmul.mubr.f32.gmra.mrb[0].mxu0 %v225
      %v1239 = vpop.f32.mrb[0].mxu0
      %v1240 = vadd.f32 %v1024, %v1239
      %v1241 = vpop.f32.mrb[0].mxu0
      %v1242 = vadd.f32 %v1026, %v1241
      %1243 = vdwg.mxu0
      %1244 = vmatprep.subr.mxu0 %v374
      %1245 = vmatpush1.msra.mxu0 %v373
      %1246 = vmatprep.subr.mxu0 %v378
      %1247 = vmatpush1.msra.mxu0 %v377
      %1248 = vmatprep.subr.mxu0 %v382
      %1249 = vmatpush1.msra.mxu0 %v381
      %1250 = vmatprep.subr.mxu0 %v386
      %1251 = vmatpush1.msra.mxu0 %v385
      %1252 = vmatprep.subr.mxu0 %v390
      %1253 = vmatpush1.msra.mxu0 %v389
      %1254 = vmatprep.subr.mxu0 %v394
      %1255 = vmatpush1.msra.mxu0 %v393
      %1256 = vmatprep.subr.mxu0 %v398
      %1257 = vmatpush1.msra.mxu0 %v397
      %1258 = vmatprep.subr.mxu0 %v402
      %1259 = vmatpush1.msra.mxu0 %v401
      %1260 = vmatprep.subr.mxu0 0.0
      %1261 = vmatpush1.msra.mxu0 0.0
      %1262 = vmatprep.subr.mxu0 0.0
      %1263 = vmatpush1.msra.mxu0 0.0
      %1264 = vmatprep.subr.mxu0 0.0
      %1265 = vmatpush1.msra.mxu0 0.0
      %1266 = vmatprep.subr.mxu0 0.0
      %1267 = vmatpush1.msra.mxu0 0.0
      %1268 = vmatprep.subr.mxu0 0.0
      %1269 = vmatpush1.msra.mxu0 0.0
      %1270 = vmatprep.subr.mxu0 0.0
      %1271 = vmatpush1.msra.mxu0 0.0
      %1272 = vmatprep.subr.mxu0 0.0
      %1273 = vmatpush1.msra.mxu0 0.0
      %1274 = vmatprep.subr.mxu0 0.0
      %1275 = vmatpush1.msra.mxu0 0.0
      %1276 = vmatprep.subr.mxu0 0.0
      %1277 = vmatpush1.msra.mxu0 0.0
      %1278 = vmatprep.subr.mxu0 0.0
      %1279 = vmatpush1.msra.mxu0 0.0
      %1280 = vmatprep.subr.mxu0 0.0
      %1281 = vmatpush1.msra.mxu0 0.0
      %1282 = vmatprep.subr.mxu0 0.0
      %1283 = vmatpush1.msra.mxu0 0.0
      %1284 = vmatprep.subr.mxu0 0.0
      %1285 = vmatpush1.msra.mxu0 0.0
      %1286 = vmatprep.subr.mxu0 0.0
      %1287 = vmatpush1.msra.mxu0 0.0
      %1288 = vmatprep.subr.mxu0 0.0
      %1289 = vmatpush1.msra.mxu0 0.0
      %1290 = vmatprep.subr.mxu0 0.0
      %1291 = vmatpush1.msra.mxu0 0.0
      %1292 = vmatprep.subr.mxu0 0.0
      %1293 = vmatpush1.msra.mxu0 0.0
      %1294 = vmatprep.subr.mxu0 0.0
      %1295 = vmatpush1.msra.mxu0 0.0
      %1296 = vmatprep.subr.mxu0 0.0
      %1297 = vmatpush1.msra.mxu0 0.0
      %1298 = vmatprep.subr.mxu0 0.0
      %1299 = vmatpush1.msra.mxu0 0.0
      %1300 = vmatprep.subr.mxu0 0.0
      %1301 = vmatpush1.msra.mxu0 0.0
      %1302 = vmatprep.subr.mxu0 0.0
      %1303 = vmatpush1.msra.mxu0 0.0
      %1304 = vmatprep.subr.mxu0 0.0
      %1305 = vmatpush1.msra.mxu0 0.0
      %1306 = vmatprep.subr.mxu0 0.0
      %1307 = vmatpush1.msra.mxu0 0.0
      %1308 = vmatprep.mubr.f32.mxu0 0.0
      %1309 = vmatmul.mubr.f32.gmra.mrb[0].mxu0 %v1029
      %v1310 = vpop.f32.mrb[0].mxu0
      %v1311 = vadd.f32 %v1240, %v1310
      %v1312 = vpop.f32.mrb[0].mxu0
      %v1313 = vadd.f32 %v1242, %v1312
      %1314 = vdwg.mxu0
      %v1318 = vrot.slane %v228, 1
      %v1319 = vrot.slane %v229, 1
      %v1320 = vrot.slane %v230, 1
      %v1323 = vsel %vm741, %v1320, 0
      %1325 = vmatprep.subr.mxu0 %v564
      %1326 = vmatpush1.msra.mxu0 %v563
      %1327 = vmatprep.subr.mxu0 %v568
      %1328 = vmatpush1.msra.mxu0 %v567
      %1329 = vmatprep.subr.mxu0 %v572
      %1330 = vmatpush1.msra.mxu0 %v571
      %1331 = vmatprep.subr.mxu0 %v576
      %1332 = vmatpush1.msra.mxu0 %v575
      %1333 = vmatprep.subr.mxu0 %v580
      %1334 = vmatpush1.msra.mxu0 %v579
      %1335 = vmatprep.subr.mxu0 %v584
      %1336 = vmatpush1.msra.mxu0 %v583
      %1337 = vmatprep.subr.mxu0 %v588
      %1338 = vmatpush1.msra.mxu0 %v587
      %1339 = vmatprep.subr.mxu0 %v592
      %1340 = vmatpush1.msra.mxu0 %v591
      %1341 = vmatprep.subr.mxu0 %v596
      %1342 = vmatpush1.msra.mxu0 %v595
      %1343 = vmatprep.subr.mxu0 %v600
      %1344 = vmatpush1.msra.mxu0 %v599
      %1345 = vmatprep.subr.mxu0 %v604
      %1346 = vmatpush1.msra.mxu0 %v603
      %1347 = vmatprep.subr.mxu0 %v608
      %1348 = vmatpush1.msra.mxu0 %v607
      %1349 = vmatprep.subr.mxu0 %v612
      %1350 = vmatpush1.msra.mxu0 %v611
      %1351 = vmatprep.subr.mxu0 %v616
      %1352 = vmatpush1.msra.mxu0 %v615
      %1353 = vmatprep.subr.mxu0 %v620
      %1354 = vmatpush1.msra.mxu0 %v619
      %1355 = vmatprep.subr.mxu0 %v624
      %1356 = vmatpush1.msra.mxu0 %v623
      %1357 = vmatprep.subr.mxu0 %v628
      %1358 = vmatpush1.msra.mxu0 %v627
      %1359 = vmatprep.subr.mxu0 %v632
      %1360 = vmatpush1.msra.mxu0 %v631
      %1361 = vmatprep.subr.mxu0 %v636
      %1362 = vmatpush1.msra.mxu0 %v635
      %1363 = vmatprep.subr.mxu0 %v640
      %1364 = vmatpush1.msra.mxu0 %v639
      %1365 = vmatprep.subr.mxu0 %v644
      %1366 = vmatpush1.msra.mxu0 %v643
      %1367 = vmatprep.subr.mxu0 %v648
      %1368 = vmatpush1.msra.mxu0 %v647
      %1369 = vmatprep.subr.mxu0 %v652
      %1370 = vmatpush1.msra.mxu0 %v651
      %1371 = vmatprep.subr.mxu0 %v656
      %1372 = vmatpush1.msra.mxu0 %v655
      %1373 = vmatprep.subr.mxu0 %v660
      %1374 = vmatpush1.msra.mxu0 %v659
      %1375 = vmatprep.subr.mxu0 %v664
      %1376 = vmatpush1.msra.mxu0 %v663
      %1377 = vmatprep.subr.mxu0 %v668
      %1378 = vmatpush1.msra.mxu0 %v667
      %1379 = vmatprep.subr.mxu0 %v672
      %1380 = vmatpush1.msra.mxu0 %v671
      %1381 = vmatprep.subr.mxu0 %v676
      %1382 = vmatpush1.msra.mxu0 %v675
      %1383 = vmatprep.subr.mxu0 %v680
      %1384 = vmatpush1.msra.mxu0 %v679
      %1385 = vmatprep.subr.mxu0 %v684
      %1386 = vmatpush1.msra.mxu0 %v683
      %1387 = vmatprep.subr.mxu0 %v688
      %1388 = vmatpush1.msra.mxu0 %v687
      %1389 = vmatprep.mubr.f32.mxu0 %v1319
      %1390 = vmatmul.mubr.f32.gmra.mrb[0].mxu0 %v1318
      %v1391 = vpop.f32.mrb[0].mxu0
      %v1392 = vadd.f32 0.0, %v1391
      %v1393 = vpop.f32.mrb[0].mxu0
      %v1394 = vadd.f32 0.0, %v1393
      %1395 = vdwg.mxu0
      %1396 = vmatprep.subr.mxu0 %v692
      %1397 = vmatpush1.msra.mxu0 %v691
      %1398 = vmatprep.subr.mxu0 %v696
      %1399 = vmatpush1.msra.mxu0 %v695
      %1400 = vmatprep.subr.mxu0 %v700
      %1401 = vmatpush1.msra.mxu0 %v699
      %1402 = vmatprep.subr.mxu0 %v704
      %1403 = vmatpush1.msra.mxu0 %v703
      %1404 = vmatprep.subr.mxu0 %v708
      %1405 = vmatpush1.msra.mxu0 %v707
      %1406 = vmatprep.subr.mxu0 %v712
      %1407 = vmatpush1.msra.mxu0 %v711
      %1408 = vmatprep.subr.mxu0 %v716
      %1409 = vmatpush1.msra.mxu0 %v715
      %1410 = vmatprep.subr.mxu0 %v720
      %1411 = vmatpush1.msra.mxu0 %v719
      %1412 = vmatprep.subr.mxu0 0.0
      %1413 = vmatpush1.msra.mxu0 0.0
      %1414 = vmatprep.subr.mxu0 0.0
      %1415 = vmatpush1.msra.mxu0 0.0
      %1416 = vmatprep.subr.mxu0 0.0
      %1417 = vmatpush1.msra.mxu0 0.0
      %1418 = vmatprep.subr.mxu0 0.0
      %1419 = vmatpush1.msra.mxu0 0.0
      %1420 = vmatprep.subr.mxu0 0.0
      %1421 = vmatpush1.msra.mxu0 0.0
      %1422 = vmatprep.subr.mxu0 0.0
      %1423 = vmatpush1.msra.mxu0 0.0
      %1424 = vmatprep.subr.mxu0 0.0
      %1425 = vmatpush1.msra.mxu0 0.0
      %1426 = vmatprep.subr.mxu0 0.0
      %1427 = vmatpush1.msra.mxu0 0.0
      %1428 = vmatprep.subr.mxu0 0.0
      %1429 = vmatpush1.msra.mxu0 0.0
      %1430 = vmatprep.subr.mxu0 0.0
      %1431 = vmatpush1.msra.mxu0 0.0
      %1432 = vmatprep.subr.mxu0 0.0
      %1433 = vmatpush1.msra.mxu0 0.0
      %1434 = vmatprep.subr.mxu0 0.0
      %1435 = vmatpush1.msra.mxu0 0.0
      %1436 = vmatprep.subr.mxu0 0.0
      %1437 = vmatpush1.msra.mxu0 0.0
      %1438 = vmatprep.subr.mxu0 0.0
      %1439 = vmatpush1.msra.mxu0 0.0
      %1440 = vmatprep.subr.mxu0 0.0
      %1441 = vmatpush1.msra.mxu0 0.0
      %1442 = vmatprep.subr.mxu0 0.0
      %1443 = vmatpush1.msra.mxu0 0.0
      %1444 = vmatprep.subr.mxu0 0.0
      %1445 = vmatpush1.msra.mxu0 0.0
      %1446 = vmatprep.subr.mxu0 0.0
      %1447 = vmatpush1.msra.mxu0 0.0
      %1448 = vmatprep.subr.mxu0 0.0
      %1449 = vmatpush1.msra.mxu0 0.0
      %1450 = vmatprep.subr.mxu0 0.0
      %1451 = vmatpush1.msra.mxu0 0.0
      %1452 = vmatprep.subr.mxu0 0.0
      %1453 = vmatpush1.msra.mxu0 0.0
      %1454 = vmatprep.subr.mxu0 0.0
      %1455 = vmatpush1.msra.mxu0 0.0
      %1456 = vmatprep.subr.mxu0 0.0
      %1457 = vmatpush1.msra.mxu0 0.0
      %1458 = vmatprep.subr.mxu0 0.0
      %1459 = vmatpush1.msra.mxu0 0.0
      %1460 = vmatprep.mubr.f32.mxu0 0.0
      %1461 = vmatmul.mubr.f32.gmra.mrb[0].mxu0 %v1323
      %v1462 = vpop.f32.mrb[0].mxu0
      %v1463 = vadd.f32 %v1392, %v1462
      %v1464 = vpop.f32.mrb[0].mxu0
      %v1465 = vadd.f32 %v1394, %v1464
      %1466 = vdwg.mxu0
      %1467 = vmatprep.subr.mxu0 %v566
      %1468 = vmatpush1.msra.mxu0 %v565
      %1469 = vmatprep.subr.mxu0 %v570
      %1470 = vmatpush1.msra.mxu0 %v569
      %1471 = vmatprep.subr.mxu0 %v574
      %1472 = vmatpush1.msra.mxu0 %v573
      %1473 = vmatprep.subr.mxu0 %v578
      %1474 = vmatpush1.msra.mxu0 %v577
      %1475 = vmatprep.subr.mxu0 %v582
      %1476 = vmatpush1.msra.mxu0 %v581
      %1477 = vmatprep.subr.mxu0 %v586
      %1478 = vmatpush1.msra.mxu0 %v585
      %1479 = vmatprep.subr.mxu0 %v590
      %1480 = vmatpush1.msra.mxu0 %v589
      %1481 = vmatprep.subr.mxu0 %v594
      %1482 = vmatpush1.msra.mxu0 %v593
      %1483 = vmatprep.subr.mxu0 %v598
      %1484 = vmatpush1.msra.mxu0 %v597
      %1485 = vmatprep.subr.mxu0 %v602
      %1486 = vmatpush1.msra.mxu0 %v601
      %1487 = vmatprep.subr.mxu0 %v606
      %1488 = vmatpush1.msra.mxu0 %v605
      %1489 = vmatprep.subr.mxu0 %v610
      %1490 = vmatpush1.msra.mxu0 %v609
      %1491 = vmatprep.subr.mxu0 %v614
      %1492 = vmatpush1.msra.mxu0 %v613
      %1493 = vmatprep.subr.mxu0 %v618
      %1494 = vmatpush1.msra.mxu0 %v617
      %1495 = vmatprep.subr.mxu0 %v622
      %1496 = vmatpush1.msra.mxu0 %v621
      %1497 = vmatprep.subr.mxu0 %v626
      %1498 = vmatpush1.msra.mxu0 %v625
      %1499 = vmatprep.subr.mxu0 %v630
      %1500 = vmatpush1.msra.mxu0 %v629
      %1501 = vmatprep.subr.mxu0 %v634
      %1502 = vmatpush1.msra.mxu0 %v633
      %1503 = vmatprep.subr.mxu0 %v638
      %1504 = vmatpush1.msra.mxu0 %v637
      %1505 = vmatprep.subr.mxu0 %v642
      %1506 = vmatpush1.msra.mxu0 %v641
      %1507 = vmatprep.subr.mxu0 %v646
      %1508 = vmatpush1.msra.mxu0 %v645
      %1509 = vmatprep.subr.mxu0 %v650
      %1510 = vmatpush1.msra.mxu0 %v649
      %1511 = vmatprep.subr.mxu0 %v654
      %1512 = vmatpush1.msra.mxu0 %v653
      %1513 = vmatprep.subr.mxu0 %v658
      %1514 = vmatpush1.msra.mxu0 %v657
      %1515 = vmatprep.subr.mxu0 %v662
      %1516 = vmatpush1.msra.mxu0 %v661
      %1517 = vmatprep.subr.mxu0 %v666
      %1518 = vmatpush1.msra.mxu0 %v665
      %1519 = vmatprep.subr.mxu0 %v670
      %1520 = vmatpush1.msra.mxu0 %v669
      %1521 = vmatprep.subr.mxu0 %v674
      %1522 = vmatpush1.msra.mxu0 %v673
      %1523 = vmatprep.subr.mxu0 %v678
      %1524 = vmatpush1.msra.mxu0 %v677
      %1525 = vmatprep.subr.mxu0 %v682
      %1526 = vmatpush1.msra.mxu0 %v681
      %1527 = vmatprep.subr.mxu0 %v686
      %1528 = vmatpush1.msra.mxu0 %v685
      %1529 = vmatprep.subr.mxu0 %v690
      %1530 = vmatpush1.msra.mxu0 %v689
      %1531 = vmatprep.mubr.f32.mxu0 %v1319
      %1532 = vmatmul.mubr.f32.gmra.mrb[0].mxu0 %v1318
      %v1533 = vpop.f32.mrb[0].mxu0
      %v1534 = vadd.f32 0.0, %v1533
      %v1535 = vpop.f32.mrb[0].mxu0
      %v1536 = vadd.f32 0.0, %v1535
      %1537 = vdwg.mxu0
      %1538 = vmatprep.subr.mxu0 %v694
      %1539 = vmatpush1.msra.mxu0 %v693
      %1540 = vmatprep.subr.mxu0 %v698
      %1541 = vmatpush1.msra.mxu0 %v697
      %1542 = vmatprep.subr.mxu0 %v702
      %1543 = vmatpush1.msra.mxu0 %v701
      %1544 = vmatprep.subr.mxu0 %v706
      %1545 = vmatpush1.msra.mxu0 %v705
      %1546 = vmatprep.subr.mxu0 %v710
      %1547 = vmatpush1.msra.mxu0 %v709
      %1548 = vmatprep.subr.mxu0 %v714
      %1549 = vmatpush1.msra.mxu0 %v713
      %1550 = vmatprep.subr.mxu0 %v718
      %1551 = vmatpush1.msra.mxu0 %v717
      %1552 = vmatprep.subr.mxu0 %v722
      %1553 = vmatpush1.msra.mxu0 %v721
      %1554 = vmatprep.subr.mxu0 0.0
      %1555 = vmatpush1.msra.mxu0 0.0
      %1556 = vmatprep.subr.mxu0 0.0
      %1557 = vmatpush1.msra.mxu0 0.0
      %1558 = vmatprep.subr.mxu0 0.0
      %1559 = vmatpush1.msra.mxu0 0.0
      %1560 = vmatprep.subr.mxu0 0.0
      %1561 = vmatpush1.msra.mxu0 0.0
      %1562 = vmatprep.subr.mxu0 0.0
      %1563 = vmatpush1.msra.mxu0 0.0
      %1564 = vmatprep.subr.mxu0 0.0
      %1565 = vmatpush1.msra.mxu0 0.0
      %1566 = vmatprep.subr.mxu0 0.0
      %1567 = vmatpush1.msra.mxu0 0.0
      %1568 = vmatprep.subr.mxu0 0.0
      %1569 = vmatpush1.msra.mxu0 0.0
      %1570 = vmatprep.subr.mxu0 0.0
      %1571 = vmatpush1.msra.mxu0 0.0
      %1572 = vmatprep.subr.mxu0 0.0
      %1573 = vmatpush1.msra.mxu0 0.0
      %1574 = vmatprep.subr.mxu0 0.0
      %1575 = vmatpush1.msra.mxu0 0.0
      %1576 = vmatprep.subr.mxu0 0.0
      %1577 = vmatpush1.msra.mxu0 0.0
      %1578 = vmatprep.subr.mxu0 0.0
      %1579 = vmatpush1.msra.mxu0 0.0
      %1580 = vmatprep.subr.mxu0 0.0
      %1581 = vmatpush1.msra.mxu0 0.0
      %1582 = vmatprep.subr.mxu0 0.0
      %1583 = vmatpush1.msra.mxu0 0.0
      %1584 = vmatprep.subr.mxu0 0.0
      %1585 = vmatpush1.msra.mxu0 0.0
      %1586 = vmatprep.subr.mxu0 0.0
      %1587 = vmatpush1.msra.mxu0 0.0
      %1588 = vmatprep.subr.mxu0 0.0
      %1589 = vmatpush1.msra.mxu0 0.0
      %1590 = vmatprep.subr.mxu0 0.0
      %1591 = vmatpush1.msra.mxu0 0.0
      %1592 = vmatprep.subr.mxu0 0.0
      %1593 = vmatpush1.msra.mxu0 0.0
      %1594 = vmatprep.subr.mxu0 0.0
      %1595 = vmatpush1.msra.mxu0 0.0
      %1596 = vmatprep.subr.mxu0 0.0
      %1597 = vmatpush1.msra.mxu0 0.0
      %1598 = vmatprep.subr.mxu0 0.0
      %1599 = vmatpush1.msra.mxu0 0.0
      %1600 = vmatprep.subr.mxu0 0.0
      %1601 = vmatpush1.msra.mxu0 0.0
      %1602 = vmatprep.mubr.f32.mxu0 0.0
      %1603 = vmatmul.mubr.f32.gmra.mrb[0].mxu0 %v1323
      %v1604 = vpop.f32.mrb[0].mxu0
      %v1605 = vadd.f32 %v1534, %v1604
      %v1606 = vpop.f32.mrb[0].mxu0
      %v1607 = vadd.f32 %v1536, %v1606
      %1608 = vdwg.mxu0
      %v1609 = vadd.f32 %v1169, %v1463
      %v1610 = vadd.f32 %v1171, %v1465
      %v1611 = vadd.f32 %v1311, %v1605
      %v1612 = vadd.f32 %v1313, %v1607
      %1613 = vmatprep.subr.mxu0 %v404
      %1614 = vmatpush1.msra.mxu0 %v403
      %1615 = vmatprep.subr.mxu0 %v408
      %1616 = vmatpush1.msra.mxu0 %v407
      %1617 = vmatprep.subr.mxu0 %v412
      %1618 = vmatpush1.msra.mxu0 %v411
      %1619 = vmatprep.subr.mxu0 %v416
      %1620 = vmatpush1.msra.mxu0 %v415
      %1621 = vmatprep.subr.mxu0 %v420
      %1622 = vmatpush1.msra.mxu0 %v419
      %1623 = vmatprep.subr.mxu0 %v424
      %1624 = vmatpush1.msra.mxu0 %v423
      %1625 = vmatprep.subr.mxu0 %v428
      %1626 = vmatpush1.msra.mxu0 %v427
      %1627 = vmatprep.subr.mxu0 %v432
      %1628 = vmatpush1.msra.mxu0 %v431
      %1629 = vmatprep.subr.mxu0 %v436
      %1630 = vmatpush1.msra.mxu0 %v435
      %1631 = vmatprep.subr.mxu0 %v440
      %1632 = vmatpush1.msra.mxu0 %v439
      %1633 = vmatprep.subr.mxu0 %v444
      %1634 = vmatpush1.msra.mxu0 %v443
      %1635 = vmatprep.subr.mxu0 %v448
      %1636 = vmatpush1.msra.mxu0 %v447
      %1637 = vmatprep.subr.mxu0 %v452
      %1638 = vmatpush1.msra.mxu0 %v451
      %1639 = vmatprep.subr.mxu0 %v456
      %1640 = vmatpush1.msra.mxu0 %v455
      %1641 = vmatprep.subr.mxu0 %v460
      %1642 = vmatpush1.msra.mxu0 %v459
      %1643 = vmatprep.subr.mxu0 %v464
      %1644 = vmatpush1.msra.mxu0 %v463
      %1645 = vmatprep.subr.mxu0 %v468
      %1646 = vmatpush1.msra.mxu0 %v467
      %1647 = vmatprep.subr.mxu0 %v472
      %1648 = vmatpush1.msra.mxu0 %v471
      %1649 = vmatprep.subr.mxu0 %v476
      %1650 = vmatpush1.msra.mxu0 %v475
      %1651 = vmatprep.subr.mxu0 %v480
      %1652 = vmatpush1.msra.mxu0 %v479
      %1653 = vmatprep.subr.mxu0 %v484
      %1654 = vmatpush1.msra.mxu0 %v483
      %1655 = vmatprep.subr.mxu0 %v488
      %1656 = vmatpush1.msra.mxu0 %v487
      %1657 = vmatprep.subr.mxu0 %v492
      %1658 = vmatpush1.msra.mxu0 %v491
      %1659 = vmatprep.subr.mxu0 %v496
      %1660 = vmatpush1.msra.mxu0 %v495
      %1661 = vmatprep.subr.mxu0 %v500
      %1662 = vmatpush1.msra.mxu0 %v499
      %1663 = vmatprep.subr.mxu0 %v504
      %1664 = vmatpush1.msra.mxu0 %v503
      %1665 = vmatprep.subr.mxu0 %v508
      %1666 = vmatpush1.msra.mxu0 %v507
      %1667 = vmatprep.subr.mxu0 %v512
      %1668 = vmatpush1.msra.mxu0 %v511
      %1669 = vmatprep.subr.mxu0 %v516
      %1670 = vmatpush1.msra.mxu0 %v515
      %1671 = vmatprep.subr.mxu0 %v520
      %1672 = vmatpush1.msra.mxu0 %v519
      %1673 = vmatprep.subr.mxu0 %v524
      %1674 = vmatpush1.msra.mxu0 %v523
      %1675 = vmatprep.subr.mxu0 %v528
      %1676 = vmatpush1.msra.mxu0 %v527
      %1677 = vmatprep.mubr.f32.mxu0 %v1319
      %1678 = vmatmul.mubr.f32.gmra.mrb[0].mxu0 %v1318
      %v1679 = vpop.f32.mrb[0].mxu0
      %v1680 = vadd.f32 0.0, %v1679
      %v1681 = vpop.f32.mrb[0].mxu0
      %v1682 = vadd.f32 0.0, %v1681
      %1683 = vdwg.mxu0
      %1684 = vmatprep.subr.mxu0 %v532
      %1685 = vmatpush1.msra.mxu0 %v531
      %1686 = vmatprep.subr.mxu0 %v536
      %1687 = vmatpush1.msra.mxu0 %v535
      %1688 = vmatprep.subr.mxu0 %v540
      %1689 = vmatpush1.msra.mxu0 %v539
      %1690 = vmatprep.subr.mxu0 %v544
      %1691 = vmatpush1.msra.mxu0 %v543
      %1692 = vmatprep.subr.mxu0 %v548
      %1693 = vmatpush1.msra.mxu0 %v547
      %1694 = vmatprep.subr.mxu0 %v552
      %1695 = vmatpush1.msra.mxu0 %v551
      %1696 = vmatprep.subr.mxu0 %v556
      %1697 = vmatpush1.msra.mxu0 %v555
      %1698 = vmatprep.subr.mxu0 %v560
      %1699 = vmatpush1.msra.mxu0 %v559
      %1700 = vmatprep.subr.mxu0 0.0
      %1701 = vmatpush1.msra.mxu0 0.0
      %1702 = vmatprep.subr.mxu0 0.0
      %1703 = vmatpush1.msra.mxu0 0.0
      %1704 = vmatprep.subr.mxu0 0.0
      %1705 = vmatpush1.msra.mxu0 0.0
      %1706 = vmatprep.subr.mxu0 0.0
      %1707 = vmatpush1.msra.mxu0 0.0
      %1708 = vmatprep.subr.mxu0 0.0
      %1709 = vmatpush1.msra.mxu0 0.0
      %1710 = vmatprep.subr.mxu0 0.0
      %1711 = vmatpush1.msra.mxu0 0.0
      %1712 = vmatprep.subr.mxu0 0.0
      %1713 = vmatpush1.msra.mxu0 0.0
      %1714 = vmatprep.subr.mxu0 0.0
      %1715 = vmatpush1.msra.mxu0 0.0
      %1716 = vmatprep.subr.mxu0 0.0
      %1717 = vmatpush1.msra.mxu0 0.0
      %1718 = vmatprep.subr.mxu0 0.0
      %1719 = vmatpush1.msra.mxu0 0.0
      %1720 = vmatprep.subr.mxu0 0.0
      %1721 = vmatpush1.msra.mxu0 0.0
      %1722 = vmatprep.subr.mxu0 0.0
      %1723 = vmatpush1.msra.mxu0 0.0
      %1724 = vmatprep.subr.mxu0 0.0
      %1725 = vmatpush1.msra.mxu0 0.0
      %1726 = vmatprep.subr.mxu0 0.0
      %1727 = vmatpush1.msra.mxu0 0.0
      %1728 = vmatprep.subr.mxu0 0.0
      %1729 = vmatpush1.msra.mxu0 0.0
      %1730 = vmatprep.subr.mxu0 0.0
      %1731 = vmatpush1.msra.mxu0 0.0
      %1732 = vmatprep.subr.mxu0 0.0
      %1733 = vmatpush1.msra.mxu0 0.0
      %1734 = vmatprep.subr.mxu0 0.0
      %1735 = vmatpush1.msra.mxu0 0.0
      %1736 = vmatprep.subr.mxu0 0.0
      %1737 = vmatpush1.msra.mxu0 0.0
      %1738 = vmatprep.subr.mxu0 0.0
      %1739 = vmatpush1.msra.mxu0 0.0
      %1740 = vmatprep.subr.mxu0 0.0
      %1741 = vmatpush1.msra.mxu0 0.0
      %1742 = vmatprep.subr.mxu0 0.0
      %1743 = vmatpush1.msra.mxu0 0.0
      %1744 = vmatprep.subr.mxu0 0.0
      %1745 = vmatpush1.msra.mxu0 0.0
      %1746 = vmatprep.subr.mxu0 0.0
      %1747 = vmatpush1.msra.mxu0 0.0
      %1748 = vmatprep.mubr.f32.mxu0 0.0
      %1749 = vmatmul.mubr.f32.gmra.mrb[0].mxu0 %v1323
      %v1750 = vpop.f32.mrb[0].mxu0
      %v1751 = vadd.f32 %v1680, %v1750
      %v1752 = vpop.f32.mrb[0].mxu0
      %v1753 = vadd.f32 %v1682, %v1752
      %1754 = vdwg.mxu0
      %1755 = vmatprep.subr.mxu0 %v406
      %1756 = vmatpush1.msra.mxu0 %v405
      %1757 = vmatprep.subr.mxu0 %v410
      %1758 = vmatpush1.msra.mxu0 %v409
      %1759 = vmatprep.subr.mxu0 %v414
      %1760 = vmatpush1.msra.mxu0 %v413
      %1761 = vmatprep.subr.mxu0 %v418
      %1762 = vmatpush1.msra.mxu0 %v417
      %1763 = vmatprep.subr.mxu0 %v422
      %1764 = vmatpush1.msra.mxu0 %v421
      %1765 = vmatprep.subr.mxu0 %v426
      %1766 = vmatpush1.msra.mxu0 %v425
      %1767 = vmatprep.subr.mxu0 %v430
      %1768 = vmatpush1.msra.mxu0 %v429
      %1769 = vmatprep.subr.mxu0 %v434
      %1770 = vmatpush1.msra.mxu0 %v433
      %1771 = vmatprep.subr.mxu0 %v438
      %1772 = vmatpush1.msra.mxu0 %v437
      %1773 = vmatprep.subr.mxu0 %v442
      %1774 = vmatpush1.msra.mxu0 %v441
      %1775 = vmatprep.subr.mxu0 %v446
      %1776 = vmatpush1.msra.mxu0 %v445
      %1777 = vmatprep.subr.mxu0 %v450
      %1778 = vmatpush1.msra.mxu0 %v449
      %1779 = vmatprep.subr.mxu0 %v454
      %1780 = vmatpush1.msra.mxu0 %v453
      %1781 = vmatprep.subr.mxu0 %v458
      %1782 = vmatpush1.msra.mxu0 %v457
      %1783 = vmatprep.subr.mxu0 %v462
      %1784 = vmatpush1.msra.mxu0 %v461
      %1785 = vmatprep.subr.mxu0 %v466
      %1786 = vmatpush1.msra.mxu0 %v465
      %1787 = vmatprep.subr.mxu0 %v470
      %1788 = vmatpush1.msra.mxu0 %v469
      %1789 = vmatprep.subr.mxu0 %v474
      %1790 = vmatpush1.msra.mxu0 %v473
      %1791 = vmatprep.subr.mxu0 %v478
      %1792 = vmatpush1.msra.mxu0 %v477
      %1793 = vmatprep.subr.mxu0 %v482
      %1794 = vmatpush1.msra.mxu0 %v481
      %1795 = vmatprep.subr.mxu0 %v486
      %1796 = vmatpush1.msra.mxu0 %v485
      %1797 = vmatprep.subr.mxu0 %v490
      %1798 = vmatpush1.msra.mxu0 %v489
      %1799 = vmatprep.subr.mxu0 %v494
      %1800 = vmatpush1.msra.mxu0 %v493
      %1801 = vmatprep.subr.mxu0 %v498
      %1802 = vmatpush1.msra.mxu0 %v497
      %1803 = vmatprep.subr.mxu0 %v502
      %1804 = vmatpush1.msra.mxu0 %v501
      %1805 = vmatprep.subr.mxu0 %v506
      %1806 = vmatpush1.msra.mxu0 %v505
      %1807 = vmatprep.subr.mxu0 %v510
      %1808 = vmatpush1.msra.mxu0 %v509
      %1809 = vmatprep.subr.mxu0 %v514
      %1810 = vmatpush1.msra.mxu0 %v513
      %1811 = vmatprep.subr.mxu0 %v518
      %1812 = vmatpush1.msra.mxu0 %v517
      %1813 = vmatprep.subr.mxu0 %v522
      %1814 = vmatpush1.msra.mxu0 %v521
      %1815 = vmatprep.subr.mxu0 %v526
      %1816 = vmatpush1.msra.mxu0 %v525
      %1817 = vmatprep.subr.mxu0 %v530
      %1818 = vmatpush1.msra.mxu0 %v529
      %1819 = vmatprep.mubr.f32.mxu0 %v1319
      %1820 = vmatmul.mubr.f32.gmra.mrb[0].mxu0 %v1318
      %v1821 = vpop.f32.mrb[0].mxu0
      %v1822 = vadd.f32 0.0, %v1821
      %v1823 = vpop.f32.mrb[0].mxu0
      %v1824 = vadd.f32 0.0, %v1823
      %1825 = vdwg.mxu0
      %1826 = vmatprep.subr.mxu0 %v534
      %1827 = vmatpush1.msra.mxu0 %v533
      %1828 = vmatprep.subr.mxu0 %v538
      %1829 = vmatpush1.msra.mxu0 %v537
      %1830 = vmatprep.subr.mxu0 %v542
      %1831 = vmatpush1.msra.mxu0 %v541
      %1832 = vmatprep.subr.mxu0 %v546
      %1833 = vmatpush1.msra.mxu0 %v545
      %1834 = vmatprep.subr.mxu0 %v550
      %1835 = vmatpush1.msra.mxu0 %v549
      %1836 = vmatprep.subr.mxu0 %v554
      %1837 = vmatpush1.msra.mxu0 %v553
      %1838 = vmatprep.subr.mxu0 %v558
      %1839 = vmatpush1.msra.mxu0 %v557
      %1840 = vmatprep.subr.mxu0 %v562
      %1841 = vmatpush1.msra.mxu0 %v561
      %1842 = vmatprep.subr.mxu0 0.0
      %1843 = vmatpush1.msra.mxu0 0.0
      %1844 = vmatprep.subr.mxu0 0.0
      %1845 = vmatpush1.msra.mxu0 0.0
      %1846 = vmatprep.subr.mxu0 0.0
      %1847 = vmatpush1.msra.mxu0 0.0
      %1848 = vmatprep.subr.mxu0 0.0
      %1849 = vmatpush1.msra.mxu0 0.0
      %1850 = vmatprep.subr.mxu0 0.0
      %1851 = vmatpush1.msra.mxu0 0.0
      %1852 = vmatprep.subr.mxu0 0.0
      %1853 = vmatpush1.msra.mxu0 0.0
      %1854 = vmatprep.subr.mxu0 0.0
      %1855 = vmatpush1.msra.mxu0 0.0
      %1856 = vmatprep.subr.mxu0 0.0
      %1857 = vmatpush1.msra.mxu0 0.0
      %1858 = vmatprep.subr.mxu0 0.0
      %1859 = vmatpush1.msra.mxu0 0.0
      %1860 = vmatprep.subr.mxu0 0.0
      %1861 = vmatpush1.msra.mxu0 0.0
      %1862 = vmatprep.subr.mxu0 0.0
      %1863 = vmatpush1.msra.mxu0 0.0
      %1864 = vmatprep.subr.mxu0 0.0
      %1865 = vmatpush1.msra.mxu0 0.0
      %1866 = vmatprep.subr.mxu0 0.0
      %1867 = vmatpush1.msra.mxu0 0.0
      %1868 = vmatprep.subr.mxu0 0.0
      %1869 = vmatpush1.msra.mxu0 0.0
      %1870 = vmatprep.subr.mxu0 0.0
      %1871 = vmatpush1.msra.mxu0 0.0
      %1872 = vmatprep.subr.mxu0 0.0
      %1873 = vmatpush1.msra.mxu0 0.0
      %1874 = vmatprep.subr.mxu0 0.0
      %1875 = vmatpush1.msra.mxu0 0.0
      %1876 = vmatprep.subr.mxu0 0.0
      %1877 = vmatpush1.msra.mxu0 0.0
      %1878 = vmatprep.subr.mxu0 0.0
      %1879 = vmatpush1.msra.mxu0 0.0
      %1880 = vmatprep.subr.mxu0 0.0
      %1881 = vmatpush1.msra.mxu0 0.0
      %1882 = vmatprep.subr.mxu0 0.0
      %1883 = vmatpush1.msra.mxu0 0.0
      %1884 = vmatprep.subr.mxu0 0.0
      %1885 = vmatpush1.msra.mxu0 0.0
      %1886 = vmatprep.subr.mxu0 0.0
      %1887 = vmatpush1.msra.mxu0 0.0
      %1888 = vmatprep.subr.mxu0 0.0
      %1889 = vmatpush1.msra.mxu0 0.0
      %1890 = vmatprep.mubr.f32.mxu0 0.0
      %1891 = vmatmul.mubr.f32.gmra.mrb[0].mxu0 %v1323
      %v1892 = vpop.f32.mrb[0].mxu0
      %v1893 = vadd.f32 %v1822, %v1892
      %v1894 = vpop.f32.mrb[0].mxu0
      %v1895 = vadd.f32 %v1824, %v1894
      %1896 = vdwg.mxu0
      %1897 = vmatprep.subr.mxu0 %v244
      %1898 = vmatpush1.msra.mxu0 %v243
      %1899 = vmatprep.subr.mxu0 %v248
      %1900 = vmatpush1.msra.mxu0 %v247
      %1901 = vmatprep.subr.mxu0 %v252
      %1902 = vmatpush1.msra.mxu0 %v251
      %1903 = vmatprep.subr.mxu0 %v256
      %1904 = vmatpush1.msra.mxu0 %v255
      %1905 = vmatprep.subr.mxu0 %v260
      %1906 = vmatpush1.msra.mxu0 %v259
      %1907 = vmatprep.subr.mxu0 %v264
      %1908 = vmatpush1.msra.mxu0 %v263
      %1909 = vmatprep.subr.mxu0 %v268
      %1910 = vmatpush1.msra.mxu0 %v267
      %1911 = vmatprep.subr.mxu0 %v272
      %1912 = vmatpush1.msra.mxu0 %v271
      %1913 = vmatprep.subr.mxu0 %v276
      %1914 = vmatpush1.msra.mxu0 %v275
      %1915 = vmatprep.subr.mxu0 %v280
      %1916 = vmatpush1.msra.mxu0 %v279
      %1917 = vmatprep.subr.mxu0 %v284
      %1918 = vmatpush1.msra.mxu0 %v283
      %1919 = vmatprep.subr.mxu0 %v288
      %1920 = vmatpush1.msra.mxu0 %v287
      %1921 = vmatprep.subr.mxu0 %v292
      %1922 = vmatpush1.msra.mxu0 %v291
      %1923 = vmatprep.subr.mxu0 %v296
      %1924 = vmatpush1.msra.mxu0 %v295
      %1925 = vmatprep.subr.mxu0 %v300
      %1926 = vmatpush1.msra.mxu0 %v299
      %1927 = vmatprep.subr.mxu0 %v304
      %1928 = vmatpush1.msra.mxu0 %v303
      %1929 = vmatprep.subr.mxu0 %v308
      %1930 = vmatpush1.msra.mxu0 %v307
      %1931 = vmatprep.subr.mxu0 %v312
      %1932 = vmatpush1.msra.mxu0 %v311
      %1933 = vmatprep.subr.mxu0 %v316
      %1934 = vmatpush1.msra.mxu0 %v315
      %1935 = vmatprep.subr.mxu0 %v320
      %1936 = vmatpush1.msra.mxu0 %v319
      %1937 = vmatprep.subr.mxu0 %v324
      %1938 = vmatpush1.msra.mxu0 %v323
      %1939 = vmatprep.subr.mxu0 %v328
      %1940 = vmatpush1.msra.mxu0 %v327
      %1941 = vmatprep.subr.mxu0 %v332
      %1942 = vmatpush1.msra.mxu0 %v331
      %1943 = vmatprep.subr.mxu0 %v336
      %1944 = vmatpush1.msra.mxu0 %v335
      %1945 = vmatprep.subr.mxu0 %v340
      %1946 = vmatpush1.msra.mxu0 %v339
      %1947 = vmatprep.subr.mxu0 %v344
      %1948 = vmatpush1.msra.mxu0 %v343
      %1949 = vmatprep.subr.mxu0 %v348
      %1950 = vmatpush1.msra.mxu0 %v347
      %1951 = vmatprep.subr.mxu0 %v352
      %1952 = vmatpush1.msra.mxu0 %v351
      %1953 = vmatprep.subr.mxu0 %v356
      %1954 = vmatpush1.msra.mxu0 %v355
      %1955 = vmatprep.subr.mxu0 %v360
      %1956 = vmatpush1.msra.mxu0 %v359
      %1957 = vmatprep.subr.mxu0 %v364
      %1958 = vmatpush1.msra.mxu0 %v363
      %1959 = vmatprep.subr.mxu0 %v368
      %1960 = vmatpush1.msra.mxu0 %v367
      %1961 = vmatprep.mubr.f32.mxu0 %v735
      %1962 = vmatmul.mubr.f32.gmra.mrb[0].mxu0 %v732
      %v1963 = vpop.f32.mrb[0].mxu0
      %v1964 = vadd.f32 %v1751, %v1963
      %v1965 = vpop.f32.mrb[0].mxu0
      %v1966 = vadd.f32 %v1753, %v1965
      %1967 = vdwg.mxu0
      %1968 = vmatprep.subr.mxu0 %v372
      %1969 = vmatpush1.msra.mxu0 %v371
      %1970 = vmatprep.subr.mxu0 %v376
      %1971 = vmatpush1.msra.mxu0 %v375
      %1972 = vmatprep.subr.mxu0 %v380
      %1973 = vmatpush1.msra.mxu0 %v379
      %1974 = vmatprep.subr.mxu0 %v384
      %1975 = vmatpush1.msra.mxu0 %v383
      %1976 = vmatprep.subr.mxu0 %v388
      %1977 = vmatpush1.msra.mxu0 %v387
      %1978 = vmatprep.subr.mxu0 %v392
      %1979 = vmatpush1.msra.mxu0 %v391
      %1980 = vmatprep.subr.mxu0 %v396
      %1981 = vmatpush1.msra.mxu0 %v395
      %1982 = vmatprep.subr.mxu0 %v400
      %1983 = vmatpush1.msra.mxu0 %v399
      %1984 = vmatprep.subr.mxu0 0.0
      %1985 = vmatpush1.msra.mxu0 0.0
      %1986 = vmatprep.subr.mxu0 0.0
      %1987 = vmatpush1.msra.mxu0 0.0
      %1988 = vmatprep.subr.mxu0 0.0
      %1989 = vmatpush1.msra.mxu0 0.0
      %1990 = vmatprep.subr.mxu0 0.0
      %1991 = vmatpush1.msra.mxu0 0.0
      %1992 = vmatprep.subr.mxu0 0.0
      %1993 = vmatpush1.msra.mxu0 0.0
      %1994 = vmatprep.subr.mxu0 0.0
      %1995 = vmatpush1.msra.mxu0 0.0
      %1996 = vmatprep.subr.mxu0 0.0
      %1997 = vmatpush1.msra.mxu0 0.0
      %1998 = vmatprep.subr.mxu0 0.0
      %1999 = vmatpush1.msra.mxu0 0.0
      %2000 = vmatprep.subr.mxu0 0.0
      %2001 = vmatpush1.msra.mxu0 0.0
      %2002 = vmatprep.subr.mxu0 0.0
      %2003 = vmatpush1.msra.mxu0 0.0
      %2004 = vmatprep.subr.mxu0 0.0
      %2005 = vmatpush1.msra.mxu0 0.0
      %2006 = vmatprep.subr.mxu0 0.0
      %2007 = vmatpush1.msra.mxu0 0.0
      %2008 = vmatprep.subr.mxu0 0.0
      %2009 = vmatpush1.msra.mxu0 0.0
      %2010 = vmatprep.subr.mxu0 0.0
      %2011 = vmatpush1.msra.mxu0 0.0
      %2012 = vmatprep.subr.mxu0 0.0
      %2013 = vmatpush1.msra.mxu0 0.0
      %2014 = vmatprep.subr.mxu0 0.0
      %2015 = vmatpush1.msra.mxu0 0.0
      %2016 = vmatprep.subr.mxu0 0.0
      %2017 = vmatpush1.msra.mxu0 0.0
      %2018 = vmatprep.subr.mxu0 0.0
      %2019 = vmatpush1.msra.mxu0 0.0
      %2020 = vmatprep.subr.mxu0 0.0
      %2021 = vmatpush1.msra.mxu0 0.0
      %2022 = vmatprep.subr.mxu0 0.0
      %2023 = vmatpush1.msra.mxu0 0.0
      %2024 = vmatprep.subr.mxu0 0.0
      %2025 = vmatpush1.msra.mxu0 0.0
      %2026 = vmatprep.subr.mxu0 0.0
      %2027 = vmatpush1.msra.mxu0 0.0
      %2028 = vmatprep.subr.mxu0 0.0
      %2029 = vmatpush1.msra.mxu0 0.0
      %2030 = vmatprep.subr.mxu0 0.0
      %2031 = vmatpush1.msra.mxu0 0.0
      %2032 = vmatprep.mubr.f32.mxu0 0.0
      %2033 = vmatmul.mubr.f32.gmra.mrb[0].mxu0 %v742
      %v2034 = vpop.f32.mrb[0].mxu0
      %v2035 = vadd.f32 %v1964, %v2034
      %v2036 = vpop.f32.mrb[0].mxu0
      %v2037 = vadd.f32 %v1966, %v2036
      %2038 = vdwg.mxu0
      %2039 = vmatprep.subr.mxu0 %v246
      %2040 = vmatpush1.msra.mxu0 %v245
      %2041 = vmatprep.subr.mxu0 %v250
      %2042 = vmatpush1.msra.mxu0 %v249
      %2043 = vmatprep.subr.mxu0 %v254
      %2044 = vmatpush1.msra.mxu0 %v253
      %2045 = vmatprep.subr.mxu0 %v258
      %2046 = vmatpush1.msra.mxu0 %v257
      %2047 = vmatprep.subr.mxu0 %v262
      %2048 = vmatpush1.msra.mxu0 %v261
      %2049 = vmatprep.subr.mxu0 %v266
      %2050 = vmatpush1.msra.mxu0 %v265
      %2051 = vmatprep.subr.mxu0 %v270
      %2052 = vmatpush1.msra.mxu0 %v269
      %2053 = vmatprep.subr.mxu0 %v274
      %2054 = vmatpush1.msra.mxu0 %v273
      %2055 = vmatprep.subr.mxu0 %v278
      %2056 = vmatpush1.msra.mxu0 %v277
      %2057 = vmatprep.subr.mxu0 %v282
      %2058 = vmatpush1.msra.mxu0 %v281
      %2059 = vmatprep.subr.mxu0 %v286
      %2060 = vmatpush1.msra.mxu0 %v285
      %2061 = vmatprep.subr.mxu0 %v290
      %2062 = vmatpush1.msra.mxu0 %v289
      %2063 = vmatprep.subr.mxu0 %v294
      %2064 = vmatpush1.msra.mxu0 %v293
      %2065 = vmatprep.subr.mxu0 %v298
      %2066 = vmatpush1.msra.mxu0 %v297
      %2067 = vmatprep.subr.mxu0 %v302
      %2068 = vmatpush1.msra.mxu0 %v301
      %2069 = vmatprep.subr.mxu0 %v306
      %2070 = vmatpush1.msra.mxu0 %v305
      %2071 = vmatprep.subr.mxu0 %v310
      %2072 = vmatpush1.msra.mxu0 %v309
      %2073 = vmatprep.subr.mxu0 %v314
      %2074 = vmatpush1.msra.mxu0 %v313
      %2075 = vmatprep.subr.mxu0 %v318
      %2076 = vmatpush1.msra.mxu0 %v317
      %2077 = vmatprep.subr.mxu0 %v322
      %2078 = vmatpush1.msra.mxu0 %v321
      %2079 = vmatprep.subr.mxu0 %v326
      %2080 = vmatpush1.msra.mxu0 %v325
      %2081 = vmatprep.subr.mxu0 %v330
      %2082 = vmatpush1.msra.mxu0 %v329
      %2083 = vmatprep.subr.mxu0 %v334
      %2084 = vmatpush1.msra.mxu0 %v333
      %2085 = vmatprep.subr.mxu0 %v338
      %2086 = vmatpush1.msra.mxu0 %v337
      %2087 = vmatprep.subr.mxu0 %v342
      %2088 = vmatpush1.msra.mxu0 %v341
      %2089 = vmatprep.subr.mxu0 %v346
      %2090 = vmatpush1.msra.mxu0 %v345
      %2091 = vmatprep.subr.mxu0 %v350
      %2092 = vmatpush1.msra.mxu0 %v349
      %2093 = vmatprep.subr.mxu0 %v354
      %2094 = vmatpush1.msra.mxu0 %v353
      %2095 = vmatprep.subr.mxu0 %v358
      %2096 = vmatpush1.msra.mxu0 %v357
      %2097 = vmatprep.subr.mxu0 %v362
      %2098 = vmatpush1.msra.mxu0 %v361
      %2099 = vmatprep.subr.mxu0 %v366
      %2100 = vmatpush1.msra.mxu0 %v365
      %2101 = vmatprep.subr.mxu0 %v370
      %2102 = vmatpush1.msra.mxu0 %v369
      %2103 = vmatprep.mubr.f32.mxu0 %v735
      %2104 = vmatmul.mubr.f32.gmra.mrb[0].mxu0 %v732
      %v2105 = vpop.f32.mrb[0].mxu0
      %v2106 = vadd.f32 %v1893, %v2105
      %v2107 = vpop.f32.mrb[0].mxu0
      %v2108 = vadd.f32 %v1895, %v2107
      %2109 = vdwg.mxu0
      %2110 = vmatprep.subr.mxu0 %v374
      %2111 = vmatpush1.msra.mxu0 %v373
      %2112 = vmatprep.subr.mxu0 %v378
      %2113 = vmatpush1.msra.mxu0 %v377
      %2114 = vmatprep.subr.mxu0 %v382
      %2115 = vmatpush1.msra.mxu0 %v381
      %2116 = vmatprep.subr.mxu0 %v386
      %2117 = vmatpush1.msra.mxu0 %v385
      %2118 = vmatprep.subr.mxu0 %v390
      %2119 = vmatpush1.msra.mxu0 %v389
      %2120 = vmatprep.subr.mxu0 %v394
      %2121 = vmatpush1.msra.mxu0 %v393
      %2122 = vmatprep.subr.mxu0 %v398
      %2123 = vmatpush1.msra.mxu0 %v397
      %2124 = vmatprep.subr.mxu0 %v402
      %2125 = vmatpush1.msra.mxu0 %v401
      %2126 = vmatprep.subr.mxu0 0.0
      %2127 = vmatpush1.msra.mxu0 0.0
      %2128 = vmatprep.subr.mxu0 0.0
      %2129 = vmatpush1.msra.mxu0 0.0
      %2130 = vmatprep.subr.mxu0 0.0
      %2131 = vmatpush1.msra.mxu0 0.0
      %2132 = vmatprep.subr.mxu0 0.0
      %2133 = vmatpush1.msra.mxu0 0.0
      %2134 = vmatprep.subr.mxu0 0.0
      %2135 = vmatpush1.msra.mxu0 0.0
      %2136 = vmatprep.subr.mxu0 0.0
      %2137 = vmatpush1.msra.mxu0 0.0
      %2138 = vmatprep.subr.mxu0 0.0
      %2139 = vmatpush1.msra.mxu0 0.0
      %2140 = vmatprep.subr.mxu0 0.0
      %2141 = vmatpush1.msra.mxu0 0.0
      %2142 = vmatprep.subr.mxu0 0.0
      %2143 = vmatpush1.msra.mxu0 0.0
      %2144 = vmatprep.subr.mxu0 0.0
      %2145 = vmatpush1.msra.mxu0 0.0
      %2146 = vmatprep.subr.mxu0 0.0
      %2147 = vmatpush1.msra.mxu0 0.0
      %2148 = vmatprep.subr.mxu0 0.0
      %2149 = vmatpush1.msra.mxu0 0.0
      %2150 = vmatprep.subr.mxu0 0.0
      %2151 = vmatpush1.msra.mxu0 0.0
      %2152 = vmatprep.subr.mxu0 0.0
      %2153 = vmatpush1.msra.mxu0 0.0
      %2154 = vmatprep.subr.mxu0 0.0
      %2155 = vmatpush1.msra.mxu0 0.0
      %2156 = vmatprep.subr.mxu0 0.0
      %2157 = vmatpush1.msra.mxu0 0.0
      %2158 = vmatprep.subr.mxu0 0.0
      %2159 = vmatpush1.msra.mxu0 0.0
      %2160 = vmatprep.subr.mxu0 0.0
      %2161 = vmatpush1.msra.mxu0 0.0
      %2162 = vmatprep.subr.mxu0 0.0
      %2163 = vmatpush1.msra.mxu0 0.0
      %2164 = vmatprep.subr.mxu0 0.0
      %2165 = vmatpush1.msra.mxu0 0.0
      %2166 = vmatprep.subr.mxu0 0.0
      %2167 = vmatpush1.msra.mxu0 0.0
      %2168 = vmatprep.subr.mxu0 0.0
      %2169 = vmatpush1.msra.mxu0 0.0
      %2170 = vmatprep.subr.mxu0 0.0
      %2171 = vmatpush1.msra.mxu0 0.0
      %2172 = vmatprep.subr.mxu0 0.0
      %2173 = vmatpush1.msra.mxu0 0.0
      %2174 = vmatprep.mubr.f32.mxu0 0.0
      %2175 = vmatmul.mubr.f32.gmra.mrb[0].mxu0 %v742
      %v2176 = vpop.f32.mrb[0].mxu0
      %v2177 = vadd.f32 %v2106, %v2176
      %v2178 = vpop.f32.mrb[0].mxu0
      %v2179 = vadd.f32 %v2108, %v2178
      %2180 = vdwg.mxu0
      %vm2187 = vcmask 1041408
      %v2188 = vrot.slane %v237, 6
      %v2189 = vrot.slane %v240, 6
      %v2190 = vsel %vm2187, %v2188, %v2189
      %v2191 = vrot.slane %v238, 6
      %v2192 = vrot.slane %v241, 6
      %v2193 = vsel %vm2187, %v2191, %v2192
      %v2194 = vrot.slane %v239, 6
      %v2195 = vrot.slane %v242, 6
      %v2196 = vsel %vm2187, %v2194, %v2195
      %v2199 = vsel %vm741, %v2196, 0
      %2201 = vmatprep.subr.mxu0 %v564
      %2202 = vmatpush1.msra.mxu0 %v563
      %2203 = vmatprep.subr.mxu0 %v568
      %2204 = vmatpush1.msra.mxu0 %v567
      %2205 = vmatprep.subr.mxu0 %v572
      %2206 = vmatpush1.msra.mxu0 %v571
      %2207 = vmatprep.subr.mxu0 %v576
      %2208 = vmatpush1.msra.mxu0 %v575
      %2209 = vmatprep.subr.mxu0 %v580
      %2210 = vmatpush1.msra.mxu0 %v579
      %2211 = vmatprep.subr.mxu0 %v584
      %2212 = vmatpush1.msra.mxu0 %v583
      %2213 = vmatprep.subr.mxu0 %v588
      %2214 = vmatpush1.msra.mxu0 %v587
      %2215 = vmatprep.subr.mxu0 %v592
      %2216 = vmatpush1.msra.mxu0 %v591
      %2217 = vmatprep.subr.mxu0 %v596
      %2218 = vmatpush1.msra.mxu0 %v595
      %2219 = vmatprep.subr.mxu0 %v600
      %2220 = vmatpush1.msra.mxu0 %v599
      %2221 = vmatprep.subr.mxu0 %v604
      %2222 = vmatpush1.msra.mxu0 %v603
      %2223 = vmatprep.subr.mxu0 %v608
      %2224 = vmatpush1.msra.mxu0 %v607
      %2225 = vmatprep.subr.mxu0 %v612
      %2226 = vmatpush1.msra.mxu0 %v611
      %2227 = vmatprep.subr.mxu0 %v616
      %2228 = vmatpush1.msra.mxu0 %v615
      %2229 = vmatprep.subr.mxu0 %v620
      %2230 = vmatpush1.msra.mxu0 %v619
      %2231 = vmatprep.subr.mxu0 %v624
      %2232 = vmatpush1.msra.mxu0 %v623
      %2233 = vmatprep.subr.mxu0 %v628
      %2234 = vmatpush1.msra.mxu0 %v627
      %2235 = vmatprep.subr.mxu0 %v632
      %2236 = vmatpush1.msra.mxu0 %v631
      %2237 = vmatprep.subr.mxu0 %v636
      %2238 = vmatpush1.msra.mxu0 %v635
      %2239 = vmatprep.subr.mxu0 %v640
      %2240 = vmatpush1.msra.mxu0 %v639
      %2241 = vmatprep.subr.mxu0 %v644
      %2242 = vmatpush1.msra.mxu0 %v643
      %2243 = vmatprep.subr.mxu0 %v648
      %2244 = vmatpush1.msra.mxu0 %v647
      %2245 = vmatprep.subr.mxu0 %v652
      %2246 = vmatpush1.msra.mxu0 %v651
      %2247 = vmatprep.subr.mxu0 %v656
      %2248 = vmatpush1.msra.mxu0 %v655
      %2249 = vmatprep.subr.mxu0 %v660
      %2250 = vmatpush1.msra.mxu0 %v659
      %2251 = vmatprep.subr.mxu0 %v664
      %2252 = vmatpush1.msra.mxu0 %v663
      %2253 = vmatprep.subr.mxu0 %v668
      %2254 = vmatpush1.msra.mxu0 %v667
      %2255 = vmatprep.subr.mxu0 %v672
      %2256 = vmatpush1.msra.mxu0 %v671
      %2257 = vmatprep.subr.mxu0 %v676
      %2258 = vmatpush1.msra.mxu0 %v675
      %2259 = vmatprep.subr.mxu0 %v680
      %2260 = vmatpush1.msra.mxu0 %v679
      %2261 = vmatprep.subr.mxu0 %v684
      %2262 = vmatpush1.msra.mxu0 %v683
      %2263 = vmatprep.subr.mxu0 %v688
      %2264 = vmatpush1.msra.mxu0 %v687
      %2265 = vmatprep.mubr.f32.mxu0 %v2193
      %2266 = vmatmul.mubr.f32.gmra.mrb[0].mxu0 %v2190
      %v2267 = vpop.f32.mrb[0].mxu0
      %v2268 = vadd.f32 0.0, %v2267
      %v2269 = vpop.f32.mrb[0].mxu0
      %v2270 = vadd.f32 0.0, %v2269
      %2271 = vdwg.mxu0
      %2272 = vmatprep.subr.mxu0 %v692
      %2273 = vmatpush1.msra.mxu0 %v691
      %2274 = vmatprep.subr.mxu0 %v696
      %2275 = vmatpush1.msra.mxu0 %v695
      %2276 = vmatprep.subr.mxu0 %v700
      %2277 = vmatpush1.msra.mxu0 %v699
      %2278 = vmatprep.subr.mxu0 %v704
      %2279 = vmatpush1.msra.mxu0 %v703
      %2280 = vmatprep.subr.mxu0 %v708
      %2281 = vmatpush1.msra.mxu0 %v707
      %2282 = vmatprep.subr.mxu0 %v712
      %2283 = vmatpush1.msra.mxu0 %v711
      %2284 = vmatprep.subr.mxu0 %v716
      %2285 = vmatpush1.msra.mxu0 %v715
      %2286 = vmatprep.subr.mxu0 %v720
      %2287 = vmatpush1.msra.mxu0 %v719
      %2288 = vmatprep.subr.mxu0 0.0
      %2289 = vmatpush1.msra.mxu0 0.0
      %2290 = vmatprep.subr.mxu0 0.0
      %2291 = vmatpush1.msra.mxu0 0.0
      %2292 = vmatprep.subr.mxu0 0.0
      %2293 = vmatpush1.msra.mxu0 0.0
      %2294 = vmatprep.subr.mxu0 0.0
      %2295 = vmatpush1.msra.mxu0 0.0
      %2296 = vmatprep.subr.mxu0 0.0
      %2297 = vmatpush1.msra.mxu0 0.0
      %2298 = vmatprep.subr.mxu0 0.0
      %2299 = vmatpush1.msra.mxu0 0.0
      %2300 = vmatprep.subr.mxu0 0.0
      %2301 = vmatpush1.msra.mxu0 0.0
      %2302 = vmatprep.subr.mxu0 0.0
      %2303 = vmatpush1.msra.mxu0 0.0
      %2304 = vmatprep.subr.mxu0 0.0
      %2305 = vmatpush1.msra.mxu0 0.0
      %2306 = vmatprep.subr.mxu0 0.0
      %2307 = vmatpush1.msra.mxu0 0.0
      %2308 = vmatprep.subr.mxu0 0.0
      %2309 = vmatpush1.msra.mxu0 0.0
      %2310 = vmatprep.subr.mxu0 0.0
      %2311 = vmatpush1.msra.mxu0 0.0
      %2312 = vmatprep.subr.mxu0 0.0
      %2313 = vmatpush1.msra.mxu0 0.0
      %2314 = vmatprep.subr.mxu0 0.0
      %2315 = vmatpush1.msra.mxu0 0.0
      %2316 = vmatprep.subr.mxu0 0.0
      %2317 = vmatpush1.msra.mxu0 0.0
      %2318 = vmatprep.subr.mxu0 0.0
      %2319 = vmatpush1.msra.mxu0 0.0
      %2320 = vmatprep.subr.mxu0 0.0
      %2321 = vmatpush1.msra.mxu0 0.0
      %2322 = vmatprep.subr.mxu0 0.0
      %2323 = vmatpush1.msra.mxu0 0.0
      %2324 = vmatprep.subr.mxu0 0.0
      %2325 = vmatpush1.msra.mxu0 0.0
      %2326 = vmatprep.subr.mxu0 0.0
      %2327 = vmatpush1.msra.mxu0 0.0
      %2328 = vmatprep.subr.mxu0 0.0
      %2329 = vmatpush1.msra.mxu0 0.0
      %2330 = vmatprep.subr.mxu0 0.0
      %2331 = vmatpush1.msra.mxu0 0.0
      %2332 = vmatprep.subr.mxu0 0.0
      %2333 = vmatpush1.msra.mxu0 0.0
      %2334 = vmatprep.subr.mxu0 0.0
      %2335 = vmatpush1.msra.mxu0 0.0
      %2336 = vmatprep.mubr.f32.mxu0 0.0
      %2337 = vmatmul.mubr.f32.gmra.mrb[0].mxu0 %v2199
      %v2338 = vpop.f32.mrb[0].mxu0
      %v2339 = vadd.f32 %v2268, %v2338
      %v2340 = vpop.f32.mrb[0].mxu0
      %v2341 = vadd.f32 %v2270, %v2340
      %2342 = vdwg.mxu0
      %2343 = vmatprep.subr.mxu0 %v566
      %2344 = vmatpush1.msra.mxu0 %v565
      %2345 = vmatprep.subr.mxu0 %v570
      %2346 = vmatpush1.msra.mxu0 %v569
      %2347 = vmatprep.subr.mxu0 %v574
      %2348 = vmatpush1.msra.mxu0 %v573
      %2349 = vmatprep.subr.mxu0 %v578
      %2350 = vmatpush1.msra.mxu0 %v577
      %2351 = vmatprep.subr.mxu0 %v582
      %2352 = vmatpush1.msra.mxu0 %v581
      %2353 = vmatprep.subr.mxu0 %v586
      %2354 = vmatpush1.msra.mxu0 %v585
      %2355 = vmatprep.subr.mxu0 %v590
      %2356 = vmatpush1.msra.mxu0 %v589
      %2357 = vmatprep.subr.mxu0 %v594
      %2358 = vmatpush1.msra.mxu0 %v593
      %2359 = vmatprep.subr.mxu0 %v598
      %2360 = vmatpush1.msra.mxu0 %v597
      %2361 = vmatprep.subr.mxu0 %v602
      %2362 = vmatpush1.msra.mxu0 %v601
      %2363 = vmatprep.subr.mxu0 %v606
      %2364 = vmatpush1.msra.mxu0 %v605
      %2365 = vmatprep.subr.mxu0 %v610
      %2366 = vmatpush1.msra.mxu0 %v609
      %2367 = vmatprep.subr.mxu0 %v614
      %2368 = vmatpush1.msra.mxu0 %v613
      %2369 = vmatprep.subr.mxu0 %v618
      %2370 = vmatpush1.msra.mxu0 %v617
      %2371 = vmatprep.subr.mxu0 %v622
      %2372 = vmatpush1.msra.mxu0 %v621
      %2373 = vmatprep.subr.mxu0 %v626
      %2374 = vmatpush1.msra.mxu0 %v625
      %2375 = vmatprep.subr.mxu0 %v630
      %2376 = vmatpush1.msra.mxu0 %v629
      %2377 = vmatprep.subr.mxu0 %v634
      %2378 = vmatpush1.msra.mxu0 %v633
      %2379 = vmatprep.subr.mxu0 %v638
      %2380 = vmatpush1.msra.mxu0 %v637
      %2381 = vmatprep.subr.mxu0 %v642
      %2382 = vmatpush1.msra.mxu0 %v641
      %2383 = vmatprep.subr.mxu0 %v646
      %2384 = vmatpush1.msra.mxu0 %v645
      %2385 = vmatprep.subr.mxu0 %v650
      %2386 = vmatpush1.msra.mxu0 %v649
      %2387 = vmatprep.subr.mxu0 %v654
      %2388 = vmatpush1.msra.mxu0 %v653
      %2389 = vmatprep.subr.mxu0 %v658
      %2390 = vmatpush1.msra.mxu0 %v657
      %2391 = vmatprep.subr.mxu0 %v662
      %2392 = vmatpush1.msra.mxu0 %v661
      %2393 = vmatprep.subr.mxu0 %v666
      %2394 = vmatpush1.msra.mxu0 %v665
      %2395 = vmatprep.subr.mxu0 %v670
      %2396 = vmatpush1.msra.mxu0 %v669
      %2397 = vmatprep.subr.mxu0 %v674
      %2398 = vmatpush1.msra.mxu0 %v673
      %2399 = vmatprep.subr.mxu0 %v678
      %2400 = vmatpush1.msra.mxu0 %v677
      %2401 = vmatprep.subr.mxu0 %v682
      %2402 = vmatpush1.msra.mxu0 %v681
      %2403 = vmatprep.subr.mxu0 %v686
      %2404 = vmatpush1.msra.mxu0 %v685
      %2405 = vmatprep.subr.mxu0 %v690
      %2406 = vmatpush1.msra.mxu0 %v689
      %2407 = vmatprep.mubr.f32.mxu0 %v2193
      %2408 = vmatmul.mubr.f32.gmra.mrb[0].mxu0 %v2190
      %v2409 = vpop.f32.mrb[0].mxu0
      %v2410 = vadd.f32 0.0, %v2409
      %v2411 = vpop.f32.mrb[0].mxu0
      %v2412 = vadd.f32 0.0, %v2411
      %2413 = vdwg.mxu0
      %2414 = vmatprep.subr.mxu0 %v694
      %2415 = vmatpush1.msra.mxu0 %v693
      %2416 = vmatprep.subr.mxu0 %v698
      %2417 = vmatpush1.msra.mxu0 %v697
      %2418 = vmatprep.subr.mxu0 %v702
      %2419 = vmatpush1.msra.mxu0 %v701
      %2420 = vmatprep.subr.mxu0 %v706
      %2421 = vmatpush1.msra.mxu0 %v705
      %2422 = vmatprep.subr.mxu0 %v710
      %2423 = vmatpush1.msra.mxu0 %v709
      %2424 = vmatprep.subr.mxu0 %v714
      %2425 = vmatpush1.msra.mxu0 %v713
      %2426 = vmatprep.subr.mxu0 %v718
      %2427 = vmatpush1.msra.mxu0 %v717
      %2428 = vmatprep.subr.mxu0 %v722
      %2429 = vmatpush1.msra.mxu0 %v721
      %2430 = vmatprep.subr.mxu0 0.0
      %2431 = vmatpush1.msra.mxu0 0.0
      %2432 = vmatprep.subr.mxu0 0.0
      %2433 = vmatpush1.msra.mxu0 0.0
      %2434 = vmatprep.subr.mxu0 0.0
      %2435 = vmatpush1.msra.mxu0 0.0
      %2436 = vmatprep.subr.mxu0 0.0
      %2437 = vmatpush1.msra.mxu0 0.0
      %2438 = vmatprep.subr.mxu0 0.0
      %2439 = vmatpush1.msra.mxu0 0.0
      %2440 = vmatprep.subr.mxu0 0.0
      %2441 = vmatpush1.msra.mxu0 0.0
      %2442 = vmatprep.subr.mxu0 0.0
      %2443 = vmatpush1.msra.mxu0 0.0
      %2444 = vmatprep.subr.mxu0 0.0
      %2445 = vmatpush1.msra.mxu0 0.0
      %2446 = vmatprep.subr.mxu0 0.0
      %2447 = vmatpush1.msra.mxu0 0.0
      %2448 = vmatprep.subr.mxu0 0.0
      %2449 = vmatpush1.msra.mxu0 0.0
      %2450 = vmatprep.subr.mxu0 0.0
      %2451 = vmatpush1.msra.mxu0 0.0
      %2452 = vmatprep.subr.mxu0 0.0
      %2453 = vmatpush1.msra.mxu0 0.0
      %2454 = vmatprep.subr.mxu0 0.0
      %2455 = vmatpush1.msra.mxu0 0.0
      %2456 = vmatprep.subr.mxu0 0.0
      %2457 = vmatpush1.msra.mxu0 0.0
      %2458 = vmatprep.subr.mxu0 0.0
      %2459 = vmatpush1.msra.mxu0 0.0
      %2460 = vmatprep.subr.mxu0 0.0
      %2461 = vmatpush1.msra.mxu0 0.0
      %2462 = vmatprep.subr.mxu0 0.0
      %2463 = vmatpush1.msra.mxu0 0.0
      %2464 = vmatprep.subr.mxu0 0.0
      %2465 = vmatpush1.msra.mxu0 0.0
      %2466 = vmatprep.subr.mxu0 0.0
      %2467 = vmatpush1.msra.mxu0 0.0
      %2468 = vmatprep.subr.mxu0 0.0
      %2469 = vmatpush1.msra.mxu0 0.0
      %2470 = vmatprep.subr.mxu0 0.0
      %2471 = vmatpush1.msra.mxu0 0.0
      %2472 = vmatprep.subr.mxu0 0.0
      %2473 = vmatpush1.msra.mxu0 0.0
      %2474 = vmatprep.subr.mxu0 0.0
      %2475 = vmatpush1.msra.mxu0 0.0
      %2476 = vmatprep.subr.mxu0 0.0
      %2477 = vmatpush1.msra.mxu0 0.0
      %2478 = vmatprep.mubr.f32.mxu0 0.0
      %2479 = vmatmul.mubr.f32.gmra.mrb[0].mxu0 %v2199
      %v2480 = vpop.f32.mrb[0].mxu0
      %v2481 = vadd.f32 %v2410, %v2480
      %v2482 = vpop.f32.mrb[0].mxu0
      %v2483 = vadd.f32 %v2412, %v2482
      %2484 = vdwg.mxu0
      %v2485 = vadd.f32 %v2035, %v2339
      %v2486 = vadd.f32 %v2037, %v2341
      %v2487 = vadd.f32 %v2177, %v2481
      %v2488 = vadd.f32 %v2179, %v2483
      %v2489 = vmax.f32 %v1609, %v2485
      %v2490 = vmax.f32 %v1610, %v2486
      %v2491 = vmax.f32 %v1611, %v2487
      %v2492 = vmax.f32 %v1612, %v2488
      %v2493 = vmax.f32 %v2489, %v2491
      %v2494 = vmax.f32 %v2490, %v2492
      %v2495 = vld [vmem:[%s4] sm:$0x3]
      %v2497 = vlaneseq
      %v2498 = vshrl.u32 %v2497, 7
      %v2499 = vsub.s32 0, %v2498
      %v2500 = vrot.slane %v2495, %v2499
      %v2501 = vlaneseq
      %v2502 = vshrl.u32 %v2501, 7
      %v2503 = vsub.s32 1, %v2502
      %v2504 = vrot.slane %v2495, %v2503
      %v2507 = vadd.f32 %v2493, %v2500
      %v2508 = vadd.f32 %v2494, %v2504
      %v2509 = vmax.f32 %v2507, 0.0
      %v2510 = vmax.f32 %v2508, 0.0
      %v2513 = vcombine.low %v2509, %v2510
      %2515 = vst [vmem:[%s224] sm:$0xff] %v2513
      %p2516 = scmp.lt.s32.totalorder %s16, 1
      %s2517 = scalar_select %p2516, %s16, 1
      %s2518 = smul.addr %s2517, 2
      %s2519 = smul.addr %s2518, 4
      %s2520 = scalar_lea.vmem %s5, %s2519
      // Predicated region
      $region41: #{image_mlp_forward.4} parent=39 // pred_check
        %p2521 = pneg %p144
      $region42: #{image_mlp_forward.4} parent=39 // pred_check_branch
        %2523 = sbr.rel (%p2521) target = $region44
      $region43: #{image_mlp_forward.4} parent=39 // pred_region
        _
      $region44: #{image_mlp_forward.4} parent=39 // pred_fallthru
        _
    $region40: #{image_mlp_forward.4} parent=5 // pred_fallthru
      _
    %p2524 = scmp.le.s32.totalorder 2, %s11
    // Predicated region
    $region45: #{image_mlp_forward.4} parent=5 // pred_check
      %p2525 = pneg %p2524
    $region46: #{image_mlp_forward.4} parent=5 // pred_check_branch
      %2527 = sbr.rel (%p2525) target = $region48
    $region47: #{image_mlp_forward.4} parent=5 // pred_region
      %s2528 = ssub.s32 %s11, 2
      // Predicated region
      $region49: #{image_mlp_forward.4} parent=47 // pred_check
        %p2529 = pneg %p150
      $region50: #{image_mlp_forward.4} parent=47 // pred_check_branch
        %2531 = sbr.rel (%p2529) target = $region52
      $region51: #{image_mlp_forward.4} parent=47 // pred_region
        %p2532 = scmp.lt.s32.totalorder %s17, 1
        %s2533 = scalar_select %p2532, %s17, 1
        %s2534 = smul.addr %s2533, 2
        %s2535 = smul.addr %s2534, 4
        %s2536 = scalar_lea.vmem %s5, %s2535
      $region52: #{image_mlp_forward.4} parent=47 // pred_fallthru
        _
    $region48: #{image_mlp_forward.4} parent=5 // pred_fallthru
      _
  $region6: #{image_mlp_forward.4} parent=0 // loop_footer
    %s15 = sadd.s32 1, %s11
  $region7: #{image_mlp_forward.4} parent=0 // loop_footer_branch
    %10 = sbr.rel target = $region3
  $region8: #{image_mlp_forward.4} parent=0 // loop_exit
    _

</llo_original>
